<compile_context>
chip_gen: v6e
topology: v6e:2x2x1
jax: 0.10.0
libtpu: 0.0.40
codegen_flags: <defaults>
</compile_context>

<pallas_src>
import jax
import jax.numpy as jnp
import numpy as np
from jax.experimental import pallas as pl
from jax.experimental.pallas import tpu as pltpu


# ----------------------------------------------------------------------------- kernel

def _make_encoder_kernel(*, C, H, W, B, hid, num_conv):
    """Builds the fused Encoder kernel for static shapes."""
    L = num_conv - 1          # number of 3x3 conv + BN + ReLU blocks
    HW = H * W
    BHW = B * HW
    inv_n = 1.0 / float(BHW)  # BatchNorm2d normalizes over (B, H, W)

    def kernel(x_ref, masks_ref, cw_ref, g_ref, be_ref, wc_ref, bc_ref,
               w1_ref, b1_ref, w2_ref, b2_ref, gln_ref, bln_ref, w3_ref, b3_ref,
               o_ref, act_ref, hf_ref):
        f32, bf16 = jnp.float32, jnp.bfloat16

        # Stage input as [hid, B*HW] (lane-dense).  Zero ONLY the padded channel
        # rows C..hid-1 (rows 0..C-1 are overwritten; padded rows must not carry
        # stale VMEM bits into the first-layer matmuls).
        act_ref[0:C, :] = x_ref[...].astype(f32)
        act_ref[C:hid, :] = jnp.zeros((hid - C, BHW), f32)

        for l in range(L):
            act = act_ref[...]                                   # [hid, BHW] f32
            # Center tap first: no roll, no mask.
            acc = jnp.dot(cw_ref[l * 9 + 4].astype(bf16), act.astype(bf16),
                          preferred_element_type=f32)
            # 8 shifted taps: XLU lane roll -> bf16 cast -> MXU matmul -> apply the
            # per-column border mask on the f32 partial (mask commutes past the
            # channel contraction, so post-matmul application is exact).
            for dy in range(3):
                for dx in range(3):
                    if dy == 1 and dx == 1:
                        continue
                    tap = dy * 3 + dx
                    delta = (dy - 1) * W + (dx - 1)
                    rolled = pltpu.roll(act, shift=(-delta) % BHW, axis=1)
                    part = jnp.dot(cw_ref[l * 9 + tap].astype(bf16),
                                   rolled.astype(bf16),
                                   preferred_element_type=f32)
                    acc = acc + part * masks_ref[tap]

            # BatchNorm2d (training-mode batch stats, eps=1e-5), two-pass variance.
            # (Conv bias dropped: exactly cancelled by the mean subtraction.)
            mean = jnp.sum(acc, axis=1, keepdims=True) * inv_n
            cen = acc - mean
            var = jnp.sum(cen * cen, axis=1, keepdims=True) * inv_n
            scale = jax.lax.rsqrt(var + 1e-5) * g_ref[l]
            # Write back -> bounds per-layer live ranges to one activation tile.
            act_ref[...] = jnp.maximum(cen * scale + be_ref[l], 0.0)

        # 1x1 conv -> ReLU fused with the flatten to (B, HW): one [1,hid]@[hid,HW]
        # dot per batch row stored directly (flat index q = b*HW + h*W + w matches
        # PyTorch's h.view(-1, input_dim)).
        wc_bf = wc_ref[...].astype(bf16)                         # [1, hid]
        for b in range(B):
            blk = act_ref[:, b * HW:(b + 1) * HW].astype(bf16)   # [hid, HW]
            row = jnp.dot(wc_bf, blk, preferred_element_type=f32) + bc_ref[...]
            hf_ref[b:b + 1, :] = jnp.maximum(row, 0.0)

        # MLP head: fc1 -> ReLU -> fc2 -> LayerNorm -> ReLU -> fc3.
        # bf16 MXU operands, f32 accumulation & elementwise.
        hf = hf_ref[...]
        h1 = jnp.dot(hf.astype(bf16), w1_ref[...].astype(bf16),
                     preferred_element_type=f32) + b1_ref[...]
        h1 = jnp.maximum(h1, 0.0)
        h2 = jnp.dot(h1.astype(bf16), w2_ref[...].astype(bf16),
                     preferred_element_type=f32) + b2_ref[...]
        mu = jnp.mean(h2, axis=-1, keepdims=True)
        var2 = jnp.mean((h2 - mu) ** 2, axis=-1, keepdims=True)
        h2 = (h2 - mu) * jax.lax.rsqrt(var2 + 1e-5) * gln_ref[...] + bln_ref[...]
        h2 = jnp.maximum(h2, 0.0)
        o_ref[...] = (jnp.dot(h2.astype(bf16), w3_ref[...].astype(bf16),
                              preferred_element_type=f32)
                      + b3_ref[...]).astype(o_ref.dtype)
        # TODO(synk): BatchNorm running_mean/var buffer updates (training-mode state)
        # are not emitted; they do not affect the forward output.

    return kernel


# ----------------------------------------------------------------------------- wrapper

def _tap_masks(B, H, W):
    """masks[tap, 0, q] = 1 iff tap (dy,dx) reads an in-image pixel for flat index q."""
    HW = H * W
    q = np.arange(B * HW)
    p = q % HW
    h, w = p // W, p % W
    m = np.zeros((9, 1, B * HW), np.float32)
    for dy in range(3):
        for dx in range(3):
            hy, wx = h + dy - 1, w + dx - 1
            m[dy * 3 + dx, 0] = ((hy >= 0) & (hy < H) & (wx >= 0) & (wx < W))
    return jnp.asarray(m)


def encoder_forward(obs_nchw, params):
    """obs_nchw: [B, C, H, W] (PyTorch convention). Returns [B, output_dim]."""
    B, C, H, W = obs_nchw.shape
    hid = params["cw"].shape[1]
    L = params["cw"].shape[0] // 9
    out_dim = params["w3"].shape[-1]
    HW, BHW = H * W, B * H * W
    assert params["w1"].shape[0] == HW

    # Lane-dense activation layout: x[c, b*HW + h*W + w] = obs[b, c, h, w] (tiny glue).
    x = jnp.transpose(obs_nchw.astype(jnp.float32), (1, 0, 2, 3)).reshape(C, BHW)
    masks = _tap_masks(B, H, W)

    kernel = _make_encoder_kernel(C=C, H=H, W=W, B=B, hid=hid, num_conv=L + 1)

    inputs = (x, masks, params["cw"], params["g"], params["be"],
              params["wc"], params["bc"],
              params["w1"], params["b1"], params["w2"], params["b2"],
              params["g_ln"], params["b_ln"], params["w3"], params["b3"])

    flops = (L * 2 * BHW * (9 * hid) * hid + 2 * BHW * hid
             + 2 * B * HW * hid + 2 * B * hid * hid + 2 * B * hid * out_dim)
    bytes_accessed = 4 * (sum(int(np.prod(a.shape)) for a in inputs) + B * out_dim)

    vmem = pl.BlockSpec(memory_space=pltpu.MemorySpace.VMEM)
    return pl.pallas_call(
        kernel,
        out_shape=jax.ShapeDtypeStruct((B, out_dim), jnp.float32),
        in_specs=[vmem] * len(inputs),
        out_specs=vmem,
        scratch_shapes=[pltpu.VMEM((hid, BHW), jnp.float32),  # activation tile (f32)
                        pltpu.VMEM((B, HW), jnp.float32)],    # flattened CNN output
        cost_estimate=pl.CostEstimate(flops=flops,
                                      transcendentals=L * hid + B,
                                      bytes_accessed=bytes_accessed),
    )(*inputs)


# ----------------------------------------------------------------------------- reference (pure JAX)

def reference_forward(obs_nchw, params):
    x = jnp.transpose(obs_nchw, (0, 2, 3, 1)).astype(jnp.float32)   # NHWC
    for l, w in enumerate(params["conv_w_hwio"]):
        y = jax.lax.conv_general_dilated(
            x, w, window_strides=(1, 1), padding="SAME",
            dimension_numbers=("NHWC", "HWIO", "NHWC"))
        mean = jnp.mean(y, axis=(0, 1, 2), keepdims=True)
        var = jnp.mean((y - mean) ** 2, axis=(0, 1, 2), keepdims=True)
        y = (y - mean) * jax.lax.rsqrt(var + 1e-5)
        y = y * params["g"][l].reshape(1, 1, 1, -1) + params["be"][l].reshape(1, 1, 1, -1)
        x = jnp.maximum(y, 0.0)
    h = jnp.einsum("bhwc,c->bhw", x, params["wc"][0]) + params["bc"][0, 0]
    h = jnp.maximum(h, 0.0)
    B = h.shape[0]
    hf = h.reshape(B, -1)
    h1 = jnp.maximum(hf @ params["w1"] + params["b1"], 0.0)
    h2 = h1 @ params["w2"] + params["b2"]
    mu = jnp.mean(h2, axis=-1, keepdims=True)
    var = jnp.mean((h2 - mu) ** 2, axis=-1, keepdims=True)
    h2 = (h2 - mu) * jax.lax.rsqrt(var + 1e-5) * params["g_ln"] + params["b_ln"]
    h2 = jnp.maximum(h2, 0.0)
    return h2 @ params["w3"] + params["b3"]


# ----------------------------------------------------------------------------- params

def init_params(key, num_channels, hidden_dim, H, W, output_dim, num_conv):
    L = num_conv - 1
    keys = jax.random.split(key, 3 * L + 10)
    it = iter(keys)
    n = lambda shape, scale=0.1: scale * jax.random.normal(next(it), shape, jnp.float32)

    conv_w_hwio, cw, gs, bes = [], [], [], []
    cin = num_channels
    for _ in range(L):
        w = n((3, 3, cin, hidden_dim))            # HWIO
        g = 1.0 + n((hidden_dim,))
        be = n((hidden_dim,))
        conv_w_hwio.append(w)
        # Kernel layout: per-tap [cout, cin] slabs, cin zero-padded to hid,
        # stacked as [9, hid, hid] per layer -> concatenated to [L*9, hid, hid].
        wk = jnp.transpose(w, (3, 0, 1, 2))       # [cout, ky, kx, cin]
        wk = jnp.pad(wk, ((0, 0), (0, 0), (0, 0), (0, hidden_dim - cin)))
        wk = wk.reshape(hidden_dim, 9, hidden_dim)          # [cout, tap, cin]
        cw.append(jnp.transpose(wk, (1, 0, 2)))             # [tap, cout, cin]
        gs.append(g.reshape(hidden_dim, 1))
        bes.append(be.reshape(hidden_dim, 1))
        cin = hidden_dim

    input_dim = H * W
    return dict(
        conv_w_hwio=conv_w_hwio,                               # reference only
        cw=jnp.concatenate(cw, axis=0),                        # [L*9, hid, hid]
        g=jnp.stack(gs), be=jnp.stack(bes),
        wc=n((1, hidden_dim)), bc=n((1, 1)),
        w1=n((input_dim, hidden_dim)), b1=n((1, hidden_dim)),
        w2=n((hidden_dim, hidden_dim)), b2=n((1, hidden_dim)),
        g_ln=1.0 + n((1, hidden_dim)), b_ln=n((1, hidden_dim)),
        w3=n((hidden_dim, output_dim)), b3=n((1, output_dim)),
    )


# ----------------------------------------------------------------------------- main

if __name__ == "__main__":
    B, C, H, W = 2, 4, 16, 16
    hidden_dim, output_dim, num_conv = 32, 16, 3

    key = jax.random.PRNGKey(0)
    k_obs, k_params = jax.random.split(key)
    obs = jax.random.normal(k_obs, (B, C, H, W), jnp.float32)   # NCHW like PyTorch
    params = init_params(k_params, C, hidden_dim, H, W, output_dim, num_conv)

    fwd = jax.jit(encoder_forward)
    y = jax.block_until_ready(fwd(obs, params))
    assert y.shape == (B, output_dim), y.shape

    # f32 reference; kernel uses bf16 MXU operands with f32 accumulation.
    y_ref = reference_forward(obs, params)
    if not bool(jnp.allclose(y, y_ref, rtol=3e-2, atol=3e-2)):
        raise AssertionError(
            f"mismatch: max abs diff {float(jnp.max(jnp.abs(y - y_ref)))}")

    print("KERNEL_OK")
</pallas_src>

<mosaic_0001>
module attributes {stable_mosaic.version = 11 : i64} {
  func.func @kernel(%arg0: memref<4x512xf32, #tpu.memory_space<vmem>>, %arg1: memref<9x1x512xf32, #tpu.memory_space<vmem>>, %arg2: memref<18x32x32xf32, #tpu.memory_space<vmem>>, %arg3: memref<2x32x1xf32, #tpu.memory_space<vmem>>, %arg4: memref<2x32x1xf32, #tpu.memory_space<vmem>>, %arg5: memref<1x32xf32, #tpu.memory_space<vmem>>, %arg6: memref<1x1xf32, #tpu.memory_space<vmem>>, %arg7: memref<256x32xf32, #tpu.memory_space<vmem>>, %arg8: memref<1x32xf32, #tpu.memory_space<vmem>>, %arg9: memref<32x32xf32, #tpu.memory_space<vmem>>, %arg10: memref<1x32xf32, #tpu.memory_space<vmem>>, %arg11: memref<1x32xf32, #tpu.memory_space<vmem>>, %arg12: memref<1x32xf32, #tpu.memory_space<vmem>>, %arg13: memref<32x16xf32, #tpu.memory_space<vmem>>, %arg14: memref<1x16xf32, #tpu.memory_space<vmem>>, %arg15: memref<2x16xf32, #tpu.memory_space<vmem>>, %arg16: memref<32x512xf32, #tpu.memory_space<vmem>>, %arg17: memref<2x256xf32, #tpu.memory_space<vmem>>) attributes {dimension_semantics = [], scalar_prefetch = 0 : i64, scratch_operands = 2 : i64, tpu.core_type = #tpu.core_type<tc>} {
    %c0 = arith.constant 0 : index
    %c0_0 = arith.constant 0 : index
    %0 = vector.load %arg0[%c0, %c0_0] : memref<4x512xf32, #tpu.memory_space<vmem>>, vector<4x512xf32>
    %c0_1 = arith.constant 0 : index
    %c0_2 = arith.constant 0 : index
    %1 = vector.load %arg16[%c0_1, %c0_2] : memref<32x512xf32, #tpu.memory_space<vmem>>, vector<4x512xf32>
    tpu.vector_store %arg16[%c0_1, %c0_2], %0 {strides = array<i32>} : memref<32x512xf32, #tpu.memory_space<vmem>>, vector<4x512xf32>,
    %cst = arith.constant 0.000000e+00 : f32
    %2 = vector.broadcast %cst : f32 to vector<28x512xf32>
    %c4 = arith.constant 4 : index
    %c0_3 = arith.constant 0 : index
    %3 = vector.load %arg16[%c4, %c0_3] : memref<32x512xf32, #tpu.memory_space<vmem>>, vector<28x512xf32>
    tpu.vector_store %arg16[%c4, %c0_3], %2 {strides = array<i32>} : memref<32x512xf32, #tpu.memory_space<vmem>>, vector<28x512xf32>,
    %c0_4 = arith.constant 0 : index
    %c0_5 = arith.constant 0 : index
    %4 = vector.load %arg16[%c0_4, %c0_5] : memref<32x512xf32, #tpu.memory_space<vmem>>, vector<32x512xf32>
    %c4_6 = arith.constant 4 : index
    %c0_7 = arith.constant 0 : index
    %c0_8 = arith.constant 0 : index
    %5 = vector.load %arg2[%c4_6, %c0_7, %c0_8] : memref<18x32x32xf32, #tpu.memory_space<vmem>>, vector<1x32x32xf32>
    %6 = vector.shape_cast %5 : vector<1x32x32xf32> to vector<32x32xf32>
    %7 = arith.truncf %6 : vector<32x32xf32> to vector<32x32xbf16>
    %8 = arith.truncf %4 : vector<32x512xf32> to vector<32x512xbf16>
    %cst_9 = arith.constant dense<0.000000e+00> : vector<32x512xf32>
    %9 = tpu.matmul %7, %8, %cst_9 {dimension_numbers = #tpu.dot_dimension_numbers<[1], [0], [0], [1], [0, 0, 1, 1], [], []>} : vector<32x32xbf16>, vector<32x512xbf16>, vector<32x512xf32> -> vector<32x512xf32>
    %c17_i32 = arith.constant 17 : i32
    %10 = tpu.dynamic_rotate %4 by %c17_i32 dim 1 : vector<32x512xf32>, i32 -> vector<32x512xf32>
    %c0_10 = arith.constant 0 : index
    %c0_11 = arith.constant 0 : index
    %c0_12 = arith.constant 0 : index
    %11 = vector.load %arg2[%c0_10, %c0_11, %c0_12] : memref<18x32x32xf32, #tpu.memory_space<vmem>>, vector<1x32x32xf32>
    %12 = vector.shape_cast %11 : vector<1x32x32xf32> to vector<32x32xf32>
    %13 = arith.truncf %12 : vector<32x32xf32> to vector<32x32xbf16>
    %14 = arith.truncf %10 : vector<32x512xf32> to vector<32x512xbf16>
    %cst_13 = arith.constant dense<0.000000e+00> : vector<32x512xf32>
    %15 = tpu.matmul %13, %14, %cst_13 {dimension_numbers = #tpu.dot_dimension_numbers<[1], [0], [0], [1], [0, 0, 1, 1], [], []>} : vector<32x32xbf16>, vector<32x512xbf16>, vector<32x512xf32> -> vector<32x512xf32>
    %c0_14 = arith.constant 0 : index
    %c0_15 = arith.constant 0 : index
    %c0_16 = arith.constant 0 : index
    %16 = vector.load %arg1[%c0_14, %c0_15, %c0_16] : memref<9x1x512xf32, #tpu.memory_space<vmem>>, vector<1x1x512xf32>
    %17 = vector.shape_cast %16 : vector<1x1x512xf32> to vector<1x512xf32>
    %18 = vector.broadcast %17 : vector<1x512xf32> to vector<32x512xf32>
    %19 = arith.mulf %15, %18 : vector<32x512xf32>
    %20 = arith.addf %9, %19 : vector<32x512xf32>
    %c16_i32 = arith.constant 16 : i32
    %21 = tpu.dynamic_rotate %4 by %c16_i32 dim 1 : vector<32x512xf32>, i32 -> vector<32x512xf32>
    %c1 = arith.constant 1 : index
    %c0_17 = arith.constant 0 : index
    %c0_18 = arith.constant 0 : index
    %22 = vector.load %arg2[%c1, %c0_17, %c0_18] : memref<18x32x32xf32, #tpu.memory_space<vmem>>, vector<1x32x32xf32>
    %23 = vector.shape_cast %22 : vector<1x32x32xf32> to vector<32x32xf32>
    %24 = arith.truncf %23 : vector<32x32xf32> to vector<32x32xbf16>
    %25 = arith.truncf %21 : vector<32x512xf32> to vector<32x512xbf16>
    %cst_19 = arith.constant dense<0.000000e+00> : vector<32x512xf32>
    %26 = tpu.matmul %24, %25, %cst_19 {dimension_numbers = #tpu.dot_dimension_numbers<[1], [0], [0], [1], [0, 0, 1, 1], [], []>} : vector<32x32xbf16>, vector<32x512xbf16>, vector<32x512xf32> -> vector<32x512xf32>
    %c1_20 = arith.constant 1 : index
    %c0_21 = arith.constant 0 : index
    %c0_22 = arith.constant 0 : index
    %27 = vector.load %arg1[%c1_20, %c0_21, %c0_22] : memref<9x1x512xf32, #tpu.memory_space<vmem>>, vector<1x1x512xf32>
    %28 = vector.shape_cast %27 : vector<1x1x512xf32> to vector<1x512xf32>
    %29 = vector.broadcast %28 : vector<1x512xf32> to vector<32x512xf32>
    %30 = arith.mulf %26, %29 : vector<32x512xf32>
    %31 = arith.addf %20, %30 : vector<32x512xf32>
    %c15_i32 = arith.constant 15 : i32
    %32 = tpu.dynamic_rotate %4 by %c15_i32 dim 1 : vector<32x512xf32>, i32 -> vector<32x512xf32>
    %c2 = arith.constant 2 : index
    %c0_23 = arith.constant 0 : index
    %c0_24 = arith.constant 0 : index
    %33 = vector.load %arg2[%c2, %c0_23, %c0_24] : memref<18x32x32xf32, #tpu.memory_space<vmem>>, vector<1x32x32xf32>
    %34 = vector.shape_cast %33 : vector<1x32x32xf32> to vector<32x32xf32>
    %35 = arith.truncf %34 : vector<32x32xf32> to vector<32x32xbf16>
    %36 = arith.truncf %32 : vector<32x512xf32> to vector<32x512xbf16>
    %cst_25 = arith.constant dense<0.000000e+00> : vector<32x512xf32>
    %37 = tpu.matmul %35, %36, %cst_25 {dimension_numbers = #tpu.dot_dimension_numbers<[1], [0], [0], [1], [0, 0, 1, 1], [], []>} : vector<32x32xbf16>, vector<32x512xbf16>, vector<32x512xf32> -> vector<32x512xf32>
    %c2_26 = arith.constant 2 : index
    %c0_27 = arith.constant 0 : index
    %c0_28 = arith.constant 0 : index
    %38 = vector.load %arg1[%c2_26, %c0_27, %c0_28] : memref<9x1x512xf32, #tpu.memory_space<vmem>>, vector<1x1x512xf32>
    %39 = vector.shape_cast %38 : vector<1x1x512xf32> to vector<1x512xf32>
    %40 = vector.broadcast %39 : vector<1x512xf32> to vector<32x512xf32>
    %41 = arith.mulf %37, %40 : vector<32x512xf32>
    %42 = arith.addf %31, %41 : vector<32x512xf32>
    %c1_i32 = arith.constant 1 : i32
    %43 = tpu.dynamic_rotate %4 by %c1_i32 dim 1 : vector<32x512xf32>, i32 -> vector<32x512xf32>
    %c3 = arith.constant 3 : index
    %c0_29 = arith.constant 0 : index
    %c0_30 = arith.constant 0 : index
    %44 = vector.load %arg2[%c3, %c0_29, %c0_30] : memref<18x32x32xf32, #tpu.memory_space<vmem>>, vector<1x32x32xf32>
    %45 = vector.shape_cast %44 : vector<1x32x32xf32> to vector<32x32xf32>
    %46 = arith.truncf %45 : vector<32x32xf32> to vector<32x32xbf16>
    %47 = arith.truncf %43 : vector<32x512xf32> to vector<32x512xbf16>
    %cst_31 = arith.constant dense<0.000000e+00> : vector<32x512xf32>
    %48 = tpu.matmul %46, %47, %cst_31 {dimension_numbers = #tpu.dot_dimension_numbers<[1], [0], [0], [1], [0, 0, 1, 1], [], []>} : vector<32x32xbf16>, vector<32x512xbf16>, vector<32x512xf32> -> vector<32x512xf32>
    %c3_32 = arith.constant 3 : index
    %c0_33 = arith.constant 0 : index
    %c0_34 = arith.constant 0 : index
    %49 = vector.load %arg1[%c3_32, %c0_33, %c0_34] : memref<9x1x512xf32, #tpu.memory_space<vmem>>, vector<1x1x512xf32>
    %50 = vector.shape_cast %49 : vector<1x1x512xf32> to vector<1x512xf32>
    %51 = vector.broadcast %50 : vector<1x512xf32> to vector<32x512xf32>
    %52 = arith.mulf %48, %51 : vector<32x512xf32>
    %53 = arith.addf %42, %52 : vector<32x512xf32>
    %c511_i32 = arith.constant 511 : i32
    %54 = tpu.dynamic_rotate %4 by %c511_i32 dim 1 : vector<32x512xf32>, i32 -> vector<32x512xf32>
    %c5 = arith.constant 5 : index
    %c0_35 = arith.constant 0 : index
    %c0_36 = arith.constant 0 : index
    %55 = vector.load %arg2[%c5, %c0_35, %c0_36] : memref<18x32x32xf32, #tpu.memory_space<vmem>>, vector<1x32x32xf32>
    %56 = vector.shape_cast %55 : vector<1x32x32xf32> to vector<32x32xf32>
    %57 = arith.truncf %56 : vector<32x32xf32> to vector<32x32xbf16>
    %58 = arith.truncf %54 : vector<32x512xf32> to vector<32x512xbf16>
    %cst_37 = arith.constant dense<0.000000e+00> : vector<32x512xf32>
    %59 = tpu.matmul %57, %58, %cst_37 {dimension_numbers = #tpu.dot_dimension_numbers<[1], [0], [0], [1], [0, 0, 1, 1], [], []>} : vector<32x32xbf16>, vector<32x512xbf16>, vector<32x512xf32> -> vector<32x512xf32>
    %c5_38 = arith.constant 5 : index
    %c0_39 = arith.constant 0 : index
    %c0_40 = arith.constant 0 : index
    %60 = vector.load %arg1[%c5_38, %c0_39, %c0_40] : memref<9x1x512xf32, #tpu.memory_space<vmem>>, vector<1x1x512xf32>
    %61 = vector.shape_cast %60 : vector<1x1x512xf32> to vector<1x512xf32>
    %62 = vector.broadcast %61 : vector<1x512xf32> to vector<32x512xf32>
    %63 = arith.mulf %59, %62 : vector<32x512xf32>
    %64 = arith.addf %53, %63 : vector<32x512xf32>
    %c497_i32 = arith.constant 497 : i32
    %65 = tpu.dynamic_rotate %4 by %c497_i32 dim 1 : vector<32x512xf32>, i32 -> vector<32x512xf32>
    %c6 = arith.constant 6 : index
    %c0_41 = arith.constant 0 : index
    %c0_42 = arith.constant 0 : index
    %66 = vector.load %arg2[%c6, %c0_41, %c0_42] : memref<18x32x32xf32, #tpu.memory_space<vmem>>, vector<1x32x32xf32>
    %67 = vector.shape_cast %66 : vector<1x32x32xf32> to vector<32x32xf32>
    %68 = arith.truncf %67 : vector<32x32xf32> to vector<32x32xbf16>
    %69 = arith.truncf %65 : vector<32x512xf32> to vector<32x512xbf16>
    %cst_43 = arith.constant dense<0.000000e+00> : vector<32x512xf32>
    %70 = tpu.matmul %68, %69, %cst_43 {dimension_numbers = #tpu.dot_dimension_numbers<[1], [0], [0], [1], [0, 0, 1, 1], [], []>} : vector<32x32xbf16>, vector<32x512xbf16>, vector<32x512xf32> -> vector<32x512xf32>
    %c6_44 = arith.constant 6 : index
    %c0_45 = arith.constant 0 : index
    %c0_46 = arith.constant 0 : index
    %71 = vector.load %arg1[%c6_44, %c0_45, %c0_46] : memref<9x1x512xf32, #tpu.memory_space<vmem>>, vector<1x1x512xf32>
    %72 = vector.shape_cast %71 : vector<1x1x512xf32> to vector<1x512xf32>
    %73 = vector.broadcast %72 : vector<1x512xf32> to vector<32x512xf32>
    %74 = arith.mulf %70, %73 : vector<32x512xf32>
    %75 = arith.addf %64, %74 : vector<32x512xf32>
    %c496_i32 = arith.constant 496 : i32
    %76 = tpu.dynamic_rotate %4 by %c496_i32 dim 1 : vector<32x512xf32>, i32 -> vector<32x512xf32>
    %c7 = arith.constant 7 : index
    %c0_47 = arith.constant 0 : index
    %c0_48 = arith.constant 0 : index
    %77 = vector.load %arg2[%c7, %c0_47, %c0_48] : memref<18x32x32xf32, #tpu.memory_space<vmem>>, vector<1x32x32xf32>
    %78 = vector.shape_cast %77 : vector<1x32x32xf32> to vector<32x32xf32>
    %79 = arith.truncf %78 : vector<32x32xf32> to vector<32x32xbf16>
    %80 = arith.truncf %76 : vector<32x512xf32> to vector<32x512xbf16>
    %cst_49 = arith.constant dense<0.000000e+00> : vector<32x512xf32>
    %81 = tpu.matmul %79, %80, %cst_49 {dimension_numbers = #tpu.dot_dimension_numbers<[1], [0], [0], [1], [0, 0, 1, 1], [], []>} : vector<32x32xbf16>, vector<32x512xbf16>, vector<32x512xf32> -> vector<32x512xf32>
    %c7_50 = arith.constant 7 : index
    %c0_51 = arith.constant 0 : index
    %c0_52 = arith.constant 0 : index
    %82 = vector.load %arg1[%c7_50, %c0_51, %c0_52] : memref<9x1x512xf32, #tpu.memory_space<vmem>>, vector<1x1x512xf32>
    %83 = vector.shape_cast %82 : vector<1x1x512xf32> to vector<1x512xf32>
    %84 = vector.broadcast %83 : vector<1x512xf32> to vector<32x512xf32>
    %85 = arith.mulf %81, %84 : vector<32x512xf32>
    %86 = arith.addf %75, %85 : vector<32x512xf32>
    %c495_i32 = arith.constant 495 : i32
    %87 = tpu.dynamic_rotate %4 by %c495_i32 dim 1 : vector<32x512xf32>, i32 -> vector<32x512xf32>
    %c8 = arith.constant 8 : index
    %c0_53 = arith.constant 0 : index
    %c0_54 = arith.constant 0 : index
    %88 = vector.load %arg2[%c8, %c0_53, %c0_54] : memref<18x32x32xf32, #tpu.memory_space<vmem>>, vector<1x32x32xf32>
    %89 = vector.shape_cast %88 : vector<1x32x32xf32> to vector<32x32xf32>
    %90 = arith.truncf %89 : vector<32x32xf32> to vector<32x32xbf16>
    %91 = arith.truncf %87 : vector<32x512xf32> to vector<32x512xbf16>
    %cst_55 = arith.constant dense<0.000000e+00> : vector<32x512xf32>
    %92 = tpu.matmul %90, %91, %cst_55 {dimension_numbers = #tpu.dot_dimension_numbers<[1], [0], [0], [1], [0, 0, 1, 1], [], []>} : vector<32x32xbf16>, vector<32x512xbf16>, vector<32x512xf32> -> vector<32x512xf32>
    %c8_56 = arith.constant 8 : index
    %c0_57 = arith.constant 0 : index
    %c0_58 = arith.constant 0 : index
    %93 = vector.load %arg1[%c8_56, %c0_57, %c0_58] : memref<9x1x512xf32, #tpu.memory_space<vmem>>, vector<1x1x512xf32>
    %94 = vector.shape_cast %93 : vector<1x1x512xf32> to vector<1x512xf32>
    %95 = vector.broadcast %94 : vector<1x512xf32> to vector<32x512xf32>
    %96 = arith.mulf %92, %95 : vector<32x512xf32>
    %97 = arith.addf %86, %96 : vector<32x512xf32>
    %cst_59 = arith.constant dense<0.000000e+00> : vector<32xf32>
    %98 = vector.multi_reduction <add>, %97, %cst_59 [1] : vector<32x512xf32> to vector<32xf32>
    %99 = vector.shape_cast %98 : vector<32xf32> to vector<32x1xf32>
    %cst_60 = arith.constant 0.001953125 : f32
    %100 = vector.broadcast %cst_60 : f32 to vector<32x1xf32>
    %101 = arith.mulf %99, %100 : vector<32x1xf32>
    %102 = vector.broadcast %101 : vector<32x1xf32> to vector<32x512xf32>
    %103 = arith.subf %97, %102 : vector<32x512xf32>
    %104 = arith.mulf %103, %103 : vector<32x512xf32>
    %cst_61 = arith.constant dense<0.000000e+00> : vector<32xf32>
    %105 = vector.multi_reduction <add>, %104, %cst_61 [1] : vector<32x512xf32> to vector<32xf32>
    %106 = vector.shape_cast %105 : vector<32xf32> to vector<32x1xf32>
    %cst_62 = arith.constant 0.001953125 : f32
    %107 = vector.broadcast %cst_62 : f32 to vector<32x1xf32>
    %108 = arith.mulf %106, %107 : vector<32x1xf32>
    %cst_63 = arith.constant 9.99999974E-6 : f32
    %109 = vector.broadcast %cst_63 : f32 to vector<32x1xf32>
    %110 = arith.addf %108, %109 : vector<32x1xf32>
    %111 = math.rsqrt %110 : vector<32x1xf32>
    %c0_64 = arith.constant 0 : index
    %c0_65 = arith.constant 0 : index
    %c0_66 = arith.constant 0 : index
    %112 = vector.load %arg3[%c0_64, %c0_65, %c0_66] : memref<2x32x1xf32, #tpu.memory_space<vmem>>, vector<1x32x1xf32>
    %113 = vector.shape_cast %112 : vector<1x32x1xf32> to vector<32x1xf32>
    %114 = arith.mulf %111, %113 : vector<32x1xf32>
    %115 = vector.broadcast %114 : vector<32x1xf32> to vector<32x512xf32>
    %116 = arith.mulf %103, %115 : vector<32x512xf32>
    %c0_67 = arith.constant 0 : index
    %c0_68 = arith.constant 0 : index
    %c0_69 = arith.constant 0 : index
    %117 = vector.load %arg4[%c0_67, %c0_68, %c0_69] : memref<2x32x1xf32, #tpu.memory_space<vmem>>, vector<1x32x1xf32>
    %118 = vector.shape_cast %117 : vector<1x32x1xf32> to vector<32x1xf32>
    %119 = vector.broadcast %118 : vector<32x1xf32> to vector<32x512xf32>
    %120 = arith.addf %116, %119 : vector<32x512xf32>
    %cst_70 = arith.constant 0.000000e+00 : f32
    %121 = vector.broadcast %cst_70 : f32 to vector<32x512xf32>
    %122 = arith.maximumf %120, %121 : vector<32x512xf32>
    %c0_71 = arith.constant 0 : index
    %c0_72 = arith.constant 0 : index
    %123 = vector.load %arg16[%c0_71, %c0_72] : memref<32x512xf32, #tpu.memory_space<vmem>>, vector<32x512xf32>
    tpu.vector_store %arg16[%c0_71, %c0_72], %122 {strides = array<i32>} : memref<32x512xf32, #tpu.memory_space<vmem>>, vector<32x512xf32>,
    %c0_73 = arith.constant 0 : index
    %c0_74 = arith.constant 0 : index
    %124 = vector.load %arg16[%c0_73, %c0_74] : memref<32x512xf32, #tpu.memory_space<vmem>>, vector<32x512xf32>
    %c13 = arith.constant 13 : index
    %c0_75 = arith.constant 0 : index
    %c0_76 = arith.constant 0 : index
    %125 = vector.load %arg2[%c13, %c0_75, %c0_76] : memref<18x32x32xf32, #tpu.memory_space<vmem>>, vector<1x32x32xf32>
    %126 = vector.shape_cast %125 : vector<1x32x32xf32> to vector<32x32xf32>
    %127 = arith.truncf %126 : vector<32x32xf32> to vector<32x32xbf16>
    %128 = arith.truncf %124 : vector<32x512xf32> to vector<32x512xbf16>
    %cst_77 = arith.constant dense<0.000000e+00> : vector<32x512xf32>
    %129 = tpu.matmul %127, %128, %cst_77 {dimension_numbers = #tpu.dot_dimension_numbers<[1], [0], [0], [1], [0, 0, 1, 1], [], []>} : vector<32x32xbf16>, vector<32x512xbf16>, vector<32x512xf32> -> vector<32x512xf32>
    %c17_i32_78 = arith.constant 17 : i32
    %130 = tpu.dynamic_rotate %124 by %c17_i32_78 dim 1 : vector<32x512xf32>, i32 -> vector<32x512xf32>
    %c9 = arith.constant 9 : index
    %c0_79 = arith.constant 0 : index
    %c0_80 = arith.constant 0 : index
    %131 = vector.load %arg2[%c9, %c0_79, %c0_80] : memref<18x32x32xf32, #tpu.memory_space<vmem>>, vector<1x32x32xf32>
    %132 = vector.shape_cast %131 : vector<1x32x32xf32> to vector<32x32xf32>
    %133 = arith.truncf %132 : vector<32x32xf32> to vector<32x32xbf16>
    %134 = arith.truncf %130 : vector<32x512xf32> to vector<32x512xbf16>
    %cst_81 = arith.constant dense<0.000000e+00> : vector<32x512xf32>
    %135 = tpu.matmul %133, %134, %cst_81 {dimension_numbers = #tpu.dot_dimension_numbers<[1], [0], [0], [1], [0, 0, 1, 1], [], []>} : vector<32x32xbf16>, vector<32x512xbf16>, vector<32x512xf32> -> vector<32x512xf32>
    %c0_82 = arith.constant 0 : index
    %c0_83 = arith.constant 0 : index
    %c0_84 = arith.constant 0 : index
    %136 = vector.load %arg1[%c0_82, %c0_83, %c0_84] : memref<9x1x512xf32, #tpu.memory_space<vmem>>, vector<1x1x512xf32>
    %137 = vector.shape_cast %136 : vector<1x1x512xf32> to vector<1x512xf32>
    %138 = vector.broadcast %137 : vector<1x512xf32> to vector<32x512xf32>
    %139 = arith.mulf %135, %138 : vector<32x512xf32>
    %140 = arith.addf %129, %139 : vector<32x512xf32>
    %c16_i32_85 = arith.constant 16 : i32
    %141 = tpu.dynamic_rotate %124 by %c16_i32_85 dim 1 : vector<32x512xf32>, i32 -> vector<32x512xf32>
    %c10 = arith.constant 10 : index
    %c0_86 = arith.constant 0 : index
    %c0_87 = arith.constant 0 : index
    %142 = vector.load %arg2[%c10, %c0_86, %c0_87] : memref<18x32x32xf32, #tpu.memory_space<vmem>>, vector<1x32x32xf32>
    %143 = vector.shape_cast %142 : vector<1x32x32xf32> to vector<32x32xf32>
    %144 = arith.truncf %143 : vector<32x32xf32> to vector<32x32xbf16>
    %145 = arith.truncf %141 : vector<32x512xf32> to vector<32x512xbf16>
    %cst_88 = arith.constant dense<0.000000e+00> : vector<32x512xf32>
    %146 = tpu.matmul %144, %145, %cst_88 {dimension_numbers = #tpu.dot_dimension_numbers<[1], [0], [0], [1], [0, 0, 1, 1], [], []>} : vector<32x32xbf16>, vector<32x512xbf16>, vector<32x512xf32> -> vector<32x512xf32>
    %c1_89 = arith.constant 1 : index
    %c0_90 = arith.constant 0 : index
    %c0_91 = arith.constant 0 : index
    %147 = vector.load %arg1[%c1_89, %c0_90, %c0_91] : memref<9x1x512xf32, #tpu.memory_space<vmem>>, vector<1x1x512xf32>
    %148 = vector.shape_cast %147 : vector<1x1x512xf32> to vector<1x512xf32>
    %149 = vector.broadcast %148 : vector<1x512xf32> to vector<32x512xf32>
    %150 = arith.mulf %146, %149 : vector<32x512xf32>
    %151 = arith.addf %140, %150 : vector<32x512xf32>
    %c15_i32_92 = arith.constant 15 : i32
    %152 = tpu.dynamic_rotate %124 by %c15_i32_92 dim 1 : vector<32x512xf32>, i32 -> vector<32x512xf32>
    %c11 = arith.constant 11 : index
    %c0_93 = arith.constant 0 : index
    %c0_94 = arith.constant 0 : index
    %153 = vector.load %arg2[%c11, %c0_93, %c0_94] : memref<18x32x32xf32, #tpu.memory_space<vmem>>, vector<1x32x32xf32>
    %154 = vector.shape_cast %153 : vector<1x32x32xf32> to vector<32x32xf32>
    %155 = arith.truncf %154 : vector<32x32xf32> to vector<32x32xbf16>
    %156 = arith.truncf %152 : vector<32x512xf32> to vector<32x512xbf16>
    %cst_95 = arith.constant dense<0.000000e+00> : vector<32x512xf32>
    %157 = tpu.matmul %155, %156, %cst_95 {dimension_numbers = #tpu.dot_dimension_numbers<[1], [0], [0], [1], [0, 0, 1, 1], [], []>} : vector<32x32xbf16>, vector<32x512xbf16>, vector<32x512xf32> -> vector<32x512xf32>
    %c2_96 = arith.constant 2 : index
    %c0_97 = arith.constant 0 : index
    %c0_98 = arith.constant 0 : index
    %158 = vector.load %arg1[%c2_96, %c0_97, %c0_98] : memref<9x1x512xf32, #tpu.memory_space<vmem>>, vector<1x1x512xf32>
    %159 = vector.shape_cast %158 : vector<1x1x512xf32> to vector<1x512xf32>
    %160 = vector.broadcast %159 : vector<1x512xf32> to vector<32x512xf32>
    %161 = arith.mulf %157, %160 : vector<32x512xf32>
    %162 = arith.addf %151, %161 : vector<32x512xf32>
    %c1_i32_99 = arith.constant 1 : i32
    %163 = tpu.dynamic_rotate %124 by %c1_i32_99 dim 1 : vector<32x512xf32>, i32 -> vector<32x512xf32>
    %c12 = arith.constant 12 : index
    %c0_100 = arith.constant 0 : index
    %c0_101 = arith.constant 0 : index
    %164 = vector.load %arg2[%c12, %c0_100, %c0_101] : memref<18x32x32xf32, #tpu.memory_space<vmem>>, vector<1x32x32xf32>
    %165 = vector.shape_cast %164 : vector<1x32x32xf32> to vector<32x32xf32>
    %166 = arith.truncf %165 : vector<32x32xf32> to vector<32x32xbf16>
    %167 = arith.truncf %163 : vector<32x512xf32> to vector<32x512xbf16>
    %cst_102 = arith.constant dense<0.000000e+00> : vector<32x512xf32>
    %168 = tpu.matmul %166, %167, %cst_102 {dimension_numbers = #tpu.dot_dimension_numbers<[1], [0], [0], [1], [0, 0, 1, 1], [], []>} : vector<32x32xbf16>, vector<32x512xbf16>, vector<32x512xf32> -> vector<32x512xf32>
    %c3_103 = arith.constant 3 : index
    %c0_104 = arith.constant 0 : index
    %c0_105 = arith.constant 0 : index
    %169 = vector.load %arg1[%c3_103, %c0_104, %c0_105] : memref<9x1x512xf32, #tpu.memory_space<vmem>>, vector<1x1x512xf32>
    %170 = vector.shape_cast %169 : vector<1x1x512xf32> to vector<1x512xf32>
    %171 = vector.broadcast %170 : vector<1x512xf32> to vector<32x512xf32>
    %172 = arith.mulf %168, %171 : vector<32x512xf32>
    %173 = arith.addf %162, %172 : vector<32x512xf32>
    %c511_i32_106 = arith.constant 511 : i32
    %174 = tpu.dynamic_rotate %124 by %c511_i32_106 dim 1 : vector<32x512xf32>, i32 -> vector<32x512xf32>
    %c14 = arith.constant 14 : index
    %c0_107 = arith.constant 0 : index
    %c0_108 = arith.constant 0 : index
    %175 = vector.load %arg2[%c14, %c0_107, %c0_108] : memref<18x32x32xf32, #tpu.memory_space<vmem>>, vector<1x32x32xf32>
    %176 = vector.shape_cast %175 : vector<1x32x32xf32> to vector<32x32xf32>
    %177 = arith.truncf %176 : vector<32x32xf32> to vector<32x32xbf16>
    %178 = arith.truncf %174 : vector<32x512xf32> to vector<32x512xbf16>
    %cst_109 = arith.constant dense<0.000000e+00> : vector<32x512xf32>
    %179 = tpu.matmul %177, %178, %cst_109 {dimension_numbers = #tpu.dot_dimension_numbers<[1], [0], [0], [1], [0, 0, 1, 1], [], []>} : vector<32x32xbf16>, vector<32x512xbf16>, vector<32x512xf32> -> vector<32x512xf32>
    %c5_110 = arith.constant 5 : index
    %c0_111 = arith.constant 0 : index
    %c0_112 = arith.constant 0 : index
    %180 = vector.load %arg1[%c5_110, %c0_111, %c0_112] : memref<9x1x512xf32, #tpu.memory_space<vmem>>, vector<1x1x512xf32>
    %181 = vector.shape_cast %180 : vector<1x1x512xf32> to vector<1x512xf32>
    %182 = vector.broadcast %181 : vector<1x512xf32> to vector<32x512xf32>
    %183 = arith.mulf %179, %182 : vector<32x512xf32>
    %184 = arith.addf %173, %183 : vector<32x512xf32>
    %c497_i32_113 = arith.constant 497 : i32
    %185 = tpu.dynamic_rotate %124 by %c497_i32_113 dim 1 : vector<32x512xf32>, i32 -> vector<32x512xf32>
    %c15 = arith.constant 15 : index
    %c0_114 = arith.constant 0 : index
    %c0_115 = arith.constant 0 : index
    %186 = vector.load %arg2[%c15, %c0_114, %c0_115] : memref<18x32x32xf32, #tpu.memory_space<vmem>>, vector<1x32x32xf32>
    %187 = vector.shape_cast %186 : vector<1x32x32xf32> to vector<32x32xf32>
    %188 = arith.truncf %187 : vector<32x32xf32> to vector<32x32xbf16>
    %189 = arith.truncf %185 : vector<32x512xf32> to vector<32x512xbf16>
    %cst_116 = arith.constant dense<0.000000e+00> : vector<32x512xf32>
    %190 = tpu.matmul %188, %189, %cst_116 {dimension_numbers = #tpu.dot_dimension_numbers<[1], [0], [0], [1], [0, 0, 1, 1], [], []>} : vector<32x32xbf16>, vector<32x512xbf16>, vector<32x512xf32> -> vector<32x512xf32>
    %c6_117 = arith.constant 6 : index
    %c0_118 = arith.constant 0 : index
    %c0_119 = arith.constant 0 : index
    %191 = vector.load %arg1[%c6_117, %c0_118, %c0_119] : memref<9x1x512xf32, #tpu.memory_space<vmem>>, vector<1x1x512xf32>
    %192 = vector.shape_cast %191 : vector<1x1x512xf32> to vector<1x512xf32>
    %193 = vector.broadcast %192 : vector<1x512xf32> to vector<32x512xf32>
    %194 = arith.mulf %190, %193 : vector<32x512xf32>
    %195 = arith.addf %184, %194 : vector<32x512xf32>
    %c496_i32_120 = arith.constant 496 : i32
    %196 = tpu.dynamic_rotate %124 by %c496_i32_120 dim 1 : vector<32x512xf32>, i32 -> vector<32x512xf32>
    %c16 = arith.constant 16 : index
    %c0_121 = arith.constant 0 : index
    %c0_122 = arith.constant 0 : index
    %197 = vector.load %arg2[%c16, %c0_121, %c0_122] : memref<18x32x32xf32, #tpu.memory_space<vmem>>, vector<1x32x32xf32>
    %198 = vector.shape_cast %197 : vector<1x32x32xf32> to vector<32x32xf32>
    %199 = arith.truncf %198 : vector<32x32xf32> to vector<32x32xbf16>
    %200 = arith.truncf %196 : vector<32x512xf32> to vector<32x512xbf16>
    %cst_123 = arith.constant dense<0.000000e+00> : vector<32x512xf32>
    %201 = tpu.matmul %199, %200, %cst_123 {dimension_numbers = #tpu.dot_dimension_numbers<[1], [0], [0], [1], [0, 0, 1, 1], [], []>} : vector<32x32xbf16>, vector<32x512xbf16>, vector<32x512xf32> -> vector<32x512xf32>
    %c7_124 = arith.constant 7 : index
    %c0_125 = arith.constant 0 : index
    %c0_126 = arith.constant 0 : index
    %202 = vector.load %arg1[%c7_124, %c0_125, %c0_126] : memref<9x1x512xf32, #tpu.memory_space<vmem>>, vector<1x1x512xf32>
    %203 = vector.shape_cast %202 : vector<1x1x512xf32> to vector<1x512xf32>
    %204 = vector.broadcast %203 : vector<1x512xf32> to vector<32x512xf32>
    %205 = arith.mulf %201, %204 : vector<32x512xf32>
    %206 = arith.addf %195, %205 : vector<32x512xf32>
    %c495_i32_127 = arith.constant 495 : i32
    %207 = tpu.dynamic_rotate %124 by %c495_i32_127 dim 1 : vector<32x512xf32>, i32 -> vector<32x512xf32>
    %c17 = arith.constant 17 : index
    %c0_128 = arith.constant 0 : index
    %c0_129 = arith.constant 0 : index
    %208 = vector.load %arg2[%c17, %c0_128, %c0_129] : memref<18x32x32xf32, #tpu.memory_space<vmem>>, vector<1x32x32xf32>
    %209 = vector.shape_cast %208 : vector<1x32x32xf32> to vector<32x32xf32>
    %210 = arith.truncf %209 : vector<32x32xf32> to vector<32x32xbf16>
    %211 = arith.truncf %207 : vector<32x512xf32> to vector<32x512xbf16>
    %cst_130 = arith.constant dense<0.000000e+00> : vector<32x512xf32>
    %212 = tpu.matmul %210, %211, %cst_130 {dimension_numbers = #tpu.dot_dimension_numbers<[1], [0], [0], [1], [0, 0, 1, 1], [], []>} : vector<32x32xbf16>, vector<32x512xbf16>, vector<32x512xf32> -> vector<32x512xf32>
    %c8_131 = arith.constant 8 : index
    %c0_132 = arith.constant 0 : index
    %c0_133 = arith.constant 0 : index
    %213 = vector.load %arg1[%c8_131, %c0_132, %c0_133] : memref<9x1x512xf32, #tpu.memory_space<vmem>>, vector<1x1x512xf32>
    %214 = vector.shape_cast %213 : vector<1x1x512xf32> to vector<1x512xf32>
    %215 = vector.broadcast %214 : vector<1x512xf32> to vector<32x512xf32>
    %216 = arith.mulf %212, %215 : vector<32x512xf32>
    %217 = arith.addf %206, %216 : vector<32x512xf32>
    %cst_134 = arith.constant dense<0.000000e+00> : vector<32xf32>
    %218 = vector.multi_reduction <add>, %217, %cst_134 [1] : vector<32x512xf32> to vector<32xf32>
    %219 = vector.shape_cast %218 : vector<32xf32> to vector<32x1xf32>
    %cst_135 = arith.constant 0.001953125 : f32
    %220 = vector.broadcast %cst_135 : f32 to vector<32x1xf32>
    %221 = arith.mulf %219, %220 : vector<32x1xf32>
    %222 = vector.broadcast %221 : vector<32x1xf32> to vector<32x512xf32>
    %223 = arith.subf %217, %222 : vector<32x512xf32>
    %224 = arith.mulf %223, %223 : vector<32x512xf32>
    %cst_136 = arith.constant dense<0.000000e+00> : vector<32xf32>
    %225 = vector.multi_reduction <add>, %224, %cst_136 [1] : vector<32x512xf32> to vector<32xf32>
    %226 = vector.shape_cast %225 : vector<32xf32> to vector<32x1xf32>
    %cst_137 = arith.constant 0.001953125 : f32
    %227 = vector.broadcast %cst_137 : f32 to vector<32x1xf32>
    %228 = arith.mulf %226, %227 : vector<32x1xf32>
    %cst_138 = arith.constant 9.99999974E-6 : f32
    %229 = vector.broadcast %cst_138 : f32 to vector<32x1xf32>
    %230 = arith.addf %228, %229 : vector<32x1xf32>
    %231 = math.rsqrt %230 : vector<32x1xf32>
    %c1_139 = arith.constant 1 : index
    %c0_140 = arith.constant 0 : index
    %c0_141 = arith.constant 0 : index
    %232 = vector.load %arg3[%c1_139, %c0_140, %c0_141] : memref<2x32x1xf32, #tpu.memory_space<vmem>>, vector<1x32x1xf32>
    %233 = vector.shape_cast %232 : vector<1x32x1xf32> to vector<32x1xf32>
    %234 = arith.mulf %231, %233 : vector<32x1xf32>
    %235 = vector.broadcast %234 : vector<32x1xf32> to vector<32x512xf32>
    %236 = arith.mulf %223, %235 : vector<32x512xf32>
    %c1_142 = arith.constant 1 : index
    %c0_143 = arith.constant 0 : index
    %c0_144 = arith.constant 0 : index
    %237 = vector.load %arg4[%c1_142, %c0_143, %c0_144] : memref<2x32x1xf32, #tpu.memory_space<vmem>>, vector<1x32x1xf32>
    %238 = vector.shape_cast %237 : vector<1x32x1xf32> to vector<32x1xf32>
    %239 = vector.broadcast %238 : vector<32x1xf32> to vector<32x512xf32>
    %240 = arith.addf %236, %239 : vector<32x512xf32>
    %cst_145 = arith.constant 0.000000e+00 : f32
    %241 = vector.broadcast %cst_145 : f32 to vector<32x512xf32>
    %242 = arith.maximumf %240, %241 : vector<32x512xf32>
    %c0_146 = arith.constant 0 : index
    %c0_147 = arith.constant 0 : index
    %243 = vector.load %arg16[%c0_146, %c0_147] : memref<32x512xf32, #tpu.memory_space<vmem>>, vector<32x512xf32>
    tpu.vector_store %arg16[%c0_146, %c0_147], %242 {strides = array<i32>} : memref<32x512xf32, #tpu.memory_space<vmem>>, vector<32x512xf32>,
    %c0_148 = arith.constant 0 : index
    %c0_149 = arith.constant 0 : index
    %244 = vector.load %arg5[%c0_148, %c0_149] : memref<1x32xf32, #tpu.memory_space<vmem>>, vector<1x32xf32>
    %245 = arith.truncf %244 : vector<1x32xf32> to vector<1x32xbf16>
    %c0_150 = arith.constant 0 : index
    %c0_151 = arith.constant 0 : index
    %246 = vector.load %arg16[%c0_150, %c0_151] : memref<32x512xf32, #tpu.memory_space<vmem>>, vector<32x256xf32>
    %247 = arith.truncf %246 : vector<32x256xf32> to vector<32x256xbf16>
    %cst_152 = arith.constant dense<0.000000e+00> : vector<1x256xf32>
    %248 = tpu.matmul %245, %247, %cst_152 {dimension_numbers = #tpu.dot_dimension_numbers<[1], [0], [0], [1], [0, 0, 1, 1], [], []>} : vector<1x32xbf16>, vector<32x256xbf16>, vector<1x256xf32> -> vector<1x256xf32>
    %c0_153 = arith.constant 0 : index
    %c0_154 = arith.constant 0 : index
    %249 = vector.load %arg6[%c0_153, %c0_154] : memref<1x1xf32, #tpu.memory_space<vmem>>, vector<1x1xf32>
    %250 = vector.broadcast %249 : vector<1x1xf32> to vector<1x256xf32>
    %251 = arith.addf %248, %250 : vector<1x256xf32>
    %cst_155 = arith.constant 0.000000e+00 : f32
    %252 = vector.broadcast %cst_155 : f32 to vector<1x256xf32>
    %253 = arith.maximumf %251, %252 : vector<1x256xf32>
    %c0_156 = arith.constant 0 : index
    %c0_157 = arith.constant 0 : index
    %254 = vector.load %arg17[%c0_156, %c0_157] : memref<2x256xf32, #tpu.memory_space<vmem>>, vector<1x256xf32>
    tpu.vector_store %arg17[%c0_156, %c0_157], %253 {strides = array<i32>} : memref<2x256xf32, #tpu.memory_space<vmem>>, vector<1x256xf32>,
    %c0_158 = arith.constant 0 : index
    %c256 = arith.constant 256 : index
    %255 = vector.load %arg16[%c0_158, %c256] : memref<32x512xf32, #tpu.memory_space<vmem>>, vector<32x256xf32>
    %256 = arith.truncf %255 : vector<32x256xf32> to vector<32x256xbf16>
    %cst_159 = arith.constant dense<0.000000e+00> : vector<1x256xf32>
    %257 = tpu.matmul %245, %256, %cst_159 {dimension_numbers = #tpu.dot_dimension_numbers<[1], [0], [0], [1], [0, 0, 1, 1], [], []>} : vector<1x32xbf16>, vector<32x256xbf16>, vector<1x256xf32> -> vector<1x256xf32>
    %c0_160 = arith.constant 0 : index
    %c0_161 = arith.constant 0 : index
    %258 = vector.load %arg6[%c0_160, %c0_161] : memref<1x1xf32, #tpu.memory_space<vmem>>, vector<1x1xf32>
    %259 = vector.broadcast %258 : vector<1x1xf32> to vector<1x256xf32>
    %260 = arith.addf %257, %259 : vector<1x256xf32>
    %cst_162 = arith.constant 0.000000e+00 : f32
    %261 = vector.broadcast %cst_162 : f32 to vector<1x256xf32>
    %262 = arith.maximumf %260, %261 : vector<1x256xf32>
    %c1_163 = arith.constant 1 : index
    %c0_164 = arith.constant 0 : index
    %263 = vector.load %arg17[%c1_163, %c0_164] : memref<2x256xf32, #tpu.memory_space<vmem>>, vector<1x256xf32>
    tpu.vector_store %arg17[%c1_163, %c0_164], %262 {strides = array<i32>} : memref<2x256xf32, #tpu.memory_space<vmem>>, vector<1x256xf32>,
    %c0_165 = arith.constant 0 : index
    %c0_166 = arith.constant 0 : index
    %264 = vector.load %arg17[%c0_165, %c0_166] : memref<2x256xf32, #tpu.memory_space<vmem>>, vector<2x256xf32>
    %265 = arith.truncf %264 : vector<2x256xf32> to vector<2x256xbf16>
    %c0_167 = arith.constant 0 : index
    %c0_168 = arith.constant 0 : index
    %266 = vector.load %arg7[%c0_167, %c0_168] : memref<256x32xf32, #tpu.memory_space<vmem>>, vector<256x32xf32>
    %267 = arith.truncf %266 : vector<256x32xf32> to vector<256x32xbf16>
    %cst_169 = arith.constant dense<0.000000e+00> : vector<2x32xf32>
    %268 = tpu.matmul %265, %267, %cst_169 {dimension_numbers = #tpu.dot_dimension_numbers<[1], [0], [0], [1], [0, 0, 1, 1], [], []>} : vector<2x256xbf16>, vector<256x32xbf16>, vector<2x32xf32> -> vector<2x32xf32>
    %c0_170 = arith.constant 0 : index
    %c0_171 = arith.constant 0 : index
    %269 = vector.load %arg8[%c0_170, %c0_171] : memref<1x32xf32, #tpu.memory_space<vmem>>, vector<1x32xf32>
    %270 = vector.broadcast %269 : vector<1x32xf32> to vector<2x32xf32>
    %271 = arith.addf %268, %270 : vector<2x32xf32>
    %cst_172 = arith.constant 0.000000e+00 : f32
    %272 = vector.broadcast %cst_172 : f32 to vector<2x32xf32>
    %273 = arith.maximumf %271, %272 : vector<2x32xf32>
    %274 = arith.truncf %273 : vector<2x32xf32> to vector<2x32xbf16>
    %c0_173 = arith.constant 0 : index
    %c0_174 = arith.constant 0 : index
    %275 = vector.load %arg9[%c0_173, %c0_174] : memref<32x32xf32, #tpu.memory_space<vmem>>, vector<32x32xf32>
    %276 = arith.truncf %275 : vector<32x32xf32> to vector<32x32xbf16>
    %cst_175 = arith.constant dense<0.000000e+00> : vector<2x32xf32>
    %277 = tpu.matmul %274, %276, %cst_175 {dimension_numbers = #tpu.dot_dimension_numbers<[1], [0], [0], [1], [0, 0, 1, 1], [], []>} : vector<2x32xbf16>, vector<32x32xbf16>, vector<2x32xf32> -> vector<2x32xf32>
    %c0_176 = arith.constant 0 : index
    %c0_177 = arith.constant 0 : index
    %278 = vector.load %arg10[%c0_176, %c0_177] : memref<1x32xf32, #tpu.memory_space<vmem>>, vector<1x32xf32>
    %279 = vector.broadcast %278 : vector<1x32xf32> to vector<2x32xf32>
    %280 = arith.addf %277, %279 : vector<2x32xf32>
    %cst_178 = arith.constant dense<0.000000e+00> : vector<2xf32>
    %281 = vector.multi_reduction <add>, %280, %cst_178 [1] : vector<2x32xf32> to vector<2xf32>
    %282 = vector.shape_cast %281 : vector<2xf32> to vector<2x1xf32>
    %cst_179 = arith.constant 3.200000e+01 : f32
    %283 = vector.broadcast %cst_179 : f32 to vector<2x1xf32>
    %284 = arith.divf %282, %283 : vector<2x1xf32>
    %285 = vector.broadcast %284 : vector<2x1xf32> to vector<2x32xf32>
    %286 = arith.subf %280, %285 : vector<2x32xf32>
    %287 = arith.mulf %286, %286 : vector<2x32xf32>
    %cst_180 = arith.constant dense<0.000000e+00> : vector<2xf32>
    %288 = vector.multi_reduction <add>, %287, %cst_180 [1] : vector<2x32xf32> to vector<2xf32>
    %289 = vector.shape_cast %288 : vector<2xf32> to vector<2x1xf32>
    %cst_181 = arith.constant 3.200000e+01 : f32
    %290 = vector.broadcast %cst_181 : f32 to vector<2x1xf32>
    %291 = arith.divf %289, %290 : vector<2x1xf32>
    %292 = vector.broadcast %284 : vector<2x1xf32> to vector<2x32xf32>
    %293 = arith.subf %280, %292 : vector<2x32xf32>
    %cst_182 = arith.constant 9.99999974E-6 : f32
    %294 = vector.broadcast %cst_182 : f32 to vector<2x1xf32>
    %295 = arith.addf %291, %294 : vector<2x1xf32>
    %296 = math.rsqrt %295 : vector<2x1xf32>
    %297 = vector.broadcast %296 : vector<2x1xf32> to vector<2x32xf32>
    %298 = arith.mulf %293, %297 : vector<2x32xf32>
    %c0_183 = arith.constant 0 : index
    %c0_184 = arith.constant 0 : index
    %299 = vector.load %arg11[%c0_183, %c0_184] : memref<1x32xf32, #tpu.memory_space<vmem>>, vector<1x32xf32>
    %300 = vector.broadcast %299 : vector<1x32xf32> to vector<2x32xf32>
    %301 = arith.mulf %298, %300 : vector<2x32xf32>
    %c0_185 = arith.constant 0 : index
    %c0_186 = arith.constant 0 : index
    %302 = vector.load %arg12[%c0_185, %c0_186] : memref<1x32xf32, #tpu.memory_space<vmem>>, vector<1x32xf32>
    %303 = vector.broadcast %302 : vector<1x32xf32> to vector<2x32xf32>
    %304 = arith.addf %301, %303 : vector<2x32xf32>
    %cst_187 = arith.constant 0.000000e+00 : f32
    %305 = vector.broadcast %cst_187 : f32 to vector<2x32xf32>
    %306 = arith.maximumf %304, %305 : vector<2x32xf32>
    %307 = arith.truncf %306 : vector<2x32xf32> to vector<2x32xbf16>
    %c0_188 = arith.constant 0 : index
    %c0_189 = arith.constant 0 : index
    %308 = vector.load %arg13[%c0_188, %c0_189] : memref<32x16xf32, #tpu.memory_space<vmem>>, vector<32x16xf32>
    %309 = arith.truncf %308 : vector<32x16xf32> to vector<32x16xbf16>
    %cst_190 = arith.constant dense<0.000000e+00> : vector<2x16xf32>
    %310 = tpu.matmul %307, %309, %cst_190 {dimension_numbers = #tpu.dot_dimension_numbers<[1], [0], [0], [1], [0, 0, 1, 1], [], []>} : vector<2x32xbf16>, vector<32x16xbf16>, vector<2x16xf32> -> vector<2x16xf32>
    %c0_191 = arith.constant 0 : index
    %c0_192 = arith.constant 0 : index
    %311 = vector.load %arg14[%c0_191, %c0_192] : memref<1x16xf32, #tpu.memory_space<vmem>>, vector<1x16xf32>
    %312 = vector.broadcast %311 : vector<1x16xf32> to vector<2x16xf32>
    %313 = arith.addf %310, %312 : vector<2x16xf32>
    %c0_193 = arith.constant 0 : index
    %c0_194 = arith.constant 0 : index
    %314 = vector.load %arg15[%c0_193, %c0_194] : memref<2x16xf32, #tpu.memory_space<vmem>>, vector<2x16xf32>
    tpu.vector_store %arg15[%c0_193, %c0_194], %313 {strides = array<i32>} : memref<2x16xf32, #tpu.memory_space<vmem>>, vector<2x16xf32>,
    return
  }
}

</mosaic_0001>

<llo_original>
// kernel: encoder_forward.1
$region0: #{encoder_forward.1}
  #allocation0 [shape = 'u32[]', space=smem, size = 0x4, offset = 0x4, fixed_abs, tag = 'smem constant byte address 0x4 - core index']
  #allocation1 [shape = 'u32[144,128]{1,0:T(1,128)}', space=vmem, size = 0x12000, scoped, tag = 'internal scratch']
  #allocation2 [shape = 'f32[32,512]{1,0:T(8,128)}', space=vmem, size = 0x10000, scoped, tag = 'scratch operand']
  #allocation3 [shape = 'f32[2,256]{1,0:T(2,128)}', space=vmem, size = 0x800, scoped, tag = 'scratch operand']
  #allocation4 [shape = 'f32[1,1]{1,0:T(1,128)S(1)}', space=vmem, size = 0x200, scoped, tag = 'scoped memory for encoder_forward.1']
  %s0 = inlined_call_operand.vmem [shape: f32[4,512], index: 0, kind: input, shape index: {}]
  %s1 = inlined_call_operand.vmem [shape: f32[9,1,512], index: 1, kind: input, shape index: {}]
  %s2 = inlined_call_operand.vmem [shape: f32[18,32,32], index: 2, kind: input, shape index: {}]
  %s3 = inlined_call_operand.vmem [shape: f32[2,32,1], index: 3, kind: input, shape index: {}]
  %s4 = inlined_call_operand.vmem [shape: f32[2,32,1], index: 4, kind: input, shape index: {}]
  %s5 = inlined_call_operand.vmem [shape: f32[1,32], index: 5, kind: input, shape index: {}]
  %s6 = inlined_call_operand.<no memory space> [shape: f32[1,1], index: 6, kind: input, shape index: {}]
  %s7 = inlined_call_operand.vmem [shape: f32[256,32], index: 7, kind: input, shape index: {}]
  %s8 = inlined_call_operand.vmem [shape: f32[1,32], index: 8, kind: input, shape index: {}]
  %s9 = inlined_call_operand.vmem [shape: f32[32,32], index: 9, kind: input, shape index: {}]
  %s10 = inlined_call_operand.vmem [shape: f32[1,32], index: 10, kind: input, shape index: {}]
  %s11 = inlined_call_operand.vmem [shape: f32[1,32], index: 11, kind: input, shape index: {}]
  %s12 = inlined_call_operand.vmem [shape: f32[1,32], index: 12, kind: input, shape index: {}]
  %s13 = inlined_call_operand.vmem [shape: f32[32,16], index: 13, kind: input, shape index: {}]
  %s14 = inlined_call_operand.vmem [shape: f32[1,16], index: 14, kind: input, shape index: {}]
  %s15 = inlined_call_operand.hbm [shape: f32[2,16], index: 15, kind: output, shape index: {}]
  %s16 = sld [smem:[#allocation0]]
  $region70: #{encoder_forward.1} parent=0
    _
  %s18 = ssub.s32 1, %s16
  %s19 = scalar_select 0, %s18, %s16
  %v20 = vstv %s6
  %21 = vst [vmem:[#allocation4] sm:$0x1] %v20
  $region1: #{encoder_forward.1} parent=0
    #allocation5 [shape = 'u8[1024]{0}', space=vmem, size = 0x400, scoped, tag = 'output window, operand 0, single buffered']
    #allocation6 [shape = 's32[1]{0}', space=sflag, size = 0x4, scoped, tag = 'scoped memory for encoder_forward.1']
    %22 = vsyncpa [#allocation6], 0
    // Predicated region
    $region2: #{encoder_forward.1} parent=1 // pred_check
      _
    $region3: #{encoder_forward.1} parent=1 // pred_check_branch
      %24 = sbr.rel (0) target = $region5
    $region4: #{encoder_forward.1} parent=1 // pred_region
      _
    $region5: #{encoder_forward.1} parent=1 // pred_fallthru
      _
    // Predicated region
    $region6: #{encoder_forward.1} parent=1 // pred_check
      _
    $region7: #{encoder_forward.1} parent=1 // pred_check_branch
      %26 = sbr.rel (0) target = $region9
    $region8: #{encoder_forward.1} parent=1 // pred_region
      _
    $region9: #{encoder_forward.1} parent=1 // pred_fallthru
      _
    // Predicated region
    $region10: #{encoder_forward.1} parent=1 // pred_check
      _
    $region11: #{encoder_forward.1} parent=1 // pred_check_branch
      %28 = sbr.rel (0) target = $region13
    $region12: #{encoder_forward.1} parent=1 // pred_region
      _
    $region13: #{encoder_forward.1} parent=1 // pred_fallthru
      _
    // Predicated region
    $region14: #{encoder_forward.1} parent=1 // pred_check
      _
    $region15: #{encoder_forward.1} parent=1 // pred_check_branch
      %30 = sbr.rel (0) target = $region17
    $region16: #{encoder_forward.1} parent=1 // pred_region
      _
    $region17: #{encoder_forward.1} parent=1 // pred_fallthru
      _
    // Predicated region
    $region18: #{encoder_forward.1} parent=1 // pred_check
      _
    $region19: #{encoder_forward.1} parent=1 // pred_check_branch
      %32 = sbr.rel (0) target = $region21
    $region20: #{encoder_forward.1} parent=1 // pred_region
      _
    $region21: #{encoder_forward.1} parent=1 // pred_fallthru
      _
    // Predicated region
    $region22: #{encoder_forward.1} parent=1 // pred_check
      _
    $region23: #{encoder_forward.1} parent=1 // pred_check_branch
      %34 = sbr.rel (0) target = $region25
    $region24: #{encoder_forward.1} parent=1 // pred_region
      _
    $region25: #{encoder_forward.1} parent=1 // pred_fallthru
      _
    // Predicated region
    $region26: #{encoder_forward.1} parent=1 // pred_check
      _
    $region27: #{encoder_forward.1} parent=1 // pred_check_branch
      %36 = sbr.rel (0) target = $region29
    $region28: #{encoder_forward.1} parent=1 // pred_region
      _
    $region29: #{encoder_forward.1} parent=1 // pred_fallthru
      _
    // Predicated region
    $region30: #{encoder_forward.1} parent=1 // pred_check
      _
    $region31: #{encoder_forward.1} parent=1 // pred_check_branch
      %38 = sbr.rel (0) target = $region33
    $region32: #{encoder_forward.1} parent=1 // pred_region
      _
    $region33: #{encoder_forward.1} parent=1 // pred_fallthru
      _
    // Predicated region
    $region34: #{encoder_forward.1} parent=1 // pred_check
      _
    $region35: #{encoder_forward.1} parent=1 // pred_check_branch
      %40 = sbr.rel (0) target = $region37
    $region36: #{encoder_forward.1} parent=1 // pred_region
      _
    $region37: #{encoder_forward.1} parent=1 // pred_fallthru
      _
    // Predicated region
    $region38: #{encoder_forward.1} parent=1 // pred_check
      _
    $region39: #{encoder_forward.1} parent=1 // pred_check_branch
      %42 = sbr.rel (0) target = $region41
    $region40: #{encoder_forward.1} parent=1 // pred_region
      _
    $region41: #{encoder_forward.1} parent=1 // pred_fallthru
      _
    // Predicated region
    $region42: #{encoder_forward.1} parent=1 // pred_check
      _
    $region43: #{encoder_forward.1} parent=1 // pred_check_branch
      %44 = sbr.rel (0) target = $region45
    $region44: #{encoder_forward.1} parent=1 // pred_region
      _
    $region45: #{encoder_forward.1} parent=1 // pred_fallthru
      _
    // Predicated region
    $region46: #{encoder_forward.1} parent=1 // pred_check
      _
    $region47: #{encoder_forward.1} parent=1 // pred_check_branch
      %46 = sbr.rel (0) target = $region49
    $region48: #{encoder_forward.1} parent=1 // pred_region
      _
    $region49: #{encoder_forward.1} parent=1 // pred_fallthru
      _
    // Predicated region
    $region50: #{encoder_forward.1} parent=1 // pred_check
      _
    $region51: #{encoder_forward.1} parent=1 // pred_check_branch
      %48 = sbr.rel (0) target = $region53
    $region52: #{encoder_forward.1} parent=1 // pred_region
      _
    $region53: #{encoder_forward.1} parent=1 // pred_fallthru
      _
    // Predicated region
    $region54: #{encoder_forward.1} parent=1 // pred_check
      _
    $region55: #{encoder_forward.1} parent=1 // pred_check_branch
      %50 = sbr.rel (0) target = $region57
    $region56: #{encoder_forward.1} parent=1 // pred_region
      _
    $region57: #{encoder_forward.1} parent=1 // pred_fallthru
      _
    // Predicated region
    $region58: #{encoder_forward.1} parent=1 // pred_check
      _
    $region59: #{encoder_forward.1} parent=1 // pred_check_branch
      %52 = sbr.rel (0) target = $region61
    $region60: #{encoder_forward.1} parent=1 // pred_region
      _
    $region61: #{encoder_forward.1} parent=1 // pred_fallthru
      _
    %v54 = vld [vmem:[%s0] sm:$0xff]
    %v55 = vld [vmem:[%s0 + $0x8] sm:$0xff]
    %v58 = vcombine.high %v54, %v54
    %v59 = vcombine.high %v55, %v55
    %62 = vst [vmem:[#allocation2] sm:$0xf] %v54
    %63 = vst [vmem:[#allocation2 + $0x8] sm:$0xf] %v58
    %64 = vst [vmem:[#allocation2 + $0x10] sm:$0xf] %v55
    %65 = vst [vmem:[#allocation2 + $0x18] sm:$0xf] %v59
    %66 = vst [vmem:[#allocation2] sm:$0xf0] 0.0
    %67 = vst [vmem:[#allocation2 + $0x8] sm:$0xf0] 0.0
    %68 = vst [vmem:[#allocation2 + $0x10] sm:$0xf0] 0.0
    %69 = vst [vmem:[#allocation2 + $0x18] sm:$0xf0] 0.0
    %70 = vst [vmem:[#allocation2 + $0x20] sm:$0xff] 0.0
    %71 = vst [vmem:[#allocation2 + $0x28] sm:$0xff] 0.0
    %72 = vst [vmem:[#allocation2 + $0x30] sm:$0xff] 0.0
    %73 = vst [vmem:[#allocation2 + $0x38] sm:$0xff] 0.0
    %74 = vst [vmem:[#allocation2 + $0x40] sm:$0xff] 0.0
    %75 = vst [vmem:[#allocation2 + $0x48] sm:$0xff] 0.0
    %76 = vst [vmem:[#allocation2 + $0x50] sm:$0xff] 0.0
    %77 = vst [vmem:[#allocation2 + $0x58] sm:$0xff] 0.0
    %78 = vst [vmem:[#allocation2 + $0x60] sm:$0xff] 0.0
    %79 = vst [vmem:[#allocation2 + $0x68] sm:$0xff] 0.0
    %80 = vst [vmem:[#allocation2 + $0x70] sm:$0xff] 0.0
    %81 = vst [vmem:[#allocation2 + $0x78] sm:$0xff] 0.0
    %v82 = vld [vmem:[#allocation2] sm:$0xff]
    %v83 = vld [vmem:[#allocation2 + $0x8] sm:$0xff]
    %v84 = vld [vmem:[#allocation2 + $0x10] sm:$0xff]
    %v85 = vld [vmem:[#allocation2 + $0x18] sm:$0xff]
    %v86 = vld [vmem:[#allocation2 + $0x20] sm:$0xff]
    %v87 = vld [vmem:[#allocation2 + $0x28] sm:$0xff]
    %v88 = vld [vmem:[#allocation2 + $0x30] sm:$0xff]
    %v89 = vld [vmem:[#allocation2 + $0x38] sm:$0xff]
    %v90 = vld [vmem:[#allocation2 + $0x40] sm:$0xff]
    %v91 = vld [vmem:[#allocation2 + $0x48] sm:$0xff]
    %v92 = vld [vmem:[#allocation2 + $0x50] sm:$0xff]
    %v93 = vld [vmem:[#allocation2 + $0x58] sm:$0xff]
    %v94 = vld [vmem:[#allocation2 + $0x60] sm:$0xff]
    %v95 = vld [vmem:[#allocation2 + $0x68] sm:$0xff]
    %v96 = vld [vmem:[#allocation2 + $0x70] sm:$0xff]
    %v97 = vld [vmem:[#allocation2 + $0x78] sm:$0xff]
    %s98 = scalar_lea.vmem %s2, 128
    %v99 = vld [vmem:[%s98] sm:$0xff]
    %v100 = vld [vmem:[%s98 + $0x8] sm:$0xff]
    %v101 = vld [vmem:[%s98 + $0x10] sm:$0xff]
    %v102 = vld [vmem:[%s98 + $0x18] sm:$0xff]
    %v103 = vpack.c.bf16 %v100, %v99
    %v104 = vpack.c.bf16 %v102, %v101
    %v105 = vpack.c.bf16 %v86, %v82
    %v106 = vpack.c.bf16 %v87, %v83
    %v107 = vpack.c.bf16 %v88, %v84
    %v108 = vpack.c.bf16 %v89, %v85
    %v109 = vpack.c.bf16 %v94, %v90
    %v110 = vpack.c.bf16 %v95, %v91
    %v111 = vpack.c.bf16 %v96, %v92
    %v112 = vpack.c.bf16 %v97, %v93
    %113 = vrot.lane.b32.xlu0 %v82, 17
    %v114 = vpop.permute.xlu0 %113
    %115 = vrot.lane.b32.xlu0 %v86, 17
    %v116 = vpop.permute.xlu0 %115
    %117 = vrot.lane.b32.xlu0 %v90, 17
    %v118 = vpop.permute.xlu0 %117
    %119 = vrot.lane.b32.xlu0 %v94, 17
    %v120 = vpop.permute.xlu0 %119
    %121 = vrot.lane.b32.xlu0 %v83, 17
    %v122 = vpop.permute.xlu0 %121
    %123 = vrot.lane.b32.xlu0 %v87, 17
    %v124 = vpop.permute.xlu0 %123
    %125 = vrot.lane.b32.xlu0 %v91, 17
    %v126 = vpop.permute.xlu0 %125
    %127 = vrot.lane.b32.xlu0 %v95, 17
    %v128 = vpop.permute.xlu0 %127
    %129 = vrot.lane.b32.xlu0 %v84, 17
    %v130 = vpop.permute.xlu0 %129
    %131 = vrot.lane.b32.xlu0 %v88, 17
    %v132 = vpop.permute.xlu0 %131
    %133 = vrot.lane.b32.xlu0 %v92, 17
    %v134 = vpop.permute.xlu0 %133
    %135 = vrot.lane.b32.xlu0 %v96, 17
    %v136 = vpop.permute.xlu0 %135
    %137 = vrot.lane.b32.xlu0 %v85, 17
    %v138 = vpop.permute.xlu0 %137
    %139 = vrot.lane.b32.xlu0 %v89, 17
    %v140 = vpop.permute.xlu0 %139
    %141 = vrot.lane.b32.xlu0 %v93, 17
    %v142 = vpop.permute.xlu0 %141
    %143 = vrot.lane.b32.xlu0 %v97, 17
    %v144 = vpop.permute.xlu0 %143
    %v145 = vlaneseq
    %v146 = vand.u32 %v145, 127
    %vm147 = vcmp.lt.s32.totalorder %v146, 17
    %v148 = vsel %vm147, %v130, %v138
    %v149 = vsel %vm147, %v132, %v140
    %v150 = vsel %vm147, %v134, %v142
    %v151 = vsel %vm147, %v136, %v144
    %v152 = vsel %vm147, %v122, %v130
    %v153 = vsel %vm147, %v124, %v132
    %v154 = vsel %vm147, %v126, %v134
    %v155 = vsel %vm147, %v128, %v136
    %v156 = vsel %vm147, %v114, %v122
    %v157 = vsel %vm147, %v116, %v124
    %v158 = vsel %vm147, %v118, %v126
    %v159 = vsel %vm147, %v120, %v128
    %v160 = vsel %vm147, %v138, %v114
    %v161 = vsel %vm147, %v140, %v116
    %v162 = vsel %vm147, %v142, %v118
    %v163 = vsel %vm147, %v144, %v120
    %v164 = vld [vmem:[%s2] sm:$0xff]
    %v165 = vld [vmem:[%s2 + $0x8] sm:$0xff]
    %v166 = vld [vmem:[%s2 + $0x10] sm:$0xff]
    %v167 = vld [vmem:[%s2 + $0x18] sm:$0xff]
    %v168 = vpack.c.bf16 %v165, %v164
    %v169 = vpack.c.bf16 %v167, %v166
    %v170 = vpack.c.bf16 %v161, %v160
    %v171 = vpack.c.bf16 %v157, %v156
    %v172 = vpack.c.bf16 %v153, %v152
    %v173 = vpack.c.bf16 %v149, %v148
    %v174 = vpack.c.bf16 %v163, %v162
    %v175 = vpack.c.bf16 %v159, %v158
    %v176 = vpack.c.bf16 %v155, %v154
    %v177 = vpack.c.bf16 %v151, %v150
    %vm178 = vcmask 261120
    %v180 = vsel %vm178, %v168, 0
    %v183 = vsel %vm178, %v169, 0
    %185 = vmatprep.subr.bf16.mxu0 0
    %186 = vmatpush1.bf16.msra.mxu0 0
    %187 = vmatprep.subr.bf16.mxu0 0
    %188 = vmatpush1.bf16.msra.mxu0 0
    %189 = vmatprep.subr.bf16.mxu0 0
    %190 = vmatpush1.bf16.msra.mxu0 0
    %191 = vmatprep.subr.bf16.mxu0 0
    %192 = vmatpush1.bf16.msra.mxu0 0
    %193 = vmatprep.subr.bf16.mxu0 0
    %194 = vmatpush1.bf16.msra.mxu0 0
    %195 = vmatprep.subr.bf16.mxu0 0
    %196 = vmatpush1.bf16.msra.mxu0 0
    %197 = vmatprep.subr.bf16.mxu0 %v175
    %198 = vmatpush1.bf16.msra.mxu0 %v174
    %199 = vmatprep.subr.bf16.mxu0 %v171
    %200 = vmatpush1.bf16.msra.mxu0 %v170
    %201 = vmatprep.subr.bf16.mxu0 0
    %202 = vmatpush2.bf16.msra.mxu0 0
    %203 = vmatprep.subr.bf16.mxu0 0
    %204 = vmatpush2.bf16.msra.mxu0 0
    %205 = vmatprep.subr.bf16.mxu0 0
    %206 = vmatpush2.bf16.msra.mxu0 0
    %207 = vmatprep.subr.bf16.mxu0 0
    %208 = vmatpush2.bf16.msra.mxu0 0
    %209 = vmatprep.subr.bf16.mxu0 0
    %210 = vmatpush2.bf16.msra.mxu0 0
    %211 = vmatprep.subr.bf16.mxu0 0
    %212 = vmatpush2.bf16.msra.mxu0 0
    %213 = vmatprep.subr.bf16.mxu0 0
    %214 = vmatpush2.bf16.msra.mxu0 0
    %215 = vmatprep.subr.bf16.mxu0 0
    %216 = vmatpush2.bf16.msra.mxu0 0
    %217 = vmatprep.mubr.bf16.mxu0 0
    %218 = vmatmul.mubr.bf16.gmra.mxu0 %v180
    %v219 = vpop.f32.mrf.mxu0
    %v220 = vadd.f32 0.0, %v219
    %v221 = vpop.f32.mrf.mxu0
    %v222 = vadd.f32 0.0, %v221
    %v223 = vpop.f32.mrf.mxu0
    %v224 = vadd.f32 0.0, %v223
    %v225 = vpop.f32.mrf.mxu0
    %v226 = vadd.f32 0.0, %v225
    %227 = vmatprep.mubr.bf16.mxu0 0
    %228 = vmatmul.mubr.bf16.gmra.mxu0 %v183
    %v229 = vpop.f32.mrf.mxu0
    %v230 = vadd.f32 0.0, %v229
    %v231 = vpop.f32.mrf.mxu0
    %v232 = vadd.f32 0.0, %v231
    %v233 = vpop.f32.mrf.mxu0
    %v234 = vadd.f32 0.0, %v233
    %v235 = vpop.f32.mrf.mxu0
    %v236 = vadd.f32 0.0, %v235
    %237 = vdwg.mxu0
    %238 = vmatprep.subr.bf16.mxu0 0
    %239 = vmatpush1.bf16.msra.mxu0 0
    %240 = vmatprep.subr.bf16.mxu0 0
    %241 = vmatpush1.bf16.msra.mxu0 0
    %242 = vmatprep.subr.bf16.mxu0 0
    %243 = vmatpush1.bf16.msra.mxu0 0
    %244 = vmatprep.subr.bf16.mxu0 0
    %245 = vmatpush1.bf16.msra.mxu0 0
    %246 = vmatprep.subr.bf16.mxu0 0
    %247 = vmatpush1.bf16.msra.mxu0 0
    %248 = vmatprep.subr.bf16.mxu0 0
    %249 = vmatpush1.bf16.msra.mxu0 0
    %250 = vmatprep.subr.bf16.mxu0 %v177
    %251 = vmatpush1.bf16.msra.mxu0 %v176
    %252 = vmatprep.subr.bf16.mxu0 %v173
    %253 = vmatpush1.bf16.msra.mxu0 %v172
    %254 = vmatprep.subr.bf16.mxu0 0
    %255 = vmatpush2.bf16.msra.mxu0 0
    %256 = vmatprep.subr.bf16.mxu0 0
    %257 = vmatpush2.bf16.msra.mxu0 0
    %258 = vmatprep.subr.bf16.mxu0 0
    %259 = vmatpush2.bf16.msra.mxu0 0
    %260 = vmatprep.subr.bf16.mxu0 0
    %261 = vmatpush2.bf16.msra.mxu0 0
    %262 = vmatprep.subr.bf16.mxu0 0
    %263 = vmatpush2.bf16.msra.mxu0 0
    %264 = vmatprep.subr.bf16.mxu0 0
    %265 = vmatpush2.bf16.msra.mxu0 0
    %266 = vmatprep.subr.bf16.mxu0 0
    %267 = vmatpush2.bf16.msra.mxu0 0
    %268 = vmatprep.subr.bf16.mxu0 0
    %269 = vmatpush2.bf16.msra.mxu0 0
    %270 = vmatprep.mubr.bf16.mxu0 0
    %271 = vmatmul.mubr.bf16.gmra.mxu0 %v180
    %v272 = vpop.f32.mrf.mxu0
    %v273 = vadd.f32 0.0, %v272
    %v274 = vpop.f32.mrf.mxu0
    %v275 = vadd.f32 0.0, %v274
    %v276 = vpop.f32.mrf.mxu0
    %v277 = vadd.f32 0.0, %v276
    %v278 = vpop.f32.mrf.mxu0
    %v279 = vadd.f32 0.0, %v278
    %280 = vmatprep.mubr.bf16.mxu0 0
    %281 = vmatmul.mubr.bf16.gmra.mxu0 %v183
    %v282 = vpop.f32.mrf.mxu0
    %v283 = vadd.f32 0.0, %v282
    %v284 = vpop.f32.mrf.mxu0
    %v285 = vadd.f32 0.0, %v284
    %v286 = vpop.f32.mrf.mxu0
    %v287 = vadd.f32 0.0, %v286
    %v288 = vpop.f32.mrf.mxu0
    %v289 = vadd.f32 0.0, %v288
    %290 = vdwg.mxu0
    %v291 = vld [vmem:[%s1] sm:$0xf]
    %v293 = vlaneseq
    %v294 = vshrl.u32 %v293, 7
    %v295 = vsub.s32 0, %v294
    %v296 = vrot.slane %v291, %v295
    %v297 = vlaneseq
    %v298 = vshrl.u32 %v297, 7
    %v299 = vsub.s32 1, %v298
    %v300 = vrot.slane %v291, %v299
    %v301 = vlaneseq
    %v302 = vshrl.u32 %v301, 7
    %v303 = vsub.s32 2, %v302
    %v304 = vrot.slane %v291, %v303
    %v305 = vlaneseq
    %v306 = vshrl.u32 %v305, 7
    %v307 = vsub.s32 3, %v306
    %v308 = vrot.slane %v291, %v307
    %v313 = vmul.f32 %v220, %v296
    %v314 = vmul.f32 %v222, %v300
    %v315 = vmul.f32 %v273, %v304
    %v316 = vmul.f32 %v275, %v308
    %v317 = vmul.f32 %v224, %v296
    %v318 = vmul.f32 %v226, %v300
    %v319 = vmul.f32 %v277, %v304
    %v320 = vmul.f32 %v279, %v308
    %v321 = vmul.f32 %v230, %v296
    %v322 = vmul.f32 %v232, %v300
    %v323 = vmul.f32 %v283, %v304
    %v324 = vmul.f32 %v285, %v308
    %v325 = vmul.f32 %v234, %v296
    %v326 = vmul.f32 %v236, %v300
    %v327 = vmul.f32 %v287, %v304
    %v328 = vmul.f32 %v289, %v308
    %v330 = vsel %vm178, %v103, 0
    %v333 = vsel %vm178, %v104, 0
    %335 = vmatprep.subr.bf16.mxu0 0
    %336 = vmatpush1.bf16.msra.mxu0 0
    %337 = vmatprep.subr.bf16.mxu0 0
    %338 = vmatpush1.bf16.msra.mxu0 0
    %339 = vmatprep.subr.bf16.mxu0 0
    %340 = vmatpush1.bf16.msra.mxu0 0
    %341 = vmatprep.subr.bf16.mxu0 0
    %342 = vmatpush1.bf16.msra.mxu0 0
    %343 = vmatprep.subr.bf16.mxu0 0
    %344 = vmatpush1.bf16.msra.mxu0 0
    %345 = vmatprep.subr.bf16.mxu0 0
    %346 = vmatpush1.bf16.msra.mxu0 0
    %347 = vmatprep.subr.bf16.mxu0 %v110
    %348 = vmatpush1.bf16.msra.mxu0 %v109
    %349 = vmatprep.subr.bf16.mxu0 %v106
    %350 = vmatpush1.bf16.msra.mxu0 %v105
    %351 = vmatprep.subr.bf16.mxu0 0
    %352 = vmatpush2.bf16.msra.mxu0 0
    %353 = vmatprep.subr.bf16.mxu0 0
    %354 = vmatpush2.bf16.msra.mxu0 0
    %355 = vmatprep.subr.bf16.mxu0 0
    %356 = vmatpush2.bf16.msra.mxu0 0
    %357 = vmatprep.subr.bf16.mxu0 0
    %358 = vmatpush2.bf16.msra.mxu0 0
    %359 = vmatprep.subr.bf16.mxu0 0
    %360 = vmatpush2.bf16.msra.mxu0 0
    %361 = vmatprep.subr.bf16.mxu0 0
    %362 = vmatpush2.bf16.msra.mxu0 0
    %363 = vmatprep.subr.bf16.mxu0 0
    %364 = vmatpush2.bf16.msra.mxu0 0
    %365 = vmatprep.subr.bf16.mxu0 0
    %366 = vmatpush2.bf16.msra.mxu0 0
    %367 = vmatprep.mubr.bf16.mxu0 0
    %368 = vmatmul.mubr.bf16.gmra.mxu0 %v330
    %v369 = vpop.f32.mrf.mxu0
    %v370 = vadd.f32 %v313, %v369
    %v371 = vpop.f32.mrf.mxu0
    %v372 = vadd.f32 %v314, %v371
    %v373 = vpop.f32.mrf.mxu0
    %v374 = vadd.f32 %v317, %v373
    %v375 = vpop.f32.mrf.mxu0
    %v376 = vadd.f32 %v318, %v375
    %377 = vmatprep.mubr.bf16.mxu0 0
    %378 = vmatmul.mubr.bf16.gmra.mxu0 %v333
    %v379 = vpop.f32.mrf.mxu0
    %v380 = vadd.f32 %v321, %v379
    %v381 = vpop.f32.mrf.mxu0
    %v382 = vadd.f32 %v322, %v381
    %v383 = vpop.f32.mrf.mxu0
    %v384 = vadd.f32 %v325, %v383
    %v385 = vpop.f32.mrf.mxu0
    %v386 = vadd.f32 %v326, %v385
    %387 = vdwg.mxu0
    %388 = vmatprep.subr.bf16.mxu0 0
    %389 = vmatpush1.bf16.msra.mxu0 0
    %390 = vmatprep.subr.bf16.mxu0 0
    %391 = vmatpush1.bf16.msra.mxu0 0
    %392 = vmatprep.subr.bf16.mxu0 0
    %393 = vmatpush1.bf16.msra.mxu0 0
    %394 = vmatprep.subr.bf16.mxu0 0
    %395 = vmatpush1.bf16.msra.mxu0 0
    %396 = vmatprep.subr.bf16.mxu0 0
    %397 = vmatpush1.bf16.msra.mxu0 0
    %398 = vmatprep.subr.bf16.mxu0 0
    %399 = vmatpush1.bf16.msra.mxu0 0
    %400 = vmatprep.subr.bf16.mxu0 %v112
    %401 = vmatpush1.bf16.msra.mxu0 %v111
    %402 = vmatprep.subr.bf16.mxu0 %v108
    %403 = vmatpush1.bf16.msra.mxu0 %v107
    %404 = vmatprep.subr.bf16.mxu0 0
    %405 = vmatpush2.bf16.msra.mxu0 0
    %406 = vmatprep.subr.bf16.mxu0 0
    %407 = vmatpush2.bf16.msra.mxu0 0
    %408 = vmatprep.subr.bf16.mxu0 0
    %409 = vmatpush2.bf16.msra.mxu0 0
    %410 = vmatprep.subr.bf16.mxu0 0
    %411 = vmatpush2.bf16.msra.mxu0 0
    %412 = vmatprep.subr.bf16.mxu0 0
    %413 = vmatpush2.bf16.msra.mxu0 0
    %414 = vmatprep.subr.bf16.mxu0 0
    %415 = vmatpush2.bf16.msra.mxu0 0
    %416 = vmatprep.subr.bf16.mxu0 0
    %417 = vmatpush2.bf16.msra.mxu0 0
    %418 = vmatprep.subr.bf16.mxu0 0
    %419 = vmatpush2.bf16.msra.mxu0 0
    %420 = vmatprep.mubr.bf16.mxu0 0
    %421 = vmatmul.mubr.bf16.gmra.mxu0 %v330
    %v422 = vpop.f32.mrf.mxu0
    %v423 = vadd.f32 %v315, %v422
    %v424 = vpop.f32.mrf.mxu0
    %v425 = vadd.f32 %v316, %v424
    %v426 = vpop.f32.mrf.mxu0
    %v427 = vadd.f32 %v319, %v426
    %v428 = vpop.f32.mrf.mxu0
    %v429 = vadd.f32 %v320, %v428
    %430 = vmatprep.mubr.bf16.mxu0 0
    %431 = vmatmul.mubr.bf16.gmra.mxu0 %v333
    %v432 = vpop.f32.mrf.mxu0
    %v433 = vadd.f32 %v323, %v432
    %v434 = vpop.f32.mrf.mxu0
    %v435 = vadd.f32 %v324, %v434
    %v436 = vpop.f32.mrf.mxu0
    %v437 = vadd.f32 %v327, %v436
    %v438 = vpop.f32.mrf.mxu0
    %v439 = vadd.f32 %v328, %v438
    %440 = vdwg.mxu0
    %441 = vrot.lane.b32.xlu0 %v82, 16
    %v442 = vpop.permute.xlu0 %441
    %443 = vrot.lane.b32.xlu0 %v86, 16
    %v444 = vpop.permute.xlu0 %443
    %445 = vrot.lane.b32.xlu0 %v90, 16
    %v446 = vpop.permute.xlu0 %445
    %447 = vrot.lane.b32.xlu0 %v94, 16
    %v448 = vpop.permute.xlu0 %447
    %449 = vrot.lane.b32.xlu0 %v83, 16
    %v450 = vpop.permute.xlu0 %449
    %451 = vrot.lane.b32.xlu0 %v87, 16
    %v452 = vpop.permute.xlu0 %451
    %453 = vrot.lane.b32.xlu0 %v91, 16
    %v454 = vpop.permute.xlu0 %453
    %455 = vrot.lane.b32.xlu0 %v95, 16
    %v456 = vpop.permute.xlu0 %455
    %457 = vrot.lane.b32.xlu0 %v84, 16
    %v458 = vpop.permute.xlu0 %457
    %459 = vrot.lane.b32.xlu0 %v88, 16
    %v460 = vpop.permute.xlu0 %459
    %461 = vrot.lane.b32.xlu0 %v92, 16
    %v462 = vpop.permute.xlu0 %461
    %463 = vrot.lane.b32.xlu0 %v96, 16
    %v464 = vpop.permute.xlu0 %463
    %465 = vrot.lane.b32.xlu0 %v85, 16
    %v466 = vpop.permute.xlu0 %465
    %467 = vrot.lane.b32.xlu0 %v89, 16
    %v468 = vpop.permute.xlu0 %467
    %469 = vrot.lane.b32.xlu0 %v93, 16
    %v470 = vpop.permute.xlu0 %469
    %471 = vrot.lane.b32.xlu0 %v97, 16
    %v472 = vpop.permute.xlu0 %471
    %vm473 = vcmp.lt.s32.totalorder %v146, 16
    %v474 = vsel %vm473, %v458, %v466
    %v475 = vsel %vm473, %v460, %v468
    %v476 = vsel %vm473, %v462, %v470
    %v477 = vsel %vm473, %v464, %v472
    %v478 = vsel %vm473, %v450, %v458
    %v479 = vsel %vm473, %v452, %v460
    %v480 = vsel %vm473, %v454, %v462
    %v481 = vsel %vm473, %v456, %v464
    %v482 = vsel %vm473, %v442, %v450
    %v483 = vsel %vm473, %v444, %v452
    %v484 = vsel %vm473, %v446, %v454
    %v485 = vsel %vm473, %v448, %v456
    %v486 = vsel %vm473, %v466, %v442
    %v487 = vsel %vm473, %v468, %v444
    %v488 = vsel %vm473, %v470, %v446
    %v489 = vsel %vm473, %v472, %v448
    %s490 = scalar_lea.vmem %s2, 32
    %v491 = vld [vmem:[%s490] sm:$0xff]
    %v492 = vld [vmem:[%s490 + $0x8] sm:$0xff]
    %v493 = vld [vmem:[%s490 + $0x10] sm:$0xff]
    %v494 = vld [vmem:[%s490 + $0x18] sm:$0xff]
    %v495 = vpack.c.bf16 %v492, %v491
    %v496 = vpack.c.bf16 %v494, %v493
    %v497 = vpack.c.bf16 %v487, %v486
    %v498 = vpack.c.bf16 %v483, %v482
    %v499 = vpack.c.bf16 %v479, %v478
    %v500 = vpack.c.bf16 %v475, %v474
    %v501 = vpack.c.bf16 %v489, %v488
    %v502 = vpack.c.bf16 %v485, %v484
    %v503 = vpack.c.bf16 %v481, %v480
    %v504 = vpack.c.bf16 %v477, %v476
    %v506 = vsel %vm178, %v495, 0
    %v509 = vsel %vm178, %v496, 0
    %511 = vmatprep.subr.bf16.mxu0 0
    %512 = vmatpush1.bf16.msra.mxu0 0
    %513 = vmatprep.subr.bf16.mxu0 0
    %514 = vmatpush1.bf16.msra.mxu0 0
    %515 = vmatprep.subr.bf16.mxu0 0
    %516 = vmatpush1.bf16.msra.mxu0 0
    %517 = vmatprep.subr.bf16.mxu0 0
    %518 = vmatpush1.bf16.msra.mxu0 0
    %519 = vmatprep.subr.bf16.mxu0 0
    %520 = vmatpush1.bf16.msra.mxu0 0
    %521 = vmatprep.subr.bf16.mxu0 0
    %522 = vmatpush1.bf16.msra.mxu0 0
    %523 = vmatprep.subr.bf16.mxu0 %v502
    %524 = vmatpush1.bf16.msra.mxu0 %v501
    %525 = vmatprep.subr.bf16.mxu0 %v498
    %526 = vmatpush1.bf16.msra.mxu0 %v497
    %527 = vmatprep.subr.bf16.mxu0 0
    %528 = vmatpush2.bf16.msra.mxu0 0
    %529 = vmatprep.subr.bf16.mxu0 0
    %530 = vmatpush2.bf16.msra.mxu0 0
    %531 = vmatprep.subr.bf16.mxu0 0
    %532 = vmatpush2.bf16.msra.mxu0 0
    %533 = vmatprep.subr.bf16.mxu0 0
    %534 = vmatpush2.bf16.msra.mxu0 0
    %535 = vmatprep.subr.bf16.mxu0 0
    %536 = vmatpush2.bf16.msra.mxu0 0
    %537 = vmatprep.subr.bf16.mxu0 0
    %538 = vmatpush2.bf16.msra.mxu0 0
    %539 = vmatprep.subr.bf16.mxu0 0
    %540 = vmatpush2.bf16.msra.mxu0 0
    %541 = vmatprep.subr.bf16.mxu0 0
    %542 = vmatpush2.bf16.msra.mxu0 0
    %543 = vmatprep.mubr.bf16.mxu0 0
    %544 = vmatmul.mubr.bf16.gmra.mxu0 %v506
    %v545 = vpop.f32.mrf.mxu0
    %v546 = vadd.f32 0.0, %v545
    %v547 = vpop.f32.mrf.mxu0
    %v548 = vadd.f32 0.0, %v547
    %v549 = vpop.f32.mrf.mxu0
    %v550 = vadd.f32 0.0, %v549
    %v551 = vpop.f32.mrf.mxu0
    %v552 = vadd.f32 0.0, %v551
    %553 = vmatprep.mubr.bf16.mxu0 0
    %554 = vmatmul.mubr.bf16.gmra.mxu0 %v509
    %v555 = vpop.f32.mrf.mxu0
    %v556 = vadd.f32 0.0, %v555
    %v557 = vpop.f32.mrf.mxu0
    %v558 = vadd.f32 0.0, %v557
    %v559 = vpop.f32.mrf.mxu0
    %v560 = vadd.f32 0.0, %v559
    %v561 = vpop.f32.mrf.mxu0
    %v562 = vadd.f32 0.0, %v561
    %563 = vdwg.mxu0
    %564 = vmatprep.subr.bf16.mxu0 0
    %565 = vmatpush1.bf16.msra.mxu0 0
    %566 = vmatprep.subr.bf16.mxu0 0
    %567 = vmatpush1.bf16.msra.mxu0 0
    %568 = vmatprep.subr.bf16.mxu0 0
    %569 = vmatpush1.bf16.msra.mxu0 0
    %570 = vmatprep.subr.bf16.mxu0 0
    %571 = vmatpush1.bf16.msra.mxu0 0
    %572 = vmatprep.subr.bf16.mxu0 0
    %573 = vmatpush1.bf16.msra.mxu0 0
    %574 = vmatprep.subr.bf16.mxu0 0
    %575 = vmatpush1.bf16.msra.mxu0 0
    %576 = vmatprep.subr.bf16.mxu0 %v504
    %577 = vmatpush1.bf16.msra.mxu0 %v503
    %578 = vmatprep.subr.bf16.mxu0 %v500
    %579 = vmatpush1.bf16.msra.mxu0 %v499
    %580 = vmatprep.subr.bf16.mxu0 0
    %581 = vmatpush2.bf16.msra.mxu0 0
    %582 = vmatprep.subr.bf16.mxu0 0
    %583 = vmatpush2.bf16.msra.mxu0 0
    %584 = vmatprep.subr.bf16.mxu0 0
    %585 = vmatpush2.bf16.msra.mxu0 0
    %586 = vmatprep.subr.bf16.mxu0 0
    %587 = vmatpush2.bf16.msra.mxu0 0
    %588 = vmatprep.subr.bf16.mxu0 0
    %589 = vmatpush2.bf16.msra.mxu0 0
    %590 = vmatprep.subr.bf16.mxu0 0
    %591 = vmatpush2.bf16.msra.mxu0 0
    %592 = vmatprep.subr.bf16.mxu0 0
    %593 = vmatpush2.bf16.msra.mxu0 0
    %594 = vmatprep.subr.bf16.mxu0 0
    %595 = vmatpush2.bf16.msra.mxu0 0
    %596 = vmatprep.mubr.bf16.mxu0 0
    %597 = vmatmul.mubr.bf16.gmra.mxu0 %v506
    %v598 = vpop.f32.mrf.mxu0
    %v599 = vadd.f32 0.0, %v598
    %v600 = vpop.f32.mrf.mxu0
    %v601 = vadd.f32 0.0, %v600
    %v602 = vpop.f32.mrf.mxu0
    %v603 = vadd.f32 0.0, %v602
    %v604 = vpop.f32.mrf.mxu0
    %v605 = vadd.f32 0.0, %v604
    %606 = vmatprep.mubr.bf16.mxu0 0
    %607 = vmatmul.mubr.bf16.gmra.mxu0 %v509
    %v608 = vpop.f32.mrf.mxu0
    %v609 = vadd.f32 0.0, %v608
    %v610 = vpop.f32.mrf.mxu0
    %v611 = vadd.f32 0.0, %v610
    %v612 = vpop.f32.mrf.mxu0
    %v613 = vadd.f32 0.0, %v612
    %v614 = vpop.f32.mrf.mxu0
    %v615 = vadd.f32 0.0, %v614
    %616 = vdwg.mxu0
    %s617 = scalar_lea.vmem %s1, 4
    %v618 = vld [vmem:[%s617] sm:$0xf]
    %v620 = vlaneseq
    %v621 = vshrl.u32 %v620, 7
    %v622 = vsub.s32 0, %v621
    %v623 = vrot.slane %v618, %v622
    %v624 = vlaneseq
    %v625 = vshrl.u32 %v624, 7
    %v626 = vsub.s32 1, %v625
    %v627 = vrot.slane %v618, %v626
    %v628 = vlaneseq
    %v629 = vshrl.u32 %v628, 7
    %v630 = vsub.s32 2, %v629
    %v631 = vrot.slane %v618, %v630
    %v632 = vlaneseq
    %v633 = vshrl.u32 %v632, 7
    %v634 = vsub.s32 3, %v633
    %v635 = vrot.slane %v618, %v634
    %v640 = vmul.f32 %v546, %v623
    %v641 = vmul.f32 %v548, %v627
    %v642 = vmul.f32 %v599, %v631
    %v643 = vmul.f32 %v601, %v635
    %v644 = vmul.f32 %v550, %v623
    %v645 = vmul.f32 %v552, %v627
    %v646 = vmul.f32 %v603, %v631
    %v647 = vmul.f32 %v605, %v635
    %v648 = vmul.f32 %v556, %v623
    %v649 = vmul.f32 %v558, %v627
    %v650 = vmul.f32 %v609, %v631
    %v651 = vmul.f32 %v611, %v635
    %v652 = vmul.f32 %v560, %v623
    %v653 = vmul.f32 %v562, %v627
    %v654 = vmul.f32 %v613, %v631
    %v655 = vmul.f32 %v615, %v635
    %v656 = vadd.f32 %v370, %v640
    %v657 = vadd.f32 %v372, %v641
    %v658 = vadd.f32 %v423, %v642
    %v659 = vadd.f32 %v425, %v643
    %v660 = vadd.f32 %v374, %v644
    %v661 = vadd.f32 %v376, %v645
    %v662 = vadd.f32 %v427, %v646
    %v663 = vadd.f32 %v429, %v647
    %v664 = vadd.f32 %v380, %v648
    %v665 = vadd.f32 %v382, %v649
    %v666 = vadd.f32 %v433, %v650
    %v667 = vadd.f32 %v435, %v651
    %v668 = vadd.f32 %v384, %v652
    %v669 = vadd.f32 %v386, %v653
    %v670 = vadd.f32 %v437, %v654
    %v671 = vadd.f32 %v439, %v655
    %672 = vrot.lane.b32.xlu0 %v82, 15
    %v673 = vpop.permute.xlu0 %672
    %674 = vrot.lane.b32.xlu0 %v86, 15
    %v675 = vpop.permute.xlu0 %674
    %676 = vrot.lane.b32.xlu0 %v90, 15
    %v677 = vpop.permute.xlu0 %676
    %678 = vrot.lane.b32.xlu0 %v94, 15
    %v679 = vpop.permute.xlu0 %678
    %680 = vrot.lane.b32.xlu0 %v83, 15
    %v681 = vpop.permute.xlu0 %680
    %682 = vrot.lane.b32.xlu0 %v87, 15
    %v683 = vpop.permute.xlu0 %682
    %684 = vrot.lane.b32.xlu0 %v91, 15
    %v685 = vpop.permute.xlu0 %684
    %686 = vrot.lane.b32.xlu0 %v95, 15
    %v687 = vpop.permute.xlu0 %686
    %688 = vrot.lane.b32.xlu0 %v84, 15
    %v689 = vpop.permute.xlu0 %688
    %690 = vrot.lane.b32.xlu0 %v88, 15
    %v691 = vpop.permute.xlu0 %690
    %692 = vrot.lane.b32.xlu0 %v92, 15
    %v693 = vpop.permute.xlu0 %692
    %694 = vrot.lane.b32.xlu0 %v96, 15
    %v695 = vpop.permute.xlu0 %694
    %696 = vrot.lane.b32.xlu0 %v85, 15
    %v697 = vpop.permute.xlu0 %696
    %698 = vrot.lane.b32.xlu0 %v89, 15
    %v699 = vpop.permute.xlu0 %698
    %700 = vrot.lane.b32.xlu0 %v93, 15
    %v701 = vpop.permute.xlu0 %700
    %702 = vrot.lane.b32.xlu0 %v97, 15
    %v703 = vpop.permute.xlu0 %702
    %vm704 = vcmp.lt.s32.totalorder %v146, 15
    %v705 = vsel %vm704, %v689, %v697
    %v706 = vsel %vm704, %v691, %v699
    %v707 = vsel %vm704, %v693, %v701
    %v708 = vsel %vm704, %v695, %v703
    %v709 = vsel %vm704, %v681, %v689
    %v710 = vsel %vm704, %v683, %v691
    %v711 = vsel %vm704, %v685, %v693
    %v712 = vsel %vm704, %v687, %v695
    %v713 = vsel %vm704, %v673, %v681
    %v714 = vsel %vm704, %v675, %v683
    %v715 = vsel %vm704, %v677, %v685
    %v716 = vsel %vm704, %v679, %v687
    %v717 = vsel %vm704, %v697, %v673
    %v718 = vsel %vm704, %v699, %v675
    %v719 = vsel %vm704, %v701, %v677
    %v720 = vsel %vm704, %v703, %v679
    %s721 = scalar_lea.vmem %s2, 64
    %v722 = vld [vmem:[%s721] sm:$0xff]
    %v723 = vld [vmem:[%s721 + $0x8] sm:$0xff]
    %v724 = vld [vmem:[%s721 + $0x10] sm:$0xff]
    %v725 = vld [vmem:[%s721 + $0x18] sm:$0xff]
    %v726 = vpack.c.bf16 %v723, %v722
    %v727 = vpack.c.bf16 %v725, %v724
    %v728 = vpack.c.bf16 %v718, %v717
    %v729 = vpack.c.bf16 %v714, %v713
    %v730 = vpack.c.bf16 %v710, %v709
    %v731 = vpack.c.bf16 %v706, %v705
    %v732 = vpack.c.bf16 %v720, %v719
    %v733 = vpack.c.bf16 %v716, %v715
    %v734 = vpack.c.bf16 %v712, %v711
    %v735 = vpack.c.bf16 %v708, %v707
    %v737 = vsel %vm178, %v726, 0
    %v740 = vsel %vm178, %v727, 0
    %742 = vmatprep.subr.bf16.mxu0 0
    %743 = vmatpush1.bf16.msra.mxu0 0
    %744 = vmatprep.subr.bf16.mxu0 0
    %745 = vmatpush1.bf16.msra.mxu0 0
    %746 = vmatprep.subr.bf16.mxu0 0
    %747 = vmatpush1.bf16.msra.mxu0 0
    %748 = vmatprep.subr.bf16.mxu0 0
    %749 = vmatpush1.bf16.msra.mxu0 0
    %750 = vmatprep.subr.bf16.mxu0 0
    %751 = vmatpush1.bf16.msra.mxu0 0
    %752 = vmatprep.subr.bf16.mxu0 0
    %753 = vmatpush1.bf16.msra.mxu0 0
    %754 = vmatprep.subr.bf16.mxu0 %v733
    %755 = vmatpush1.bf16.msra.mxu0 %v732
    %756 = vmatprep.subr.bf16.mxu0 %v729
    %757 = vmatpush1.bf16.msra.mxu0 %v728
    %758 = vmatprep.subr.bf16.mxu0 0
    %759 = vmatpush2.bf16.msra.mxu0 0
    %760 = vmatprep.subr.bf16.mxu0 0
    %761 = vmatpush2.bf16.msra.mxu0 0
    %762 = vmatprep.subr.bf16.mxu0 0
    %763 = vmatpush2.bf16.msra.mxu0 0
    %764 = vmatprep.subr.bf16.mxu0 0
    %765 = vmatpush2.bf16.msra.mxu0 0
    %766 = vmatprep.subr.bf16.mxu0 0
    %767 = vmatpush2.bf16.msra.mxu0 0
    %768 = vmatprep.subr.bf16.mxu0 0
    %769 = vmatpush2.bf16.msra.mxu0 0
    %770 = vmatprep.subr.bf16.mxu0 0
    %771 = vmatpush2.bf16.msra.mxu0 0
    %772 = vmatprep.subr.bf16.mxu0 0
    %773 = vmatpush2.bf16.msra.mxu0 0
    %774 = vmatprep.mubr.bf16.mxu0 0
    %775 = vmatmul.mubr.bf16.gmra.mxu0 %v737
    %v776 = vpop.f32.mrf.mxu0
    %v777 = vadd.f32 0.0, %v776
    %v778 = vpop.f32.mrf.mxu0
    %v779 = vadd.f32 0.0, %v778
    %v780 = vpop.f32.mrf.mxu0
    %v781 = vadd.f32 0.0, %v780
    %v782 = vpop.f32.mrf.mxu0
    %v783 = vadd.f32 0.0, %v782
    %784 = vmatprep.mubr.bf16.mxu0 0
    %785 = vmatmul.mubr.bf16.gmra.mxu0 %v740
    %v786 = vpop.f32.mrf.mxu0
    %v787 = vadd.f32 0.0, %v786
    %v788 = vpop.f32.mrf.mxu0
    %v789 = vadd.f32 0.0, %v788
    %v790 = vpop.f32.mrf.mxu0
    %v791 = vadd.f32 0.0, %v790
    %v792 = vpop.f32.mrf.mxu0
    %v793 = vadd.f32 0.0, %v792
    %794 = vdwg.mxu0
    %795 = vmatprep.subr.bf16.mxu0 0
    %796 = vmatpush1.bf16.msra.mxu0 0
    %797 = vmatprep.subr.bf16.mxu0 0
    %798 = vmatpush1.bf16.msra.mxu0 0
    %799 = vmatprep.subr.bf16.mxu0 0
    %800 = vmatpush1.bf16.msra.mxu0 0
    %801 = vmatprep.subr.bf16.mxu0 0
    %802 = vmatpush1.bf16.msra.mxu0 0
    %803 = vmatprep.subr.bf16.mxu0 0
    %804 = vmatpush1.bf16.msra.mxu0 0
    %805 = vmatprep.subr.bf16.mxu0 0
    %806 = vmatpush1.bf16.msra.mxu0 0
    %807 = vmatprep.subr.bf16.mxu0 %v735
    %808 = vmatpush1.bf16.msra.mxu0 %v734
    %809 = vmatprep.subr.bf16.mxu0 %v731
    %810 = vmatpush1.bf16.msra.mxu0 %v730
    %811 = vmatprep.subr.bf16.mxu0 0
    %812 = vmatpush2.bf16.msra.mxu0 0
    %813 = vmatprep.subr.bf16.mxu0 0
    %814 = vmatpush2.bf16.msra.mxu0 0
    %815 = vmatprep.subr.bf16.mxu0 0
    %816 = vmatpush2.bf16.msra.mxu0 0
    %817 = vmatprep.subr.bf16.mxu0 0
    %818 = vmatpush2.bf16.msra.mxu0 0
    %819 = vmatprep.subr.bf16.mxu0 0
    %820 = vmatpush2.bf16.msra.mxu0 0
    %821 = vmatprep.subr.bf16.mxu0 0
    %822 = vmatpush2.bf16.msra.mxu0 0
    %823 = vmatprep.subr.bf16.mxu0 0
    %824 = vmatpush2.bf16.msra.mxu0 0
    %825 = vmatprep.subr.bf16.mxu0 0
    %826 = vmatpush2.bf16.msra.mxu0 0
    %827 = vmatprep.mubr.bf16.mxu0 0
    %828 = vmatmul.mubr.bf16.gmra.mxu0 %v737
    %v829 = vpop.f32.mrf.mxu0
    %v830 = vadd.f32 0.0, %v829
    %v831 = vpop.f32.mrf.mxu0
    %v832 = vadd.f32 0.0, %v831
    %v833 = vpop.f32.mrf.mxu0
    %v834 = vadd.f32 0.0, %v833
    %v835 = vpop.f32.mrf.mxu0
    %v836 = vadd.f32 0.0, %v835
    %837 = vmatprep.mubr.bf16.mxu0 0
    %838 = vmatmul.mubr.bf16.gmra.mxu0 %v740
    %v839 = vpop.f32.mrf.mxu0
    %v840 = vadd.f32 0.0, %v839
    %v841 = vpop.f32.mrf.mxu0
    %v842 = vadd.f32 0.0, %v841
    %v843 = vpop.f32.mrf.mxu0
    %v844 = vadd.f32 0.0, %v843
    %v845 = vpop.f32.mrf.mxu0
    %v846 = vadd.f32 0.0, %v845
    %847 = vdwg.mxu0
    %s848 = scalar_lea.vmem %s1, 8
    %v849 = vld [vmem:[%s848] sm:$0xf]
    %v851 = vlaneseq
    %v852 = vshrl.u32 %v851, 7
    %v853 = vsub.s32 0, %v852
    %v854 = vrot.slane %v849, %v853
    %v855 = vlaneseq
    %v856 = vshrl.u32 %v855, 7
    %v857 = vsub.s32 1, %v856
    %v858 = vrot.slane %v849, %v857
    %v859 = vlaneseq
    %v860 = vshrl.u32 %v859, 7
    %v861 = vsub.s32 2, %v860
    %v862 = vrot.slane %v849, %v861
    %v863 = vlaneseq
    %v864 = vshrl.u32 %v863, 7
    %v865 = vsub.s32 3, %v864
    %v866 = vrot.slane %v849, %v865
    %v871 = vmul.f32 %v777, %v854
    %v872 = vmul.f32 %v779, %v858
    %v873 = vmul.f32 %v830, %v862
    %v874 = vmul.f32 %v832, %v866
    %v875 = vmul.f32 %v781, %v854
    %v876 = vmul.f32 %v783, %v858
    %v877 = vmul.f32 %v834, %v862
    %v878 = vmul.f32 %v836, %v866
    %v879 = vmul.f32 %v787, %v854
    %v880 = vmul.f32 %v789, %v858
    %v881 = vmul.f32 %v840, %v862
    %v882 = vmul.f32 %v842, %v866
    %v883 = vmul.f32 %v791, %v854
    %v884 = vmul.f32 %v793, %v858
    %v885 = vmul.f32 %v844, %v862
    %v886 = vmul.f32 %v846, %v866
    %v887 = vadd.f32 %v656, %v871
    %v888 = vadd.f32 %v657, %v872
    %v889 = vadd.f32 %v658, %v873
    %v890 = vadd.f32 %v659, %v874
    %v891 = vadd.f32 %v660, %v875
    %v892 = vadd.f32 %v661, %v876
    %v893 = vadd.f32 %v662, %v877
    %v894 = vadd.f32 %v663, %v878
    %v895 = vadd.f32 %v664, %v879
    %v896 = vadd.f32 %v665, %v880
    %v897 = vadd.f32 %v666, %v881
    %v898 = vadd.f32 %v667, %v882
    %v899 = vadd.f32 %v668, %v883
    %v900 = vadd.f32 %v669, %v884
    %v901 = vadd.f32 %v670, %v885
    %v902 = vadd.f32 %v671, %v886
    %903 = vrot.lane.b32.xlu0 %v82, 1
    %v904 = vpop.permute.xlu0 %903
    %905 = vrot.lane.b32.xlu0 %v86, 1
    %v906 = vpop.permute.xlu0 %905
    %907 = vrot.lane.b32.xlu0 %v90, 1
    %v908 = vpop.permute.xlu0 %907
    %909 = vrot.lane.b32.xlu0 %v94, 1
    %v910 = vpop.permute.xlu0 %909
    %911 = vrot.lane.b32.xlu0 %v83, 1
    %v912 = vpop.permute.xlu0 %911
    %913 = vrot.lane.b32.xlu0 %v87, 1
    %v914 = vpop.permute.xlu0 %913
    %915 = vrot.lane.b32.xlu0 %v91, 1
    %v916 = vpop.permute.xlu0 %915
    %917 = vrot.lane.b32.xlu0 %v95, 1
    %v918 = vpop.permute.xlu0 %917
    %919 = vrot.lane.b32.xlu0 %v84, 1
    %v920 = vpop.permute.xlu0 %919
    %921 = vrot.lane.b32.xlu0 %v88, 1
    %v922 = vpop.permute.xlu0 %921
    %923 = vrot.lane.b32.xlu0 %v92, 1
    %v924 = vpop.permute.xlu0 %923
    %925 = vrot.lane.b32.xlu0 %v96, 1
    %v926 = vpop.permute.xlu0 %925
    %927 = vrot.lane.b32.xlu0 %v85, 1
    %v928 = vpop.permute.xlu0 %927
    %929 = vrot.lane.b32.xlu0 %v89, 1
    %v930 = vpop.permute.xlu0 %929
    %931 = vrot.lane.b32.xlu0 %v93, 1
    %v932 = vpop.permute.xlu0 %931
    %933 = vrot.lane.b32.xlu0 %v97, 1
    %v934 = vpop.permute.xlu0 %933
    %vm935 = vcmp.lt.s32.totalorder %v146, 1
    %v936 = vsel %vm935, %v920, %v928
    %v937 = vsel %vm935, %v922, %v930
    %v938 = vsel %vm935, %v924, %v932
    %v939 = vsel %vm935, %v926, %v934
    %v940 = vsel %vm935, %v912, %v920
    %v941 = vsel %vm935, %v914, %v922
    %v942 = vsel %vm935, %v916, %v924
    %v943 = vsel %vm935, %v918, %v926
    %v944 = vsel %vm935, %v904, %v912
    %v945 = vsel %vm935, %v906, %v914
    %v946 = vsel %vm935, %v908, %v916
    %v947 = vsel %vm935, %v910, %v918
    %v948 = vsel %vm935, %v928, %v904
    %v949 = vsel %vm935, %v930, %v906
    %v950 = vsel %vm935, %v932, %v908
    %v951 = vsel %vm935, %v934, %v910
    %s952 = scalar_lea.vmem %s2, 96
    %v953 = vld [vmem:[%s952] sm:$0xff]
    %v954 = vld [vmem:[%s952 + $0x8] sm:$0xff]
    %v955 = vld [vmem:[%s952 + $0x10] sm:$0xff]
    %v956 = vld [vmem:[%s952 + $0x18] sm:$0xff]
    %v957 = vpack.c.bf16 %v954, %v953
    %v958 = vpack.c.bf16 %v956, %v955
    %v959 = vpack.c.bf16 %v949, %v948
    %v960 = vpack.c.bf16 %v945, %v944
    %v961 = vpack.c.bf16 %v941, %v940
    %v962 = vpack.c.bf16 %v937, %v936
    %v963 = vpack.c.bf16 %v951, %v950
    %v964 = vpack.c.bf16 %v947, %v946
    %v965 = vpack.c.bf16 %v943, %v942
    %v966 = vpack.c.bf16 %v939, %v938
    %v968 = vsel %vm178, %v957, 0
    %v971 = vsel %vm178, %v958, 0
    %973 = vmatprep.subr.bf16.mxu0 0
    %974 = vmatpush1.bf16.msra.mxu0 0
    %975 = vmatprep.subr.bf16.mxu0 0
    %976 = vmatpush1.bf16.msra.mxu0 0
    %977 = vmatprep.subr.bf16.mxu0 0
    %978 = vmatpush1.bf16.msra.mxu0 0
    %979 = vmatprep.subr.bf16.mxu0 0
    %980 = vmatpush1.bf16.msra.mxu0 0
    %981 = vmatprep.subr.bf16.mxu0 0
    %982 = vmatpush1.bf16.msra.mxu0 0
    %983 = vmatprep.subr.bf16.mxu0 0
    %984 = vmatpush1.bf16.msra.mxu0 0
    %985 = vmatprep.subr.bf16.mxu0 %v964
    %986 = vmatpush1.bf16.msra.mxu0 %v963
    %987 = vmatprep.subr.bf16.mxu0 %v960
    %988 = vmatpush1.bf16.msra.mxu0 %v959
    %989 = vmatprep.subr.bf16.mxu0 0
    %990 = vmatpush2.bf16.msra.mxu0 0
    %991 = vmatprep.subr.bf16.mxu0 0
    %992 = vmatpush2.bf16.msra.mxu0 0
    %993 = vmatprep.subr.bf16.mxu0 0
    %994 = vmatpush2.bf16.msra.mxu0 0
    %995 = vmatprep.subr.bf16.mxu0 0
    %996 = vmatpush2.bf16.msra.mxu0 0
    %997 = vmatprep.subr.bf16.mxu0 0
    %998 = vmatpush2.bf16.msra.mxu0 0
    %999 = vmatprep.subr.bf16.mxu0 0
    %1000 = vmatpush2.bf16.msra.mxu0 0
    %1001 = vmatprep.subr.bf16.mxu0 0
    %1002 = vmatpush2.bf16.msra.mxu0 0
    %1003 = vmatprep.subr.bf16.mxu0 0
    %1004 = vmatpush2.bf16.msra.mxu0 0
    %1005 = vmatprep.mubr.bf16.mxu0 0
    %1006 = vmatmul.mubr.bf16.gmra.mxu0 %v968
    %v1007 = vpop.f32.mrf.mxu0
    %v1008 = vadd.f32 0.0, %v1007
    %v1009 = vpop.f32.mrf.mxu0
    %v1010 = vadd.f32 0.0, %v1009
    %v1011 = vpop.f32.mrf.mxu0
    %v1012 = vadd.f32 0.0, %v1011
    %v1013 = vpop.f32.mrf.mxu0
    %v1014 = vadd.f32 0.0, %v1013
    %1015 = vmatprep.mubr.bf16.mxu0 0
    %1016 = vmatmul.mubr.bf16.gmra.mxu0 %v971
    %v1017 = vpop.f32.mrf.mxu0
    %v1018 = vadd.f32 0.0, %v1017
    %v1019 = vpop.f32.mrf.mxu0
    %v1020 = vadd.f32 0.0, %v1019
    %v1021 = vpop.f32.mrf.mxu0
    %v1022 = vadd.f32 0.0, %v1021
    %v1023 = vpop.f32.mrf.mxu0
    %v1024 = vadd.f32 0.0, %v1023
    %1025 = vdwg.mxu0
    %1026 = vmatprep.subr.bf16.mxu0 0
    %1027 = vmatpush1.bf16.msra.mxu0 0
    %1028 = vmatprep.subr.bf16.mxu0 0
    %1029 = vmatpush1.bf16.msra.mxu0 0
    %1030 = vmatprep.subr.bf16.mxu0 0
    %1031 = vmatpush1.bf16.msra.mxu0 0
    %1032 = vmatprep.subr.bf16.mxu0 0
    %1033 = vmatpush1.bf16.msra.mxu0 0
    %1034 = vmatprep.subr.bf16.mxu0 0
    %1035 = vmatpush1.bf16.msra.mxu0 0
    %1036 = vmatprep.subr.bf16.mxu0 0
    %1037 = vmatpush1.bf16.msra.mxu0 0
    %1038 = vmatprep.subr.bf16.mxu0 %v966
    %1039 = vmatpush1.bf16.msra.mxu0 %v965
    %1040 = vmatprep.subr.bf16.mxu0 %v962
    %1041 = vmatpush1.bf16.msra.mxu0 %v961
    %1042 = vmatprep.subr.bf16.mxu0 0
    %1043 = vmatpush2.bf16.msra.mxu0 0
    %1044 = vmatprep.subr.bf16.mxu0 0
    %1045 = vmatpush2.bf16.msra.mxu0 0
    %1046 = vmatprep.subr.bf16.mxu0 0
    %1047 = vmatpush2.bf16.msra.mxu0 0
    %1048 = vmatprep.subr.bf16.mxu0 0
    %1049 = vmatpush2.bf16.msra.mxu0 0
    %1050 = vmatprep.subr.bf16.mxu0 0
    %1051 = vmatpush2.bf16.msra.mxu0 0
    %1052 = vmatprep.subr.bf16.mxu0 0
    %1053 = vmatpush2.bf16.msra.mxu0 0
    %1054 = vmatprep.subr.bf16.mxu0 0
    %1055 = vmatpush2.bf16.msra.mxu0 0
    %1056 = vmatprep.subr.bf16.mxu0 0
    %1057 = vmatpush2.bf16.msra.mxu0 0
    %1058 = vmatprep.mubr.bf16.mxu0 0
    %1059 = vmatmul.mubr.bf16.gmra.mxu0 %v968
    %v1060 = vpop.f32.mrf.mxu0
    %v1061 = vadd.f32 0.0, %v1060
    %v1062 = vpop.f32.mrf.mxu0
    %v1063 = vadd.f32 0.0, %v1062
    %v1064 = vpop.f32.mrf.mxu0
    %v1065 = vadd.f32 0.0, %v1064
    %v1066 = vpop.f32.mrf.mxu0
    %v1067 = vadd.f32 0.0, %v1066
    %1068 = vmatprep.mubr.bf16.mxu0 0
    %1069 = vmatmul.mubr.bf16.gmra.mxu0 %v971
    %v1070 = vpop.f32.mrf.mxu0
    %v1071 = vadd.f32 0.0, %v1070
    %v1072 = vpop.f32.mrf.mxu0
    %v1073 = vadd.f32 0.0, %v1072
    %v1074 = vpop.f32.mrf.mxu0
    %v1075 = vadd.f32 0.0, %v1074
    %v1076 = vpop.f32.mrf.mxu0
    %v1077 = vadd.f32 0.0, %v1076
    %1078 = vdwg.mxu0
    %s1079 = scalar_lea.vmem %s1, 12
    %v1080 = vld [vmem:[%s1079] sm:$0xf]
    %v1082 = vlaneseq
    %v1083 = vshrl.u32 %v1082, 7
    %v1084 = vsub.s32 0, %v1083
    %v1085 = vrot.slane %v1080, %v1084
    %v1086 = vlaneseq
    %v1087 = vshrl.u32 %v1086, 7
    %v1088 = vsub.s32 1, %v1087
    %v1089 = vrot.slane %v1080, %v1088
    %v1090 = vlaneseq
    %v1091 = vshrl.u32 %v1090, 7
    %v1092 = vsub.s32 2, %v1091
    %v1093 = vrot.slane %v1080, %v1092
    %v1094 = vlaneseq
    %v1095 = vshrl.u32 %v1094, 7
    %v1096 = vsub.s32 3, %v1095
    %v1097 = vrot.slane %v1080, %v1096
    %v1102 = vmul.f32 %v1008, %v1085
    %v1103 = vmul.f32 %v1010, %v1089
    %v1104 = vmul.f32 %v1061, %v1093
    %v1105 = vmul.f32 %v1063, %v1097
    %v1106 = vmul.f32 %v1012, %v1085
    %v1107 = vmul.f32 %v1014, %v1089
    %v1108 = vmul.f32 %v1065, %v1093
    %v1109 = vmul.f32 %v1067, %v1097
    %v1110 = vmul.f32 %v1018, %v1085
    %v1111 = vmul.f32 %v1020, %v1089
    %v1112 = vmul.f32 %v1071, %v1093
    %v1113 = vmul.f32 %v1073, %v1097
    %v1114 = vmul.f32 %v1022, %v1085
    %v1115 = vmul.f32 %v1024, %v1089
    %v1116 = vmul.f32 %v1075, %v1093
    %v1117 = vmul.f32 %v1077, %v1097
    %v1118 = vadd.f32 %v887, %v1102
    %v1119 = vadd.f32 %v888, %v1103
    %v1120 = vadd.f32 %v889, %v1104
    %v1121 = vadd.f32 %v890, %v1105
    %v1122 = vadd.f32 %v891, %v1106
    %v1123 = vadd.f32 %v892, %v1107
    %v1124 = vadd.f32 %v893, %v1108
    %v1125 = vadd.f32 %v894, %v1109
    %v1126 = vadd.f32 %v895, %v1110
    %v1127 = vadd.f32 %v896, %v1111
    %v1128 = vadd.f32 %v897, %v1112
    %v1129 = vadd.f32 %v898, %v1113
    %v1130 = vadd.f32 %v899, %v1114
    %v1131 = vadd.f32 %v900, %v1115
    %v1132 = vadd.f32 %v901, %v1116
    %v1133 = vadd.f32 %v902, %v1117
    %1134 = vrot.lane.b32.xlu0 %v82, 127
    %v1135 = vpop.permute.xlu0 %1134
    %1136 = vrot.lane.b32.xlu0 %v86, 127
    %v1137 = vpop.permute.xlu0 %1136
    %1138 = vrot.lane.b32.xlu0 %v90, 127
    %v1139 = vpop.permute.xlu0 %1138
    %1140 = vrot.lane.b32.xlu0 %v94, 127
    %v1141 = vpop.permute.xlu0 %1140
    %1142 = vrot.lane.b32.xlu0 %v83, 127
    %v1143 = vpop.permute.xlu0 %1142
    %1144 = vrot.lane.b32.xlu0 %v87, 127
    %v1145 = vpop.permute.xlu0 %1144
    %1146 = vrot.lane.b32.xlu0 %v91, 127
    %v1147 = vpop.permute.xlu0 %1146
    %1148 = vrot.lane.b32.xlu0 %v95, 127
    %v1149 = vpop.permute.xlu0 %1148
    %1150 = vrot.lane.b32.xlu0 %v84, 127
    %v1151 = vpop.permute.xlu0 %1150
    %1152 = vrot.lane.b32.xlu0 %v88, 127
    %v1153 = vpop.permute.xlu0 %1152
    %1154 = vrot.lane.b32.xlu0 %v92, 127
    %v1155 = vpop.permute.xlu0 %1154
    %1156 = vrot.lane.b32.xlu0 %v96, 127
    %v1157 = vpop.permute.xlu0 %1156
    %1158 = vrot.lane.b32.xlu0 %v85, 127
    %v1159 = vpop.permute.xlu0 %1158
    %1160 = vrot.lane.b32.xlu0 %v89, 127
    %v1161 = vpop.permute.xlu0 %1160
    %1162 = vrot.lane.b32.xlu0 %v93, 127
    %v1163 = vpop.permute.xlu0 %1162
    %1164 = vrot.lane.b32.xlu0 %v97, 127
    %v1165 = vpop.permute.xlu0 %1164
    %vm1166 = vcmp.lt.s32.totalorder %v146, 127
    %v1167 = vsel %vm1166, %v1151, %v1159
    %v1168 = vsel %vm1166, %v1153, %v1161
    %v1169 = vsel %vm1166, %v1155, %v1163
    %v1170 = vsel %vm1166, %v1157, %v1165
    %v1171 = vsel %vm1166, %v1143, %v1151
    %v1172 = vsel %vm1166, %v1145, %v1153
    %v1173 = vsel %vm1166, %v1147, %v1155
    %v1174 = vsel %vm1166, %v1149, %v1157
    %v1175 = vsel %vm1166, %v1135, %v1143
    %v1176 = vsel %vm1166, %v1137, %v1145
    %v1177 = vsel %vm1166, %v1139, %v1147
    %v1178 = vsel %vm1166, %v1141, %v1149
    %v1179 = vsel %vm1166, %v1159, %v1135
    %v1180 = vsel %vm1166, %v1161, %v1137
    %v1181 = vsel %vm1166, %v1163, %v1139
    %v1182 = vsel %vm1166, %v1165, %v1141
    %s1183 = scalar_lea.vmem %s2, 160
    %v1184 = vld [vmem:[%s1183] sm:$0xff]
    %v1185 = vld [vmem:[%s1183 + $0x8] sm:$0xff]
    %v1186 = vld [vmem:[%s1183 + $0x10] sm:$0xff]
    %v1187 = vld [vmem:[%s1183 + $0x18] sm:$0xff]
    %v1188 = vpack.c.bf16 %v1185, %v1184
    %v1189 = vpack.c.bf16 %v1187, %v1186
    %v1190 = vpack.c.bf16 %v1176, %v1175
    %v1191 = vpack.c.bf16 %v1172, %v1171
    %v1192 = vpack.c.bf16 %v1168, %v1167
    %v1193 = vpack.c.bf16 %v1180, %v1179
    %v1194 = vpack.c.bf16 %v1178, %v1177
    %v1195 = vpack.c.bf16 %v1174, %v1173
    %v1196 = vpack.c.bf16 %v1170, %v1169
    %v1197 = vpack.c.bf16 %v1182, %v1181
    %v1199 = vsel %vm178, %v1188, 0
    %v1202 = vsel %vm178, %v1189, 0
    %1204 = vmatprep.subr.bf16.mxu0 0
    %1205 = vmatpush1.bf16.msra.mxu0 0
    %1206 = vmatprep.subr.bf16.mxu0 0
    %1207 = vmatpush1.bf16.msra.mxu0 0
    %1208 = vmatprep.subr.bf16.mxu0 0
    %1209 = vmatpush1.bf16.msra.mxu0 0
    %1210 = vmatprep.subr.bf16.mxu0 0
    %1211 = vmatpush1.bf16.msra.mxu0 0
    %1212 = vmatprep.subr.bf16.mxu0 0
    %1213 = vmatpush1.bf16.msra.mxu0 0
    %1214 = vmatprep.subr.bf16.mxu0 0
    %1215 = vmatpush1.bf16.msra.mxu0 0
    %1216 = vmatprep.subr.bf16.mxu0 %v1195
    %1217 = vmatpush1.bf16.msra.mxu0 %v1194
    %1218 = vmatprep.subr.bf16.mxu0 %v1191
    %1219 = vmatpush1.bf16.msra.mxu0 %v1190
    %1220 = vmatprep.subr.bf16.mxu0 0
    %1221 = vmatpush2.bf16.msra.mxu0 0
    %1222 = vmatprep.subr.bf16.mxu0 0
    %1223 = vmatpush2.bf16.msra.mxu0 0
    %1224 = vmatprep.subr.bf16.mxu0 0
    %1225 = vmatpush2.bf16.msra.mxu0 0
    %1226 = vmatprep.subr.bf16.mxu0 0
    %1227 = vmatpush2.bf16.msra.mxu0 0
    %1228 = vmatprep.subr.bf16.mxu0 0
    %1229 = vmatpush2.bf16.msra.mxu0 0
    %1230 = vmatprep.subr.bf16.mxu0 0
    %1231 = vmatpush2.bf16.msra.mxu0 0
    %1232 = vmatprep.subr.bf16.mxu0 0
    %1233 = vmatpush2.bf16.msra.mxu0 0
    %1234 = vmatprep.subr.bf16.mxu0 0
    %1235 = vmatpush2.bf16.msra.mxu0 0
    %1236 = vmatprep.mubr.bf16.mxu0 0
    %1237 = vmatmul.mubr.bf16.gmra.mxu0 %v1199
    %v1238 = vpop.f32.mrf.mxu0
    %v1239 = vadd.f32 0.0, %v1238
    %v1240 = vpop.f32.mrf.mxu0
    %v1241 = vadd.f32 0.0, %v1240
    %v1242 = vpop.f32.mrf.mxu0
    %v1243 = vadd.f32 0.0, %v1242
    %v1244 = vpop.f32.mrf.mxu0
    %v1245 = vadd.f32 0.0, %v1244
    %1246 = vmatprep.mubr.bf16.mxu0 0
    %1247 = vmatmul.mubr.bf16.gmra.mxu0 %v1202
    %v1248 = vpop.f32.mrf.mxu0
    %v1249 = vadd.f32 0.0, %v1248
    %v1250 = vpop.f32.mrf.mxu0
    %v1251 = vadd.f32 0.0, %v1250
    %v1252 = vpop.f32.mrf.mxu0
    %v1253 = vadd.f32 0.0, %v1252
    %v1254 = vpop.f32.mrf.mxu0
    %v1255 = vadd.f32 0.0, %v1254
    %1256 = vdwg.mxu0
    %1257 = vmatprep.subr.bf16.mxu0 0
    %1258 = vmatpush1.bf16.msra.mxu0 0
    %1259 = vmatprep.subr.bf16.mxu0 0
    %1260 = vmatpush1.bf16.msra.mxu0 0
    %1261 = vmatprep.subr.bf16.mxu0 0
    %1262 = vmatpush1.bf16.msra.mxu0 0
    %1263 = vmatprep.subr.bf16.mxu0 0
    %1264 = vmatpush1.bf16.msra.mxu0 0
    %1265 = vmatprep.subr.bf16.mxu0 0
    %1266 = vmatpush1.bf16.msra.mxu0 0
    %1267 = vmatprep.subr.bf16.mxu0 0
    %1268 = vmatpush1.bf16.msra.mxu0 0
    %1269 = vmatprep.subr.bf16.mxu0 %v1197
    %1270 = vmatpush1.bf16.msra.mxu0 %v1196
    %1271 = vmatprep.subr.bf16.mxu0 %v1193
    %1272 = vmatpush1.bf16.msra.mxu0 %v1192
    %1273 = vmatprep.subr.bf16.mxu0 0
    %1274 = vmatpush2.bf16.msra.mxu0 0
    %1275 = vmatprep.subr.bf16.mxu0 0
    %1276 = vmatpush2.bf16.msra.mxu0 0
    %1277 = vmatprep.subr.bf16.mxu0 0
    %1278 = vmatpush2.bf16.msra.mxu0 0
    %1279 = vmatprep.subr.bf16.mxu0 0
    %1280 = vmatpush2.bf16.msra.mxu0 0
    %1281 = vmatprep.subr.bf16.mxu0 0
    %1282 = vmatpush2.bf16.msra.mxu0 0
    %1283 = vmatprep.subr.bf16.mxu0 0
    %1284 = vmatpush2.bf16.msra.mxu0 0
    %1285 = vmatprep.subr.bf16.mxu0 0
    %1286 = vmatpush2.bf16.msra.mxu0 0
    %1287 = vmatprep.subr.bf16.mxu0 0
    %1288 = vmatpush2.bf16.msra.mxu0 0
    %1289 = vmatprep.mubr.bf16.mxu0 0
    %1290 = vmatmul.mubr.bf16.gmra.mxu0 %v1199
    %v1291 = vpop.f32.mrf.mxu0
    %v1292 = vadd.f32 0.0, %v1291
    %v1293 = vpop.f32.mrf.mxu0
    %v1294 = vadd.f32 0.0, %v1293
    %v1295 = vpop.f32.mrf.mxu0
    %v1296 = vadd.f32 0.0, %v1295
    %v1297 = vpop.f32.mrf.mxu0
    %v1298 = vadd.f32 0.0, %v1297
    %1299 = vmatprep.mubr.bf16.mxu0 0
    %1300 = vmatmul.mubr.bf16.gmra.mxu0 %v1202
    %v1301 = vpop.f32.mrf.mxu0
    %v1302 = vadd.f32 0.0, %v1301
    %v1303 = vpop.f32.mrf.mxu0
    %v1304 = vadd.f32 0.0, %v1303
    %v1305 = vpop.f32.mrf.mxu0
    %v1306 = vadd.f32 0.0, %v1305
    %v1307 = vpop.f32.mrf.mxu0
    %v1308 = vadd.f32 0.0, %v1307
    %1309 = vdwg.mxu0
    %s1310 = scalar_lea.vmem %s1, 20
    %v1311 = vld [vmem:[%s1310] sm:$0xf]
    %v1313 = vlaneseq
    %v1314 = vshrl.u32 %v1313, 7
    %v1315 = vsub.s32 0, %v1314
    %v1316 = vrot.slane %v1311, %v1315
    %v1317 = vlaneseq
    %v1318 = vshrl.u32 %v1317, 7
    %v1319 = vsub.s32 1, %v1318
    %v1320 = vrot.slane %v1311, %v1319
    %v1321 = vlaneseq
    %v1322 = vshrl.u32 %v1321, 7
    %v1323 = vsub.s32 2, %v1322
    %v1324 = vrot.slane %v1311, %v1323
    %v1325 = vlaneseq
    %v1326 = vshrl.u32 %v1325, 7
    %v1327 = vsub.s32 3, %v1326
    %v1328 = vrot.slane %v1311, %v1327
    %v1333 = vmul.f32 %v1239, %v1316
    %v1334 = vmul.f32 %v1241, %v1320
    %v1335 = vmul.f32 %v1292, %v1324
    %v1336 = vmul.f32 %v1294, %v1328
    %v1337 = vmul.f32 %v1243, %v1316
    %v1338 = vmul.f32 %v1245, %v1320
    %v1339 = vmul.f32 %v1296, %v1324
    %v1340 = vmul.f32 %v1298, %v1328
    %v1341 = vmul.f32 %v1249, %v1316
    %v1342 = vmul.f32 %v1251, %v1320
    %v1343 = vmul.f32 %v1302, %v1324
    %v1344 = vmul.f32 %v1304, %v1328
    %v1345 = vmul.f32 %v1253, %v1316
    %v1346 = vmul.f32 %v1255, %v1320
    %v1347 = vmul.f32 %v1306, %v1324
    %v1348 = vmul.f32 %v1308, %v1328
    %v1349 = vadd.f32 %v1118, %v1333
    %v1350 = vadd.f32 %v1119, %v1334
    %v1351 = vadd.f32 %v1120, %v1335
    %v1352 = vadd.f32 %v1121, %v1336
    %v1353 = vadd.f32 %v1122, %v1337
    %v1354 = vadd.f32 %v1123, %v1338
    %v1355 = vadd.f32 %v1124, %v1339
    %v1356 = vadd.f32 %v1125, %v1340
    %v1357 = vadd.f32 %v1126, %v1341
    %v1358 = vadd.f32 %v1127, %v1342
    %v1359 = vadd.f32 %v1128, %v1343
    %v1360 = vadd.f32 %v1129, %v1344
    %v1361 = vadd.f32 %v1130, %v1345
    %v1362 = vadd.f32 %v1131, %v1346
    %v1363 = vadd.f32 %v1132, %v1347
    %v1364 = vadd.f32 %v1133, %v1348
    %1365 = vrot.lane.b32.xlu0 %v82, 113
    %v1366 = vpop.permute.xlu0 %1365
    %1367 = vrot.lane.b32.xlu0 %v86, 113
    %v1368 = vpop.permute.xlu0 %1367
    %1369 = vrot.lane.b32.xlu0 %v90, 113
    %v1370 = vpop.permute.xlu0 %1369
    %1371 = vrot.lane.b32.xlu0 %v94, 113
    %v1372 = vpop.permute.xlu0 %1371
    %1373 = vrot.lane.b32.xlu0 %v83, 113
    %v1374 = vpop.permute.xlu0 %1373
    %1375 = vrot.lane.b32.xlu0 %v87, 113
    %v1376 = vpop.permute.xlu0 %1375
    %1377 = vrot.lane.b32.xlu0 %v91, 113
    %v1378 = vpop.permute.xlu0 %1377
    %1379 = vrot.lane.b32.xlu0 %v95, 113
    %v1380 = vpop.permute.xlu0 %1379
    %1381 = vrot.lane.b32.xlu0 %v84, 113
    %v1382 = vpop.permute.xlu0 %1381
    %1383 = vrot.lane.b32.xlu0 %v88, 113
    %v1384 = vpop.permute.xlu0 %1383
    %1385 = vrot.lane.b32.xlu0 %v92, 113
    %v1386 = vpop.permute.xlu0 %1385
    %1387 = vrot.lane.b32.xlu0 %v96, 113
    %v1388 = vpop.permute.xlu0 %1387
    %1389 = vrot.lane.b32.xlu0 %v85, 113
    %v1390 = vpop.permute.xlu0 %1389
    %1391 = vrot.lane.b32.xlu0 %v89, 113
    %v1392 = vpop.permute.xlu0 %1391
    %1393 = vrot.lane.b32.xlu0 %v93, 113
    %v1394 = vpop.permute.xlu0 %1393
    %1395 = vrot.lane.b32.xlu0 %v97, 113
    %v1396 = vpop.permute.xlu0 %1395
    %vm1397 = vcmp.lt.s32.totalorder %v146, 113
    %v1398 = vsel %vm1397, %v1382, %v1390
    %v1399 = vsel %vm1397, %v1384, %v1392
    %v1400 = vsel %vm1397, %v1386, %v1394
    %v1401 = vsel %vm1397, %v1388, %v1396
    %v1402 = vsel %vm1397, %v1374, %v1382
    %v1403 = vsel %vm1397, %v1376, %v1384
    %v1404 = vsel %vm1397, %v1378, %v1386
    %v1405 = vsel %vm1397, %v1380, %v1388
    %v1406 = vsel %vm1397, %v1366, %v1374
    %v1407 = vsel %vm1397, %v1368, %v1376
    %v1408 = vsel %vm1397, %v1370, %v1378
    %v1409 = vsel %vm1397, %v1372, %v1380
    %v1410 = vsel %vm1397, %v1390, %v1366
    %v1411 = vsel %vm1397, %v1392, %v1368
    %v1412 = vsel %vm1397, %v1394, %v1370
    %v1413 = vsel %vm1397, %v1396, %v1372
    %s1414 = scalar_lea.vmem %s2, 192
    %v1415 = vld [vmem:[%s1414] sm:$0xff]
    %v1416 = vld [vmem:[%s1414 + $0x8] sm:$0xff]
    %v1417 = vld [vmem:[%s1414 + $0x10] sm:$0xff]
    %v1418 = vld [vmem:[%s1414 + $0x18] sm:$0xff]
    %v1419 = vpack.c.bf16 %v1416, %v1415
    %v1420 = vpack.c.bf16 %v1418, %v1417
    %v1421 = vpack.c.bf16 %v1407, %v1406
    %v1422 = vpack.c.bf16 %v1403, %v1402
    %v1423 = vpack.c.bf16 %v1399, %v1398
    %v1424 = vpack.c.bf16 %v1411, %v1410
    %v1425 = vpack.c.bf16 %v1409, %v1408
    %v1426 = vpack.c.bf16 %v1405, %v1404
    %v1427 = vpack.c.bf16 %v1401, %v1400
    %v1428 = vpack.c.bf16 %v1413, %v1412
    %v1430 = vsel %vm178, %v1419, 0
    %v1433 = vsel %vm178, %v1420, 0
    %1435 = vmatprep.subr.bf16.mxu0 0
    %1436 = vmatpush1.bf16.msra.mxu0 0
    %1437 = vmatprep.subr.bf16.mxu0 0
    %1438 = vmatpush1.bf16.msra.mxu0 0
    %1439 = vmatprep.subr.bf16.mxu0 0
    %1440 = vmatpush1.bf16.msra.mxu0 0
    %1441 = vmatprep.subr.bf16.mxu0 0
    %1442 = vmatpush1.bf16.msra.mxu0 0
    %1443 = vmatprep.subr.bf16.mxu0 0
    %1444 = vmatpush1.bf16.msra.mxu0 0
    %1445 = vmatprep.subr.bf16.mxu0 0
    %1446 = vmatpush1.bf16.msra.mxu0 0
    %1447 = vmatprep.subr.bf16.mxu0 %v1426
    %1448 = vmatpush1.bf16.msra.mxu0 %v1425
    %1449 = vmatprep.subr.bf16.mxu0 %v1422
    %1450 = vmatpush1.bf16.msra.mxu0 %v1421
    %1451 = vmatprep.subr.bf16.mxu0 0
    %1452 = vmatpush2.bf16.msra.mxu0 0
    %1453 = vmatprep.subr.bf16.mxu0 0
    %1454 = vmatpush2.bf16.msra.mxu0 0
    %1455 = vmatprep.subr.bf16.mxu0 0
    %1456 = vmatpush2.bf16.msra.mxu0 0
    %1457 = vmatprep.subr.bf16.mxu0 0
    %1458 = vmatpush2.bf16.msra.mxu0 0
    %1459 = vmatprep.subr.bf16.mxu0 0
    %1460 = vmatpush2.bf16.msra.mxu0 0
    %1461 = vmatprep.subr.bf16.mxu0 0
    %1462 = vmatpush2.bf16.msra.mxu0 0
    %1463 = vmatprep.subr.bf16.mxu0 0
    %1464 = vmatpush2.bf16.msra.mxu0 0
    %1465 = vmatprep.subr.bf16.mxu0 0
    %1466 = vmatpush2.bf16.msra.mxu0 0
    %1467 = vmatprep.mubr.bf16.mxu0 0
    %1468 = vmatmul.mubr.bf16.gmra.mxu0 %v1430
    %v1469 = vpop.f32.mrf.mxu0
    %v1470 = vadd.f32 0.0, %v1469
    %v1471 = vpop.f32.mrf.mxu0
    %v1472 = vadd.f32 0.0, %v1471
    %v1473 = vpop.f32.mrf.mxu0
    %v1474 = vadd.f32 0.0, %v1473
    %v1475 = vpop.f32.mrf.mxu0
    %v1476 = vadd.f32 0.0, %v1475
    %1477 = vmatprep.mubr.bf16.mxu0 0
    %1478 = vmatmul.mubr.bf16.gmra.mxu0 %v1433
    %v1479 = vpop.f32.mrf.mxu0
    %v1480 = vadd.f32 0.0, %v1479
    %v1481 = vpop.f32.mrf.mxu0
    %v1482 = vadd.f32 0.0, %v1481
    %v1483 = vpop.f32.mrf.mxu0
    %v1484 = vadd.f32 0.0, %v1483
    %v1485 = vpop.f32.mrf.mxu0
    %v1486 = vadd.f32 0.0, %v1485
    %1487 = vdwg.mxu0
    %1488 = vmatprep.subr.bf16.mxu0 0
    %1489 = vmatpush1.bf16.msra.mxu0 0
    %1490 = vmatprep.subr.bf16.mxu0 0
    %1491 = vmatpush1.bf16.msra.mxu0 0
    %1492 = vmatprep.subr.bf16.mxu0 0
    %1493 = vmatpush1.bf16.msra.mxu0 0
    %1494 = vmatprep.subr.bf16.mxu0 0
    %1495 = vmatpush1.bf16.msra.mxu0 0
    %1496 = vmatprep.subr.bf16.mxu0 0
    %1497 = vmatpush1.bf16.msra.mxu0 0
    %1498 = vmatprep.subr.bf16.mxu0 0
    %1499 = vmatpush1.bf16.msra.mxu0 0
    %1500 = vmatprep.subr.bf16.mxu0 %v1428
    %1501 = vmatpush1.bf16.msra.mxu0 %v1427
    %1502 = vmatprep.subr.bf16.mxu0 %v1424
    %1503 = vmatpush1.bf16.msra.mxu0 %v1423
    %1504 = vmatprep.subr.bf16.mxu0 0
    %1505 = vmatpush2.bf16.msra.mxu0 0
    %1506 = vmatprep.subr.bf16.mxu0 0
    %1507 = vmatpush2.bf16.msra.mxu0 0
    %1508 = vmatprep.subr.bf16.mxu0 0
    %1509 = vmatpush2.bf16.msra.mxu0 0
    %1510 = vmatprep.subr.bf16.mxu0 0
    %1511 = vmatpush2.bf16.msra.mxu0 0
    %1512 = vmatprep.subr.bf16.mxu0 0
    %1513 = vmatpush2.bf16.msra.mxu0 0
    %1514 = vmatprep.subr.bf16.mxu0 0
    %1515 = vmatpush2.bf16.msra.mxu0 0
    %1516 = vmatprep.subr.bf16.mxu0 0
    %1517 = vmatpush2.bf16.msra.mxu0 0
    %1518 = vmatprep.subr.bf16.mxu0 0
    %1519 = vmatpush2.bf16.msra.mxu0 0
    %1520 = vmatprep.mubr.bf16.mxu0 0
    %1521 = vmatmul.mubr.bf16.gmra.mxu0 %v1430
    %v1522 = vpop.f32.mrf.mxu0
    %v1523 = vadd.f32 0.0, %v1522
    %v1524 = vpop.f32.mrf.mxu0
    %v1525 = vadd.f32 0.0, %v1524
    %v1526 = vpop.f32.mrf.mxu0
    %v1527 = vadd.f32 0.0, %v1526
    %v1528 = vpop.f32.mrf.mxu0
    %v1529 = vadd.f32 0.0, %v1528
    %1530 = vmatprep.mubr.bf16.mxu0 0
    %1531 = vmatmul.mubr.bf16.gmra.mxu0 %v1433
    %v1532 = vpop.f32.mrf.mxu0
    %v1533 = vadd.f32 0.0, %v1532
    %v1534 = vpop.f32.mrf.mxu0
    %v1535 = vadd.f32 0.0, %v1534
    %v1536 = vpop.f32.mrf.mxu0
    %v1537 = vadd.f32 0.0, %v1536
    %v1538 = vpop.f32.mrf.mxu0
    %v1539 = vadd.f32 0.0, %v1538
    %1540 = vdwg.mxu0
    %s1541 = scalar_lea.vmem %s1, 24
    %v1542 = vld [vmem:[%s1541] sm:$0xf]
    %v1544 = vlaneseq
    %v1545 = vshrl.u32 %v1544, 7
    %v1546 = vsub.s32 0, %v1545
    %v1547 = vrot.slane %v1542, %v1546
    %v1548 = vlaneseq
    %v1549 = vshrl.u32 %v1548, 7
    %v1550 = vsub.s32 1, %v1549
    %v1551 = vrot.slane %v1542, %v1550
    %v1552 = vlaneseq
    %v1553 = vshrl.u32 %v1552, 7
    %v1554 = vsub.s32 2, %v1553
    %v1555 = vrot.slane %v1542, %v1554
    %v1556 = vlaneseq
    %v1557 = vshrl.u32 %v1556, 7
    %v1558 = vsub.s32 3, %v1557
    %v1559 = vrot.slane %v1542, %v1558
    %v1564 = vmul.f32 %v1470, %v1547
    %v1565 = vmul.f32 %v1472, %v1551
    %v1566 = vmul.f32 %v1523, %v1555
    %v1567 = vmul.f32 %v1525, %v1559
    %v1568 = vmul.f32 %v1474, %v1547
    %v1569 = vmul.f32 %v1476, %v1551
    %v1570 = vmul.f32 %v1527, %v1555
    %v1571 = vmul.f32 %v1529, %v1559
    %v1572 = vmul.f32 %v1480, %v1547
    %v1573 = vmul.f32 %v1482, %v1551
    %v1574 = vmul.f32 %v1533, %v1555
    %v1575 = vmul.f32 %v1535, %v1559
    %v1576 = vmul.f32 %v1484, %v1547
    %v1577 = vmul.f32 %v1486, %v1551
    %v1578 = vmul.f32 %v1537, %v1555
    %v1579 = vmul.f32 %v1539, %v1559
    %v1580 = vadd.f32 %v1349, %v1564
    %v1581 = vadd.f32 %v1350, %v1565
    %v1582 = vadd.f32 %v1351, %v1566
    %v1583 = vadd.f32 %v1352, %v1567
    %v1584 = vadd.f32 %v1353, %v1568
    %v1585 = vadd.f32 %v1354, %v1569
    %v1586 = vadd.f32 %v1355, %v1570
    %v1587 = vadd.f32 %v1356, %v1571
    %v1588 = vadd.f32 %v1357, %v1572
    %v1589 = vadd.f32 %v1358, %v1573
    %v1590 = vadd.f32 %v1359, %v1574
    %v1591 = vadd.f32 %v1360, %v1575
    %v1592 = vadd.f32 %v1361, %v1576
    %v1593 = vadd.f32 %v1362, %v1577
    %v1594 = vadd.f32 %v1363, %v1578
    %v1595 = vadd.f32 %v1364, %v1579
    %1596 = vrot.lane.b32.xlu0 %v82, 112
    %v1597 = vpop.permute.xlu0 %1596
    %1598 = vrot.lane.b32.xlu0 %v86, 112
    %v1599 = vpop.permute.xlu0 %1598
    %1600 = vrot.lane.b32.xlu0 %v90, 112
    %v1601 = vpop.permute.xlu0 %1600
    %1602 = vrot.lane.b32.xlu0 %v94, 112
    %v1603 = vpop.permute.xlu0 %1602
    %1604 = vrot.lane.b32.xlu0 %v83, 112
    %v1605 = vpop.permute.xlu0 %1604
    %1606 = vrot.lane.b32.xlu0 %v87, 112
    %v1607 = vpop.permute.xlu0 %1606
    %1608 = vrot.lane.b32.xlu0 %v91, 112
    %v1609 = vpop.permute.xlu0 %1608
    %1610 = vrot.lane.b32.xlu0 %v95, 112
    %v1611 = vpop.permute.xlu0 %1610
    %1612 = vrot.lane.b32.xlu0 %v84, 112
    %v1613 = vpop.permute.xlu0 %1612
    %1614 = vrot.lane.b32.xlu0 %v88, 112
    %v1615 = vpop.permute.xlu0 %1614
    %1616 = vrot.lane.b32.xlu0 %v92, 112
    %v1617 = vpop.permute.xlu0 %1616
    %1618 = vrot.lane.b32.xlu0 %v96, 112
    %v1619 = vpop.permute.xlu0 %1618
    %1620 = vrot.lane.b32.xlu0 %v85, 112
    %v1621 = vpop.permute.xlu0 %1620
    %1622 = vrot.lane.b32.xlu0 %v89, 112
    %v1623 = vpop.permute.xlu0 %1622
    %1624 = vrot.lane.b32.xlu0 %v93, 112
    %v1625 = vpop.permute.xlu0 %1624
    %1626 = vrot.lane.b32.xlu0 %v97, 112
    %v1627 = vpop.permute.xlu0 %1626
    %vm1628 = vcmp.lt.s32.totalorder %v146, 112
    %v1629 = vsel %vm1628, %v1613, %v1621
    %v1630 = vsel %vm1628, %v1615, %v1623
    %v1631 = vsel %vm1628, %v1617, %v1625
    %v1632 = vsel %vm1628, %v1619, %v1627
    %v1633 = vsel %vm1628, %v1605, %v1613
    %v1634 = vsel %vm1628, %v1607, %v1615
    %v1635 = vsel %vm1628, %v1609, %v1617
    %v1636 = vsel %vm1628, %v1611, %v1619
    %v1637 = vsel %vm1628, %v1597, %v1605
    %v1638 = vsel %vm1628, %v1599, %v1607
    %v1639 = vsel %vm1628, %v1601, %v1609
    %v1640 = vsel %vm1628, %v1603, %v1611
    %v1641 = vsel %vm1628, %v1621, %v1597
    %v1642 = vsel %vm1628, %v1623, %v1599
    %v1643 = vsel %vm1628, %v1625, %v1601
    %v1644 = vsel %vm1628, %v1627, %v1603
    %s1645 = scalar_lea.vmem %s2, 224
    %v1646 = vld [vmem:[%s1645] sm:$0xff]
    %v1647 = vld [vmem:[%s1645 + $0x8] sm:$0xff]
    %v1648 = vld [vmem:[%s1645 + $0x10] sm:$0xff]
    %v1649 = vld [vmem:[%s1645 + $0x18] sm:$0xff]
    %v1650 = vpack.c.bf16 %v1647, %v1646
    %v1651 = vpack.c.bf16 %v1649, %v1648
    %v1652 = vpack.c.bf16 %v1638, %v1637
    %v1653 = vpack.c.bf16 %v1634, %v1633
    %v1654 = vpack.c.bf16 %v1630, %v1629
    %v1655 = vpack.c.bf16 %v1642, %v1641
    %v1656 = vpack.c.bf16 %v1640, %v1639
    %v1657 = vpack.c.bf16 %v1636, %v1635
    %v1658 = vpack.c.bf16 %v1632, %v1631
    %v1659 = vpack.c.bf16 %v1644, %v1643
    %v1661 = vsel %vm178, %v1650, 0
    %v1664 = vsel %vm178, %v1651, 0
    %1666 = vmatprep.subr.bf16.mxu0 0
    %1667 = vmatpush1.bf16.msra.mxu0 0
    %1668 = vmatprep.subr.bf16.mxu0 0
    %1669 = vmatpush1.bf16.msra.mxu0 0
    %1670 = vmatprep.subr.bf16.mxu0 0
    %1671 = vmatpush1.bf16.msra.mxu0 0
    %1672 = vmatprep.subr.bf16.mxu0 0
    %1673 = vmatpush1.bf16.msra.mxu0 0
    %1674 = vmatprep.subr.bf16.mxu0 0
    %1675 = vmatpush1.bf16.msra.mxu0 0
    %1676 = vmatprep.subr.bf16.mxu0 0
    %1677 = vmatpush1.bf16.msra.mxu0 0
    %1678 = vmatprep.subr.bf16.mxu0 %v1657
    %1679 = vmatpush1.bf16.msra.mxu0 %v1656
    %1680 = vmatprep.subr.bf16.mxu0 %v1653
    %1681 = vmatpush1.bf16.msra.mxu0 %v1652
    %1682 = vmatprep.subr.bf16.mxu0 0
    %1683 = vmatpush2.bf16.msra.mxu0 0
    %1684 = vmatprep.subr.bf16.mxu0 0
    %1685 = vmatpush2.bf16.msra.mxu0 0
    %1686 = vmatprep.subr.bf16.mxu0 0
    %1687 = vmatpush2.bf16.msra.mxu0 0
    %1688 = vmatprep.subr.bf16.mxu0 0
    %1689 = vmatpush2.bf16.msra.mxu0 0
    %1690 = vmatprep.subr.bf16.mxu0 0
    %1691 = vmatpush2.bf16.msra.mxu0 0
    %1692 = vmatprep.subr.bf16.mxu0 0
    %1693 = vmatpush2.bf16.msra.mxu0 0
    %1694 = vmatprep.subr.bf16.mxu0 0
    %1695 = vmatpush2.bf16.msra.mxu0 0
    %1696 = vmatprep.subr.bf16.mxu0 0
    %1697 = vmatpush2.bf16.msra.mxu0 0
    %1698 = vmatprep.mubr.bf16.mxu0 0
    %1699 = vmatmul.mubr.bf16.gmra.mxu0 %v1661
    %v1700 = vpop.f32.mrf.mxu0
    %v1701 = vadd.f32 0.0, %v1700
    %v1702 = vpop.f32.mrf.mxu0
    %v1703 = vadd.f32 0.0, %v1702
    %v1704 = vpop.f32.mrf.mxu0
    %v1705 = vadd.f32 0.0, %v1704
    %v1706 = vpop.f32.mrf.mxu0
    %v1707 = vadd.f32 0.0, %v1706
    %1708 = vmatprep.mubr.bf16.mxu0 0
    %1709 = vmatmul.mubr.bf16.gmra.mxu0 %v1664
    %v1710 = vpop.f32.mrf.mxu0
    %v1711 = vadd.f32 0.0, %v1710
    %v1712 = vpop.f32.mrf.mxu0
    %v1713 = vadd.f32 0.0, %v1712
    %v1714 = vpop.f32.mrf.mxu0
    %v1715 = vadd.f32 0.0, %v1714
    %v1716 = vpop.f32.mrf.mxu0
    %v1717 = vadd.f32 0.0, %v1716
    %1718 = vdwg.mxu0
    %1719 = vmatprep.subr.bf16.mxu0 0
    %1720 = vmatpush1.bf16.msra.mxu0 0
    %1721 = vmatprep.subr.bf16.mxu0 0
    %1722 = vmatpush1.bf16.msra.mxu0 0
    %1723 = vmatprep.subr.bf16.mxu0 0
    %1724 = vmatpush1.bf16.msra.mxu0 0
    %1725 = vmatprep.subr.bf16.mxu0 0
    %1726 = vmatpush1.bf16.msra.mxu0 0
    %1727 = vmatprep.subr.bf16.mxu0 0
    %1728 = vmatpush1.bf16.msra.mxu0 0
    %1729 = vmatprep.subr.bf16.mxu0 0
    %1730 = vmatpush1.bf16.msra.mxu0 0
    %1731 = vmatprep.subr.bf16.mxu0 %v1659
    %1732 = vmatpush1.bf16.msra.mxu0 %v1658
    %1733 = vmatprep.subr.bf16.mxu0 %v1655
    %1734 = vmatpush1.bf16.msra.mxu0 %v1654
    %1735 = vmatprep.subr.bf16.mxu0 0
    %1736 = vmatpush2.bf16.msra.mxu0 0
    %1737 = vmatprep.subr.bf16.mxu0 0
    %1738 = vmatpush2.bf16.msra.mxu0 0
    %1739 = vmatprep.subr.bf16.mxu0 0
    %1740 = vmatpush2.bf16.msra.mxu0 0
    %1741 = vmatprep.subr.bf16.mxu0 0
    %1742 = vmatpush2.bf16.msra.mxu0 0
    %1743 = vmatprep.subr.bf16.mxu0 0
    %1744 = vmatpush2.bf16.msra.mxu0 0
    %1745 = vmatprep.subr.bf16.mxu0 0
    %1746 = vmatpush2.bf16.msra.mxu0 0
    %1747 = vmatprep.subr.bf16.mxu0 0
    %1748 = vmatpush2.bf16.msra.mxu0 0
    %1749 = vmatprep.subr.bf16.mxu0 0
    %1750 = vmatpush2.bf16.msra.mxu0 0
    %1751 = vmatprep.mubr.bf16.mxu0 0
    %1752 = vmatmul.mubr.bf16.gmra.mxu0 %v1661
    %v1753 = vpop.f32.mrf.mxu0
    %v1754 = vadd.f32 0.0, %v1753
    %v1755 = vpop.f32.mrf.mxu0
    %v1756 = vadd.f32 0.0, %v1755
    %v1757 = vpop.f32.mrf.mxu0
    %v1758 = vadd.f32 0.0, %v1757
    %v1759 = vpop.f32.mrf.mxu0
    %v1760 = vadd.f32 0.0, %v1759
    %1761 = vmatprep.mubr.bf16.mxu0 0
    %1762 = vmatmul.mubr.bf16.gmra.mxu0 %v1664
    %v1763 = vpop.f32.mrf.mxu0
    %v1764 = vadd.f32 0.0, %v1763
    %v1765 = vpop.f32.mrf.mxu0
    %v1766 = vadd.f32 0.0, %v1765
    %v1767 = vpop.f32.mrf.mxu0
    %v1768 = vadd.f32 0.0, %v1767
    %v1769 = vpop.f32.mrf.mxu0
    %v1770 = vadd.f32 0.0, %v1769
    %1771 = vdwg.mxu0
    %s1772 = scalar_lea.vmem %s1, 28
    %v1773 = vld [vmem:[%s1772] sm:$0xf]
    %v1775 = vlaneseq
    %v1776 = vshrl.u32 %v1775, 7
    %v1777 = vsub.s32 0, %v1776
    %v1778 = vrot.slane %v1773, %v1777
    %v1779 = vlaneseq
    %v1780 = vshrl.u32 %v1779, 7
    %v1781 = vsub.s32 1, %v1780
    %v1782 = vrot.slane %v1773, %v1781
    %v1783 = vlaneseq
    %v1784 = vshrl.u32 %v1783, 7
    %v1785 = vsub.s32 2, %v1784
    %v1786 = vrot.slane %v1773, %v1785
    %v1787 = vlaneseq
    %v1788 = vshrl.u32 %v1787, 7
    %v1789 = vsub.s32 3, %v1788
    %v1790 = vrot.slane %v1773, %v1789
    %v1795 = vmul.f32 %v1701, %v1778
    %v1796 = vmul.f32 %v1703, %v1782
    %v1797 = vmul.f32 %v1754, %v1786
    %v1798 = vmul.f32 %v1756, %v1790
    %v1799 = vmul.f32 %v1705, %v1778
    %v1800 = vmul.f32 %v1707, %v1782
    %v1801 = vmul.f32 %v1758, %v1786
    %v1802 = vmul.f32 %v1760, %v1790
    %v1803 = vmul.f32 %v1711, %v1778
    %v1804 = vmul.f32 %v1713, %v1782
    %v1805 = vmul.f32 %v1764, %v1786
    %v1806 = vmul.f32 %v1766, %v1790
    %v1807 = vmul.f32 %v1715, %v1778
    %v1808 = vmul.f32 %v1717, %v1782
    %v1809 = vmul.f32 %v1768, %v1786
    %v1810 = vmul.f32 %v1770, %v1790
    %v1811 = vadd.f32 %v1580, %v1795
    %v1812 = vadd.f32 %v1581, %v1796
    %v1813 = vadd.f32 %v1582, %v1797
    %v1814 = vadd.f32 %v1583, %v1798
    %v1815 = vadd.f32 %v1584, %v1799
    %v1816 = vadd.f32 %v1585, %v1800
    %v1817 = vadd.f32 %v1586, %v1801
    %v1818 = vadd.f32 %v1587, %v1802
    %v1819 = vadd.f32 %v1588, %v1803
    %v1820 = vadd.f32 %v1589, %v1804
    %v1821 = vadd.f32 %v1590, %v1805
    %v1822 = vadd.f32 %v1591, %v1806
    %v1823 = vadd.f32 %v1592, %v1807
    %v1824 = vadd.f32 %v1593, %v1808
    %v1825 = vadd.f32 %v1594, %v1809
    %v1826 = vadd.f32 %v1595, %v1810
    %1827 = vrot.lane.b32.xlu0 %v82, 111
    %v1828 = vpop.permute.xlu0 %1827
    %1829 = vrot.lane.b32.xlu0 %v86, 111
    %v1830 = vpop.permute.xlu0 %1829
    %1831 = vrot.lane.b32.xlu0 %v90, 111
    %v1832 = vpop.permute.xlu0 %1831
    %1833 = vrot.lane.b32.xlu0 %v94, 111
    %v1834 = vpop.permute.xlu0 %1833
    %1835 = vrot.lane.b32.xlu0 %v83, 111
    %v1836 = vpop.permute.xlu0 %1835
    %1837 = vrot.lane.b32.xlu0 %v87, 111
    %v1838 = vpop.permute.xlu0 %1837
    %1839 = vrot.lane.b32.xlu0 %v91, 111
    %v1840 = vpop.permute.xlu0 %1839
    %1841 = vrot.lane.b32.xlu0 %v95, 111
    %v1842 = vpop.permute.xlu0 %1841
    %1843 = vrot.lane.b32.xlu0 %v84, 111
    %v1844 = vpop.permute.xlu0 %1843
    %1845 = vrot.lane.b32.xlu0 %v88, 111
    %v1846 = vpop.permute.xlu0 %1845
    %1847 = vrot.lane.b32.xlu0 %v92, 111
    %v1848 = vpop.permute.xlu0 %1847
    %1849 = vrot.lane.b32.xlu0 %v96, 111
    %v1850 = vpop.permute.xlu0 %1849
    %1851 = vrot.lane.b32.xlu0 %v85, 111
    %v1852 = vpop.permute.xlu0 %1851
    %1853 = vrot.lane.b32.xlu0 %v89, 111
    %v1854 = vpop.permute.xlu0 %1853
    %1855 = vrot.lane.b32.xlu0 %v93, 111
    %v1856 = vpop.permute.xlu0 %1855
    %1857 = vrot.lane.b32.xlu0 %v97, 111
    %v1858 = vpop.permute.xlu0 %1857
    %vm1859 = vcmp.lt.s32.totalorder %v146, 111
    %v1860 = vsel %vm1859, %v1844, %v1852
    %v1861 = vsel %vm1859, %v1846, %v1854
    %v1862 = vsel %vm1859, %v1848, %v1856
    %v1863 = vsel %vm1859, %v1850, %v1858
    %v1864 = vsel %vm1859, %v1836, %v1844
    %v1865 = vsel %vm1859, %v1838, %v1846
    %v1866 = vsel %vm1859, %v1840, %v1848
    %v1867 = vsel %vm1859, %v1842, %v1850
    %v1868 = vsel %vm1859, %v1828, %v1836
    %v1869 = vsel %vm1859, %v1830, %v1838
    %v1870 = vsel %vm1859, %v1832, %v1840
    %v1871 = vsel %vm1859, %v1834, %v1842
    %v1872 = vsel %vm1859, %v1852, %v1828
    %v1873 = vsel %vm1859, %v1854, %v1830
    %v1874 = vsel %vm1859, %v1856, %v1832
    %v1875 = vsel %vm1859, %v1858, %v1834
    %s1876 = scalar_lea.vmem %s2, 256
    %v1877 = vld [vmem:[%s1876] sm:$0xff]
    %v1878 = vld [vmem:[%s1876 + $0x8] sm:$0xff]
    %v1879 = vld [vmem:[%s1876 + $0x10] sm:$0xff]
    %v1880 = vld [vmem:[%s1876 + $0x18] sm:$0xff]
    %v1881 = vpack.c.bf16 %v1878, %v1877
    %v1882 = vpack.c.bf16 %v1880, %v1879
    %v1883 = vpack.c.bf16 %v1869, %v1868
    %v1884 = vpack.c.bf16 %v1865, %v1864
    %v1885 = vpack.c.bf16 %v1861, %v1860
    %v1886 = vpack.c.bf16 %v1873, %v1872
    %v1887 = vpack.c.bf16 %v1871, %v1870
    %v1888 = vpack.c.bf16 %v1867, %v1866
    %v1889 = vpack.c.bf16 %v1863, %v1862
    %v1890 = vpack.c.bf16 %v1875, %v1874
    %v1892 = vsel %vm178, %v1881, 0
    %v1895 = vsel %vm178, %v1882, 0
    %1897 = vmatprep.subr.bf16.mxu0 0
    %1898 = vmatpush1.bf16.msra.mxu0 0
    %1899 = vmatprep.subr.bf16.mxu0 0
    %1900 = vmatpush1.bf16.msra.mxu0 0
    %1901 = vmatprep.subr.bf16.mxu0 0
    %1902 = vmatpush1.bf16.msra.mxu0 0
    %1903 = vmatprep.subr.bf16.mxu0 0
    %1904 = vmatpush1.bf16.msra.mxu0 0
    %1905 = vmatprep.subr.bf16.mxu0 0
    %1906 = vmatpush1.bf16.msra.mxu0 0
    %1907 = vmatprep.subr.bf16.mxu0 0
    %1908 = vmatpush1.bf16.msra.mxu0 0
    %1909 = vmatprep.subr.bf16.mxu0 %v1888
    %1910 = vmatpush1.bf16.msra.mxu0 %v1887
    %1911 = vmatprep.subr.bf16.mxu0 %v1884
    %1912 = vmatpush1.bf16.msra.mxu0 %v1883
    %1913 = vmatprep.subr.bf16.mxu0 0
    %1914 = vmatpush2.bf16.msra.mxu0 0
    %1915 = vmatprep.subr.bf16.mxu0 0
    %1916 = vmatpush2.bf16.msra.mxu0 0
    %1917 = vmatprep.subr.bf16.mxu0 0
    %1918 = vmatpush2.bf16.msra.mxu0 0
    %1919 = vmatprep.subr.bf16.mxu0 0
    %1920 = vmatpush2.bf16.msra.mxu0 0
    %1921 = vmatprep.subr.bf16.mxu0 0
    %1922 = vmatpush2.bf16.msra.mxu0 0
    %1923 = vmatprep.subr.bf16.mxu0 0
    %1924 = vmatpush2.bf16.msra.mxu0 0
    %1925 = vmatprep.subr.bf16.mxu0 0
    %1926 = vmatpush2.bf16.msra.mxu0 0
    %1927 = vmatprep.subr.bf16.mxu0 0
    %1928 = vmatpush2.bf16.msra.mxu0 0
    %1929 = vmatprep.mubr.bf16.mxu0 0
    %1930 = vmatmul.mubr.bf16.gmra.mxu0 %v1892
    %v1931 = vpop.f32.mrf.mxu0
    %v1932 = vadd.f32 0.0, %v1931
    %v1933 = vpop.f32.mrf.mxu0
    %v1934 = vadd.f32 0.0, %v1933
    %v1935 = vpop.f32.mrf.mxu0
    %v1936 = vadd.f32 0.0, %v1935
    %v1937 = vpop.f32.mrf.mxu0
    %v1938 = vadd.f32 0.0, %v1937
    %1939 = vmatprep.mubr.bf16.mxu0 0
    %1940 = vmatmul.mubr.bf16.gmra.mxu0 %v1895
    %v1941 = vpop.f32.mrf.mxu0
    %v1942 = vadd.f32 0.0, %v1941
    %v1943 = vpop.f32.mrf.mxu0
    %v1944 = vadd.f32 0.0, %v1943
    %v1945 = vpop.f32.mrf.mxu0
    %v1946 = vadd.f32 0.0, %v1945
    %v1947 = vpop.f32.mrf.mxu0
    %v1948 = vadd.f32 0.0, %v1947
    %1949 = vdwg.mxu0
    %1950 = vmatprep.subr.bf16.mxu0 0
    %1951 = vmatpush1.bf16.msra.mxu0 0
    %1952 = vmatprep.subr.bf16.mxu0 0
    %1953 = vmatpush1.bf16.msra.mxu0 0
    %1954 = vmatprep.subr.bf16.mxu0 0
    %1955 = vmatpush1.bf16.msra.mxu0 0
    %1956 = vmatprep.subr.bf16.mxu0 0
    %1957 = vmatpush1.bf16.msra.mxu0 0
    %1958 = vmatprep.subr.bf16.mxu0 0
    %1959 = vmatpush1.bf16.msra.mxu0 0
    %1960 = vmatprep.subr.bf16.mxu0 0
    %1961 = vmatpush1.bf16.msra.mxu0 0
    %1962 = vmatprep.subr.bf16.mxu0 %v1890
    %1963 = vmatpush1.bf16.msra.mxu0 %v1889
    %1964 = vmatprep.subr.bf16.mxu0 %v1886
    %1965 = vmatpush1.bf16.msra.mxu0 %v1885
    %1966 = vmatprep.subr.bf16.mxu0 0
    %1967 = vmatpush2.bf16.msra.mxu0 0
    %1968 = vmatprep.subr.bf16.mxu0 0
    %1969 = vmatpush2.bf16.msra.mxu0 0
    %1970 = vmatprep.subr.bf16.mxu0 0
    %1971 = vmatpush2.bf16.msra.mxu0 0
    %1972 = vmatprep.subr.bf16.mxu0 0
    %1973 = vmatpush2.bf16.msra.mxu0 0
    %1974 = vmatprep.subr.bf16.mxu0 0
    %1975 = vmatpush2.bf16.msra.mxu0 0
    %1976 = vmatprep.subr.bf16.mxu0 0
    %1977 = vmatpush2.bf16.msra.mxu0 0
    %1978 = vmatprep.subr.bf16.mxu0 0
    %1979 = vmatpush2.bf16.msra.mxu0 0
    %1980 = vmatprep.subr.bf16.mxu0 0
    %1981 = vmatpush2.bf16.msra.mxu0 0
    %1982 = vmatprep.mubr.bf16.mxu0 0
    %1983 = vmatmul.mubr.bf16.gmra.mxu0 %v1892
    %v1984 = vpop.f32.mrf.mxu0
    %v1985 = vadd.f32 0.0, %v1984
    %v1986 = vpop.f32.mrf.mxu0
    %v1987 = vadd.f32 0.0, %v1986
    %v1988 = vpop.f32.mrf.mxu0
    %v1989 = vadd.f32 0.0, %v1988
    %v1990 = vpop.f32.mrf.mxu0
    %v1991 = vadd.f32 0.0, %v1990
    %1992 = vmatprep.mubr.bf16.mxu0 0
    %1993 = vmatmul.mubr.bf16.gmra.mxu0 %v1895
    %v1994 = vpop.f32.mrf.mxu0
    %v1995 = vadd.f32 0.0, %v1994
    %v1996 = vpop.f32.mrf.mxu0
    %v1997 = vadd.f32 0.0, %v1996
    %v1998 = vpop.f32.mrf.mxu0
    %v1999 = vadd.f32 0.0, %v1998
    %v2000 = vpop.f32.mrf.mxu0
    %v2001 = vadd.f32 0.0, %v2000
    %2002 = vdwg.mxu0
    %s2003 = scalar_lea.vmem %s1, 32
    %v2004 = vld [vmem:[%s2003] sm:$0xf]
    %v2006 = vlaneseq
    %v2007 = vshrl.u32 %v2006, 7
    %v2008 = vsub.s32 0, %v2007
    %v2009 = vrot.slane %v2004, %v2008
    %v2010 = vlaneseq
    %v2011 = vshrl.u32 %v2010, 7
    %v2012 = vsub.s32 1, %v2011
    %v2013 = vrot.slane %v2004, %v2012
    %v2014 = vlaneseq
    %v2015 = vshrl.u32 %v2014, 7
    %v2016 = vsub.s32 2, %v2015
    %v2017 = vrot.slane %v2004, %v2016
    %v2018 = vlaneseq
    %v2019 = vshrl.u32 %v2018, 7
    %v2020 = vsub.s32 3, %v2019
    %v2021 = vrot.slane %v2004, %v2020
    %v2026 = vmul.f32 %v1932, %v2009
    %v2027 = vmul.f32 %v1934, %v2013
    %v2028 = vmul.f32 %v1985, %v2017
    %v2029 = vmul.f32 %v1987, %v2021
    %v2030 = vmul.f32 %v1936, %v2009
    %v2031 = vmul.f32 %v1938, %v2013
    %v2032 = vmul.f32 %v1989, %v2017
    %v2033 = vmul.f32 %v1991, %v2021
    %v2034 = vmul.f32 %v1942, %v2009
    %v2035 = vmul.f32 %v1944, %v2013
    %v2036 = vmul.f32 %v1995, %v2017
    %v2037 = vmul.f32 %v1997, %v2021
    %v2038 = vmul.f32 %v1946, %v2009
    %v2039 = vmul.f32 %v1948, %v2013
    %v2040 = vmul.f32 %v1999, %v2017
    %v2041 = vmul.f32 %v2001, %v2021
    %v2042 = vadd.f32 %v1811, %v2026
    %v2043 = vadd.f32 %v1812, %v2027
    %v2044 = vadd.f32 %v1813, %v2028
    %v2045 = vadd.f32 %v1814, %v2029
    %v2046 = vadd.f32 %v1815, %v2030
    %v2047 = vadd.f32 %v1816, %v2031
    %v2048 = vadd.f32 %v1817, %v2032
    %v2049 = vadd.f32 %v1818, %v2033
    %v2050 = vadd.f32 %v1819, %v2034
    %v2051 = vadd.f32 %v1820, %v2035
    %v2052 = vadd.f32 %v1821, %v2036
    %v2053 = vadd.f32 %v1822, %v2037
    %v2054 = vadd.f32 %v1823, %v2038
    %v2055 = vadd.f32 %v1824, %v2039
    %v2056 = vadd.f32 %v1825, %v2040
    %v2057 = vadd.f32 %v1826, %v2041
    %v2058 = vadd.f32 %v2042, %v2043
    %v2059 = vadd.f32 %v2058, %v2044
    %v2060 = vadd.f32 %v2059, %v2045
    %2061 = vadd.xlane.f32.xlu0 %v2060
    %v2062 = vpop.xlane.xlu0 %2061
    %v2063 = vadd.f32 %v2046, %v2047
    %v2064 = vadd.f32 %v2063, %v2048
    %v2065 = vadd.f32 %v2064, %v2049
    %2066 = vadd.xlane.f32.xlu0 %v2065
    %v2067 = vpop.xlane.xlu0 %2066
    %v2068 = vadd.f32 %v2050, %v2051
    %v2069 = vadd.f32 %v2068, %v2052
    %v2070 = vadd.f32 %v2069, %v2053
    %2071 = vadd.xlane.f32.xlu0 %v2070
    %v2072 = vpop.xlane.xlu0 %2071
    %v2073 = vadd.f32 %v2054, %v2055
    %v2074 = vadd.f32 %v2073, %v2056
    %v2075 = vadd.f32 %v2074, %v2057
    %2076 = vadd.xlane.f32.xlu0 %v2075
    %v2077 = vpop.xlane.xlu0 %2076
    %v2078 = vmul.f32 %v2062, 0.001953125
    %v2079 = vmul.f32 %v2067, 0.001953125
    %v2080 = vmul.f32 %v2072, 0.001953125
    %v2081 = vmul.f32 %v2077, 0.001953125
    %v2082 = vsub.f32 %v2042, %v2078
    %v2083 = vsub.f32 %v2043, %v2078
    %v2084 = vsub.f32 %v2044, %v2078
    %v2085 = vsub.f32 %v2045, %v2078
    %v2086 = vsub.f32 %v2046, %v2079
    %v2087 = vsub.f32 %v2047, %v2079
    %v2088 = vsub.f32 %v2048, %v2079
    %v2089 = vsub.f32 %v2049, %v2079
    %v2090 = vsub.f32 %v2050, %v2080
    %v2091 = vsub.f32 %v2051, %v2080
    %v2092 = vsub.f32 %v2052, %v2080
    %v2093 = vsub.f32 %v2053, %v2080
    %v2094 = vsub.f32 %v2054, %v2081
    %v2095 = vsub.f32 %v2055, %v2081
    %v2096 = vsub.f32 %v2056, %v2081
    %v2097 = vsub.f32 %v2057, %v2081
    %v2098 = vmul.f32 %v2082, %v2082
    %v2099 = vmul.f32 %v2083, %v2083
    %v2100 = vmul.f32 %v2084, %v2084
    %v2101 = vmul.f32 %v2085, %v2085
    %v2102 = vmul.f32 %v2086, %v2086
    %v2103 = vmul.f32 %v2087, %v2087
    %v2104 = vmul.f32 %v2088, %v2088
    %v2105 = vmul.f32 %v2089, %v2089
    %v2106 = vmul.f32 %v2090, %v2090
    %v2107 = vmul.f32 %v2091, %v2091
    %v2108 = vmul.f32 %v2092, %v2092
    %v2109 = vmul.f32 %v2093, %v2093
    %v2110 = vmul.f32 %v2094, %v2094
    %v2111 = vmul.f32 %v2095, %v2095
    %v2112 = vmul.f32 %v2096, %v2096
    %v2113 = vmul.f32 %v2097, %v2097
    %v2114 = vadd.f32 %v2098, %v2099
    %v2115 = vadd.f32 %v2114, %v2100
    %v2116 = vadd.f32 %v2115, %v2101
    %2117 = vadd.xlane.f32.xlu0 %v2116
    %v2118 = vpop.xlane.xlu0 %2117
    %v2119 = vadd.f32 %v2102, %v2103
    %v2120 = vadd.f32 %v2119, %v2104
    %v2121 = vadd.f32 %v2120, %v2105
    %2122 = vadd.xlane.f32.xlu0 %v2121
    %v2123 = vpop.xlane.xlu0 %2122
    %v2124 = vadd.f32 %v2106, %v2107
    %v2125 = vadd.f32 %v2124, %v2108
    %v2126 = vadd.f32 %v2125, %v2109
    %2127 = vadd.xlane.f32.xlu0 %v2126
    %v2128 = vpop.xlane.xlu0 %2127
    %v2129 = vadd.f32 %v2110, %v2111
    %v2130 = vadd.f32 %v2129, %v2112
    %v2131 = vadd.f32 %v2130, %v2113
    %2132 = vadd.xlane.f32.xlu0 %v2131
    %v2133 = vpop.xlane.xlu0 %2132
    %v2134 = vmul.f32 %v2118, 0.001953125
    %v2135 = vmul.f32 %v2123, 0.001953125
    %v2136 = vmul.f32 %v2128, 0.001953125
    %v2137 = vmul.f32 %v2133, 0.001953125
    %v2138 = vadd.f32 %v2134, 1e-05
    %v2139 = vadd.f32 %v2135, 1e-05
    %v2140 = vadd.f32 %v2136, 1e-05
    %v2141 = vadd.f32 %v2137, 1e-05
    %v2142 = vrsqrt.pop %v2138
    %v2143 = vrsqrt.pop %v2139
    %v2144 = vrsqrt.pop %v2140
    %v2145 = vrsqrt.pop %v2141
    %v2146 = vld [vmem:[%s3] sm:$0xff]
    %v2147 = vld [vmem:[%s3 + $0x8] sm:$0xff]
    %v2148 = vld [vmem:[%s3 + $0x10] sm:$0xff]
    %v2149 = vld [vmem:[%s3 + $0x18] sm:$0xff]
    %v2150 = vmul.f32 %v2142, %v2146
    %v2151 = vmul.f32 %v2143, %v2147
    %v2152 = vmul.f32 %v2144, %v2148
    %v2153 = vmul.f32 %v2145, %v2149
    %2155 = vset.pattern.permute.xlu0 0
    %2156 = vperm.xlu0 %2155, %v2150
    %v2157 = vpop.permute.xlu0 %2156
    %2160 = vset.pattern.permute.xlu0 0
    %2161 = vperm.xlu0 %2160, %v2151
    %v2162 = vpop.permute.xlu0 %2161
    %2165 = vset.pattern.permute.xlu0 0
    %2166 = vperm.xlu0 %2165, %v2152
    %v2167 = vpop.permute.xlu0 %2166
    %2170 = vset.pattern.permute.xlu0 0
    %2171 = vperm.xlu0 %2170, %v2153
    %v2172 = vpop.permute.xlu0 %2171
    %v2174 = vmul.f32 %v2082, %v2157
    %v2175 = vmul.f32 %v2083, %v2157
    %v2176 = vmul.f32 %v2084, %v2157
    %v2177 = vmul.f32 %v2085, %v2157
    %v2178 = vmul.f32 %v2086, %v2162
    %v2179 = vmul.f32 %v2087, %v2162
    %v2180 = vmul.f32 %v2088, %v2162
    %v2181 = vmul.f32 %v2089, %v2162
    %v2182 = vmul.f32 %v2090, %v2167
    %v2183 = vmul.f32 %v2091, %v2167
    %v2184 = vmul.f32 %v2092, %v2167
    %v2185 = vmul.f32 %v2093, %v2167
    %v2186 = vmul.f32 %v2094, %v2172
    %v2187 = vmul.f32 %v2095, %v2172
    %v2188 = vmul.f32 %v2096, %v2172
    %v2189 = vmul.f32 %v2097, %v2172
    %v2190 = vld [vmem:[%s4] sm:$0xff]
    %v2191 = vld [vmem:[%s4 + $0x8] sm:$0xff]
    %v2192 = vld [vmem:[%s4 + $0x10] sm:$0xff]
    %v2193 = vld [vmem:[%s4 + $0x18] sm:$0xff]
    %2195 = vset.pattern.permute.xlu0 0
    %2196 = vperm.xlu0 %2195, %v2190
    %v2197 = vpop.permute.xlu0 %2196
    %2200 = vset.pattern.permute.xlu0 0
    %2201 = vperm.xlu0 %2200, %v2191
    %v2202 = vpop.permute.xlu0 %2201
    %2205 = vset.pattern.permute.xlu0 0
    %2206 = vperm.xlu0 %2205, %v2192
    %v2207 = vpop.permute.xlu0 %2206
    %2210 = vset.pattern.permute.xlu0 0
    %2211 = vperm.xlu0 %2210, %v2193
    %v2212 = vpop.permute.xlu0 %2211
    %v2214 = vadd.f32 %v2174, %v2197
    %v2215 = vadd.f32 %v2175, %v2197
    %v2216 = vadd.f32 %v2176, %v2197
    %v2217 = vadd.f32 %v2177, %v2197
    %v2218 = vadd.f32 %v2178, %v2202
    %v2219 = vadd.f32 %v2179, %v2202
    %v2220 = vadd.f32 %v2180, %v2202
    %v2221 = vadd.f32 %v2181, %v2202
    %v2222 = vadd.f32 %v2182, %v2207
    %v2223 = vadd.f32 %v2183, %v2207
    %v2224 = vadd.f32 %v2184, %v2207
    %v2225 = vadd.f32 %v2185, %v2207
    %v2226 = vadd.f32 %v2186, %v2212
    %v2227 = vadd.f32 %v2187, %v2212
    %v2228 = vadd.f32 %v2188, %v2212
    %v2229 = vadd.f32 %v2189, %v2212
    %v2230 = vmax.f32 %v2214, 0.0
    %v2231 = vmax.f32 %v2215, 0.0
    %v2232 = vmax.f32 %v2216, 0.0
    %v2233 = vmax.f32 %v2217, 0.0
    %v2234 = vmax.f32 %v2218, 0.0
    %v2235 = vmax.f32 %v2219, 0.0
    %v2236 = vmax.f32 %v2220, 0.0
    %v2237 = vmax.f32 %v2221, 0.0
    %v2238 = vmax.f32 %v2222, 0.0
    %v2239 = vmax.f32 %v2223, 0.0
    %v2240 = vmax.f32 %v2224, 0.0
    %v2241 = vmax.f32 %v2225, 0.0
    %v2242 = vmax.f32 %v2226, 0.0
    %v2243 = vmax.f32 %v2227, 0.0
    %v2244 = vmax.f32 %v2228, 0.0
    %v2245 = vmax.f32 %v2229, 0.0
    %2246 = vst [vmem:[#allocation2] sm:$0xff] %v2230
    %2247 = vst [vmem:[#allocation2 + $0x8] sm:$0xff] %v2231
    %2248 = vst [vmem:[#allocation2 + $0x10] sm:$0xff] %v2232
    %2249 = vst [vmem:[#allocation2 + $0x18] sm:$0xff] %v2233
    %2250 = vst [vmem:[#allocation2 + $0x20] sm:$0xff] %v2234
    %2251 = vst [vmem:[#allocation2 + $0x28] sm:$0xff] %v2235
    %2252 = vst [vmem:[#allocation2 + $0x30] sm:$0xff] %v2236
    %2253 = vst [vmem:[#allocation2 + $0x38] sm:$0xff] %v2237
    %2254 = vst [vmem:[#allocation2 + $0x40] sm:$0xff] %v2238
    %2255 = vst [vmem:[#allocation2 + $0x48] sm:$0xff] %v2239
    %2256 = vst [vmem:[#allocation2 + $0x50] sm:$0xff] %v2240
    %2257 = vst [vmem:[#allocation2 + $0x58] sm:$0xff] %v2241
    %2258 = vst [vmem:[#allocation2 + $0x60] sm:$0xff] %v2242
    %2259 = vst [vmem:[#allocation2 + $0x68] sm:$0xff] %v2243
    %2260 = vst [vmem:[#allocation2 + $0x70] sm:$0xff] %v2244
    %2261 = vst [vmem:[#allocation2 + $0x78] sm:$0xff] %v2245
    %v2262 = vld [vmem:[#allocation2] sm:$0xff]
    %v2263 = vld [vmem:[#allocation2 + $0x8] sm:$0xff]
    %v2264 = vld [vmem:[#allocation2 + $0x10] sm:$0xff]
    %v2265 = vld [vmem:[#allocation2 + $0x18] sm:$0xff]
    %v2266 = vld [vmem:[#allocation2 + $0x20] sm:$0xff]
    %v2267 = vld [vmem:[#allocation2 + $0x28] sm:$0xff]
    %v2268 = vld [vmem:[#allocation2 + $0x30] sm:$0xff]
    %v2269 = vld [vmem:[#allocation2 + $0x38] sm:$0xff]
    %v2270 = vld [vmem:[#allocation2 + $0x40] sm:$0xff]
    %v2271 = vld [vmem:[#allocation2 + $0x48] sm:$0xff]
    %v2272 = vld [vmem:[#allocation2 + $0x50] sm:$0xff]
    %v2273 = vld [vmem:[#allocation2 + $0x58] sm:$0xff]
    %v2274 = vld [vmem:[#allocation2 + $0x60] sm:$0xff]
    %v2275 = vld [vmem:[#allocation2 + $0x68] sm:$0xff]
    %v2276 = vld [vmem:[#allocation2 + $0x70] sm:$0xff]
    %v2277 = vld [vmem:[#allocation2 + $0x78] sm:$0xff]
    %s2278 = scalar_lea.vmem %s2, 416
    %v2279 = vld [vmem:[%s2278] sm:$0xff]
    %v2280 = vld [vmem:[%s2278 + $0x8] sm:$0xff]
    %v2281 = vld [vmem:[%s2278 + $0x10] sm:$0xff]
    %v2282 = vld [vmem:[%s2278 + $0x18] sm:$0xff]
    %v2283 = vpack.c.bf16 %v2280, %v2279
    %v2284 = vpack.c.bf16 %v2282, %v2281
    %v2285 = vpack.c.bf16 %v2266, %v2262
    %v2286 = vpack.c.bf16 %v2267, %v2263
    %v2287 = vpack.c.bf16 %v2268, %v2264
    %v2288 = vpack.c.bf16 %v2269, %v2265
    %v2289 = vpack.c.bf16 %v2274, %v2270
    %v2290 = vpack.c.bf16 %v2275, %v2271
    %v2291 = vpack.c.bf16 %v2276, %v2272
    %v2292 = vpack.c.bf16 %v2277, %v2273
    %2293 = vrot.lane.b32.xlu0 %v2262, 17
    %v2294 = vpop.permute.xlu0 %2293
    %2295 = vrot.lane.b32.xlu0 %v2266, 17
    %v2296 = vpop.permute.xlu0 %2295
    %2297 = vrot.lane.b32.xlu0 %v2270, 17
    %v2298 = vpop.permute.xlu0 %2297
    %2299 = vrot.lane.b32.xlu0 %v2274, 17
    %v2300 = vpop.permute.xlu0 %2299
    %2301 = vrot.lane.b32.xlu0 %v2263, 17
    %v2302 = vpop.permute.xlu0 %2301
    %2303 = vrot.lane.b32.xlu0 %v2267, 17
    %v2304 = vpop.permute.xlu0 %2303
    %2305 = vrot.lane.b32.xlu0 %v2271, 17
    %v2306 = vpop.permute.xlu0 %2305
    %2307 = vrot.lane.b32.xlu0 %v2275, 17
    %v2308 = vpop.permute.xlu0 %2307
    %2309 = vrot.lane.b32.xlu0 %v2264, 17
    %v2310 = vpop.permute.xlu0 %2309
    %2311 = vrot.lane.b32.xlu0 %v2268, 17
    %v2312 = vpop.permute.xlu0 %2311
    %2313 = vrot.lane.b32.xlu0 %v2272, 17
    %v2314 = vpop.permute.xlu0 %2313
    %2315 = vrot.lane.b32.xlu0 %v2276, 17
    %v2316 = vpop.permute.xlu0 %2315
    %2317 = vrot.lane.b32.xlu0 %v2265, 17
    %v2318 = vpop.permute.xlu0 %2317
    %2319 = vrot.lane.b32.xlu0 %v2269, 17
    %v2320 = vpop.permute.xlu0 %2319
    %2321 = vrot.lane.b32.xlu0 %v2273, 17
    %v2322 = vpop.permute.xlu0 %2321
    %2323 = vrot.lane.b32.xlu0 %v2277, 17
    %v2324 = vpop.permute.xlu0 %2323
    %v2325 = vsel %vm147, %v2310, %v2318
    %v2326 = vsel %vm147, %v2312, %v2320
    %v2327 = vsel %vm147, %v2314, %v2322
    %v2328 = vsel %vm147, %v2316, %v2324
    %v2329 = vsel %vm147, %v2302, %v2310
    %v2330 = vsel %vm147, %v2304, %v2312
    %v2331 = vsel %vm147, %v2306, %v2314
    %v2332 = vsel %vm147, %v2308, %v2316
    %v2333 = vsel %vm147, %v2294, %v2302
    %v2334 = vsel %vm147, %v2296, %v2304
    %v2335 = vsel %vm147, %v2298, %v2306
    %v2336 = vsel %vm147, %v2300, %v2308
    %v2337 = vsel %vm147, %v2318, %v2294
    %v2338 = vsel %vm147, %v2320, %v2296
    %v2339 = vsel %vm147, %v2322, %v2298
    %v2340 = vsel %vm147, %v2324, %v2300
    %s2341 = scalar_lea.vmem %s2, 288
    %v2342 = vld [vmem:[%s2341] sm:$0xff]
    %v2343 = vld [vmem:[%s2341 + $0x8] sm:$0xff]
    %v2344 = vld [vmem:[%s2341 + $0x10] sm:$0xff]
    %v2345 = vld [vmem:[%s2341 + $0x18] sm:$0xff]
    %v2346 = vpack.c.bf16 %v2343, %v2342
    %v2347 = vpack.c.bf16 %v2345, %v2344
    %v2348 = vpack.c.bf16 %v2338, %v2337
    %v2349 = vpack.c.bf16 %v2334, %v2333
    %v2350 = vpack.c.bf16 %v2330, %v2329
    %v2351 = vpack.c.bf16 %v2326, %v2325
    %v2352 = vpack.c.bf16 %v2340, %v2339
    %v2353 = vpack.c.bf16 %v2336, %v2335
    %v2354 = vpack.c.bf16 %v2332, %v2331
    %v2355 = vpack.c.bf16 %v2328, %v2327
    %v2357 = vsel %vm178, %v2346, 0
    %v2360 = vsel %vm178, %v2347, 0
    %2362 = vmatprep.subr.bf16.mxu0 0
    %2363 = vmatpush1.bf16.msra.mxu0 0
    %2364 = vmatprep.subr.bf16.mxu0 0
    %2365 = vmatpush1.bf16.msra.mxu0 0
    %2366 = vmatprep.subr.bf16.mxu0 0
    %2367 = vmatpush1.bf16.msra.mxu0 0
    %2368 = vmatprep.subr.bf16.mxu0 0
    %2369 = vmatpush1.bf16.msra.mxu0 0
    %2370 = vmatprep.subr.bf16.mxu0 0
    %2371 = vmatpush1.bf16.msra.mxu0 0
    %2372 = vmatprep.subr.bf16.mxu0 0
    %2373 = vmatpush1.bf16.msra.mxu0 0
    %2374 = vmatprep.subr.bf16.mxu0 %v2353
    %2375 = vmatpush1.bf16.msra.mxu0 %v2352
    %2376 = vmatprep.subr.bf16.mxu0 %v2349
    %2377 = vmatpush1.bf16.msra.mxu0 %v2348
    %2378 = vmatprep.subr.bf16.mxu0 0
    %2379 = vmatpush2.bf16.msra.mxu0 0
    %2380 = vmatprep.subr.bf16.mxu0 0
    %2381 = vmatpush2.bf16.msra.mxu0 0
    %2382 = vmatprep.subr.bf16.mxu0 0
    %2383 = vmatpush2.bf16.msra.mxu0 0
    %2384 = vmatprep.subr.bf16.mxu0 0
    %2385 = vmatpush2.bf16.msra.mxu0 0
    %2386 = vmatprep.subr.bf16.mxu0 0
    %2387 = vmatpush2.bf16.msra.mxu0 0
    %2388 = vmatprep.subr.bf16.mxu0 0
    %2389 = vmatpush2.bf16.msra.mxu0 0
    %2390 = vmatprep.subr.bf16.mxu0 0
    %2391 = vmatpush2.bf16.msra.mxu0 0
    %2392 = vmatprep.subr.bf16.mxu0 0
    %2393 = vmatpush2.bf16.msra.mxu0 0
    %2394 = vmatprep.mubr.bf16.mxu0 0
    %2395 = vmatmul.mubr.bf16.gmra.mxu0 %v2357
    %v2396 = vpop.f32.mrf.mxu0
    %v2397 = vadd.f32 0.0, %v2396
    %v2398 = vpop.f32.mrf.mxu0
    %v2399 = vadd.f32 0.0, %v2398
    %v2400 = vpop.f32.mrf.mxu0
    %v2401 = vadd.f32 0.0, %v2400
    %v2402 = vpop.f32.mrf.mxu0
    %v2403 = vadd.f32 0.0, %v2402
    %2404 = vmatprep.mubr.bf16.mxu0 0
    %2405 = vmatmul.mubr.bf16.gmra.mxu0 %v2360
    %v2406 = vpop.f32.mrf.mxu0
    %v2407 = vadd.f32 0.0, %v2406
    %v2408 = vpop.f32.mrf.mxu0
    %v2409 = vadd.f32 0.0, %v2408
    %v2410 = vpop.f32.mrf.mxu0
    %v2411 = vadd.f32 0.0, %v2410
    %v2412 = vpop.f32.mrf.mxu0
    %v2413 = vadd.f32 0.0, %v2412
    %2414 = vdwg.mxu0
    %2415 = vmatprep.subr.bf16.mxu0 0
    %2416 = vmatpush1.bf16.msra.mxu0 0
    %2417 = vmatprep.subr.bf16.mxu0 0
    %2418 = vmatpush1.bf16.msra.mxu0 0
    %2419 = vmatprep.subr.bf16.mxu0 0
    %2420 = vmatpush1.bf16.msra.mxu0 0
    %2421 = vmatprep.subr.bf16.mxu0 0
    %2422 = vmatpush1.bf16.msra.mxu0 0
    %2423 = vmatprep.subr.bf16.mxu0 0
    %2424 = vmatpush1.bf16.msra.mxu0 0
    %2425 = vmatprep.subr.bf16.mxu0 0
    %2426 = vmatpush1.bf16.msra.mxu0 0
    %2427 = vmatprep.subr.bf16.mxu0 %v2355
    %2428 = vmatpush1.bf16.msra.mxu0 %v2354
    %2429 = vmatprep.subr.bf16.mxu0 %v2351
    %2430 = vmatpush1.bf16.msra.mxu0 %v2350
    %2431 = vmatprep.subr.bf16.mxu0 0
    %2432 = vmatpush2.bf16.msra.mxu0 0
    %2433 = vmatprep.subr.bf16.mxu0 0
    %2434 = vmatpush2.bf16.msra.mxu0 0
    %2435 = vmatprep.subr.bf16.mxu0 0
    %2436 = vmatpush2.bf16.msra.mxu0 0
    %2437 = vmatprep.subr.bf16.mxu0 0
    %2438 = vmatpush2.bf16.msra.mxu0 0
    %2439 = vmatprep.subr.bf16.mxu0 0
    %2440 = vmatpush2.bf16.msra.mxu0 0
    %2441 = vmatprep.subr.bf16.mxu0 0
    %2442 = vmatpush2.bf16.msra.mxu0 0
    %2443 = vmatprep.subr.bf16.mxu0 0
    %2444 = vmatpush2.bf16.msra.mxu0 0
    %2445 = vmatprep.subr.bf16.mxu0 0
    %2446 = vmatpush2.bf16.msra.mxu0 0
    %2447 = vmatprep.mubr.bf16.mxu0 0
    %2448 = vmatmul.mubr.bf16.gmra.mxu0 %v2357
    %v2449 = vpop.f32.mrf.mxu0
    %v2450 = vadd.f32 0.0, %v2449
    %v2451 = vpop.f32.mrf.mxu0
    %v2452 = vadd.f32 0.0, %v2451
    %v2453 = vpop.f32.mrf.mxu0
    %v2454 = vadd.f32 0.0, %v2453
    %v2455 = vpop.f32.mrf.mxu0
    %v2456 = vadd.f32 0.0, %v2455
    %2457 = vmatprep.mubr.bf16.mxu0 0
    %2458 = vmatmul.mubr.bf16.gmra.mxu0 %v2360
    %v2459 = vpop.f32.mrf.mxu0
    %v2460 = vadd.f32 0.0, %v2459
    %v2461 = vpop.f32.mrf.mxu0
    %v2462 = vadd.f32 0.0, %v2461
    %v2463 = vpop.f32.mrf.mxu0
    %v2464 = vadd.f32 0.0, %v2463
    %v2465 = vpop.f32.mrf.mxu0
    %v2466 = vadd.f32 0.0, %v2465
    %2467 = vdwg.mxu0
    %v2468 = vld [vmem:[%s1] sm:$0xf]
    %v2470 = vlaneseq
    %v2471 = vshrl.u32 %v2470, 7
    %v2472 = vsub.s32 0, %v2471
    %v2473 = vrot.slane %v2468, %v2472
    %v2474 = vlaneseq
    %v2475 = vshrl.u32 %v2474, 7
    %v2476 = vsub.s32 1, %v2475
    %v2477 = vrot.slane %v2468, %v2476
    %v2478 = vlaneseq
    %v2479 = vshrl.u32 %v2478, 7
    %v2480 = vsub.s32 2, %v2479
    %v2481 = vrot.slane %v2468, %v2480
    %v2482 = vlaneseq
    %v2483 = vshrl.u32 %v2482, 7
    %v2484 = vsub.s32 3, %v2483
    %v2485 = vrot.slane %v2468, %v2484
    %v2490 = vmul.f32 %v2397, %v2473
    %v2491 = vmul.f32 %v2399, %v2477
    %v2492 = vmul.f32 %v2450, %v2481
    %v2493 = vmul.f32 %v2452, %v2485
    %v2494 = vmul.f32 %v2401, %v2473
    %v2495 = vmul.f32 %v2403, %v2477
    %v2496 = vmul.f32 %v2454, %v2481
    %v2497 = vmul.f32 %v2456, %v2485
    %v2498 = vmul.f32 %v2407, %v2473
    %v2499 = vmul.f32 %v2409, %v2477
    %v2500 = vmul.f32 %v2460, %v2481
    %v2501 = vmul.f32 %v2462, %v2485
    %v2502 = vmul.f32 %v2411, %v2473
    %v2503 = vmul.f32 %v2413, %v2477
    %v2504 = vmul.f32 %v2464, %v2481
    %v2505 = vmul.f32 %v2466, %v2485
    %v2507 = vsel %vm178, %v2283, 0
    %v2510 = vsel %vm178, %v2284, 0
    %2512 = vmatprep.subr.bf16.mxu0 0
    %2513 = vmatpush1.bf16.msra.mxu0 0
    %2514 = vmatprep.subr.bf16.mxu0 0
    %2515 = vmatpush1.bf16.msra.mxu0 0
    %2516 = vmatprep.subr.bf16.mxu0 0
    %2517 = vmatpush1.bf16.msra.mxu0 0
    %2518 = vmatprep.subr.bf16.mxu0 0
    %2519 = vmatpush1.bf16.msra.mxu0 0
    %2520 = vmatprep.subr.bf16.mxu0 0
    %2521 = vmatpush1.bf16.msra.mxu0 0
    %2522 = vmatprep.subr.bf16.mxu0 0
    %2523 = vmatpush1.bf16.msra.mxu0 0
    %2524 = vmatprep.subr.bf16.mxu0 %v2290
    %2525 = vmatpush1.bf16.msra.mxu0 %v2289
    %2526 = vmatprep.subr.bf16.mxu0 %v2286
    %2527 = vmatpush1.bf16.msra.mxu0 %v2285
    %2528 = vmatprep.subr.bf16.mxu0 0
    %2529 = vmatpush2.bf16.msra.mxu0 0
    %2530 = vmatprep.subr.bf16.mxu0 0
    %2531 = vmatpush2.bf16.msra.mxu0 0
    %2532 = vmatprep.subr.bf16.mxu0 0
    %2533 = vmatpush2.bf16.msra.mxu0 0
    %2534 = vmatprep.subr.bf16.mxu0 0
    %2535 = vmatpush2.bf16.msra.mxu0 0
    %2536 = vmatprep.subr.bf16.mxu0 0
    %2537 = vmatpush2.bf16.msra.mxu0 0
    %2538 = vmatprep.subr.bf16.mxu0 0
    %2539 = vmatpush2.bf16.msra.mxu0 0
    %2540 = vmatprep.subr.bf16.mxu0 0
    %2541 = vmatpush2.bf16.msra.mxu0 0
    %2542 = vmatprep.subr.bf16.mxu0 0
    %2543 = vmatpush2.bf16.msra.mxu0 0
    %2544 = vmatprep.mubr.bf16.mxu0 0
    %2545 = vmatmul.mubr.bf16.gmra.mxu0 %v2507
    %v2546 = vpop.f32.mrf.mxu0
    %v2547 = vadd.f32 %v2490, %v2546
    %v2548 = vpop.f32.mrf.mxu0
    %v2549 = vadd.f32 %v2491, %v2548
    %v2550 = vpop.f32.mrf.mxu0
    %v2551 = vadd.f32 %v2494, %v2550
    %v2552 = vpop.f32.mrf.mxu0
    %v2553 = vadd.f32 %v2495, %v2552
    %2554 = vmatprep.mubr.bf16.mxu0 0
    %2555 = vmatmul.mubr.bf16.gmra.mxu0 %v2510
    %v2556 = vpop.f32.mrf.mxu0
    %v2557 = vadd.f32 %v2498, %v2556
    %v2558 = vpop.f32.mrf.mxu0
    %v2559 = vadd.f32 %v2499, %v2558
    %v2560 = vpop.f32.mrf.mxu0
    %v2561 = vadd.f32 %v2502, %v2560
    %v2562 = vpop.f32.mrf.mxu0
    %v2563 = vadd.f32 %v2503, %v2562
    %2564 = vdwg.mxu0
    %2565 = vmatprep.subr.bf16.mxu0 0
    %2566 = vmatpush1.bf16.msra.mxu0 0
    %2567 = vmatprep.subr.bf16.mxu0 0
    %2568 = vmatpush1.bf16.msra.mxu0 0
    %2569 = vmatprep.subr.bf16.mxu0 0
    %2570 = vmatpush1.bf16.msra.mxu0 0
    %2571 = vmatprep.subr.bf16.mxu0 0
    %2572 = vmatpush1.bf16.msra.mxu0 0
    %2573 = vmatprep.subr.bf16.mxu0 0
    %2574 = vmatpush1.bf16.msra.mxu0 0
    %2575 = vmatprep.subr.bf16.mxu0 0
    %2576 = vmatpush1.bf16.msra.mxu0 0
    %2577 = vmatprep.subr.bf16.mxu0 %v2292
    %2578 = vmatpush1.bf16.msra.mxu0 %v2291
    %2579 = vmatprep.subr.bf16.mxu0 %v2288
    %2580 = vmatpush1.bf16.msra.mxu0 %v2287
    %2581 = vmatprep.subr.bf16.mxu0 0
    %2582 = vmatpush2.bf16.msra.mxu0 0
    %2583 = vmatprep.subr.bf16.mxu0 0
    %2584 = vmatpush2.bf16.msra.mxu0 0
    %2585 = vmatprep.subr.bf16.mxu0 0
    %2586 = vmatpush2.bf16.msra.mxu0 0
    %2587 = vmatprep.subr.bf16.mxu0 0
    %2588 = vmatpush2.bf16.msra.mxu0 0
    %2589 = vmatprep.subr.bf16.mxu0 0
    %2590 = vmatpush2.bf16.msra.mxu0 0
    %2591 = vmatprep.subr.bf16.mxu0 0
    %2592 = vmatpush2.bf16.msra.mxu0 0
    %2593 = vmatprep.subr.bf16.mxu0 0
    %2594 = vmatpush2.bf16.msra.mxu0 0
    %2595 = vmatprep.subr.bf16.mxu0 0
    %2596 = vmatpush2.bf16.msra.mxu0 0
    %2597 = vmatprep.mubr.bf16.mxu0 0
    %2598 = vmatmul.mubr.bf16.gmra.mxu0 %v2507
    %v2599 = vpop.f32.mrf.mxu0
    %v2600 = vadd.f32 %v2492, %v2599
    %v2601 = vpop.f32.mrf.mxu0
    %v2602 = vadd.f32 %v2493, %v2601
    %v2603 = vpop.f32.mrf.mxu0
    %v2604 = vadd.f32 %v2496, %v2603
    %v2605 = vpop.f32.mrf.mxu0
    %v2606 = vadd.f32 %v2497, %v2605
    %2607 = vmatprep.mubr.bf16.mxu0 0
    %2608 = vmatmul.mubr.bf16.gmra.mxu0 %v2510
    %v2609 = vpop.f32.mrf.mxu0
    %v2610 = vadd.f32 %v2500, %v2609
    %v2611 = vpop.f32.mrf.mxu0
    %v2612 = vadd.f32 %v2501, %v2611
    %v2613 = vpop.f32.mrf.mxu0
    %v2614 = vadd.f32 %v2504, %v2613
    %v2615 = vpop.f32.mrf.mxu0
    %v2616 = vadd.f32 %v2505, %v2615
    %2617 = vdwg.mxu0
    %2618 = vrot.lane.b32.xlu0 %v2262, 16
    %v2619 = vpop.permute.xlu0 %2618
    %2620 = vrot.lane.b32.xlu0 %v2266, 16
    %v2621 = vpop.permute.xlu0 %2620
    %2622 = vrot.lane.b32.xlu0 %v2270, 16
    %v2623 = vpop.permute.xlu0 %2622
    %2624 = vrot.lane.b32.xlu0 %v2274, 16
    %v2625 = vpop.permute.xlu0 %2624
    %2626 = vrot.lane.b32.xlu0 %v2263, 16
    %v2627 = vpop.permute.xlu0 %2626
    %2628 = vrot.lane.b32.xlu0 %v2267, 16
    %v2629 = vpop.permute.xlu0 %2628
    %2630 = vrot.lane.b32.xlu0 %v2271, 16
    %v2631 = vpop.permute.xlu0 %2630
    %2632 = vrot.lane.b32.xlu0 %v2275, 16
    %v2633 = vpop.permute.xlu0 %2632
    %2634 = vrot.lane.b32.xlu0 %v2264, 16
    %v2635 = vpop.permute.xlu0 %2634
    %2636 = vrot.lane.b32.xlu0 %v2268, 16
    %v2637 = vpop.permute.xlu0 %2636
    %2638 = vrot.lane.b32.xlu0 %v2272, 16
    %v2639 = vpop.permute.xlu0 %2638
    %2640 = vrot.lane.b32.xlu0 %v2276, 16
    %v2641 = vpop.permute.xlu0 %2640
    %2642 = vrot.lane.b32.xlu0 %v2265, 16
    %v2643 = vpop.permute.xlu0 %2642
    %2644 = vrot.lane.b32.xlu0 %v2269, 16
    %v2645 = vpop.permute.xlu0 %2644
    %2646 = vrot.lane.b32.xlu0 %v2273, 16
    %v2647 = vpop.permute.xlu0 %2646
    %2648 = vrot.lane.b32.xlu0 %v2277, 16
    %v2649 = vpop.permute.xlu0 %2648
    %v2650 = vsel %vm473, %v2635, %v2643
    %v2651 = vsel %vm473, %v2637, %v2645
    %v2652 = vsel %vm473, %v2639, %v2647
    %v2653 = vsel %vm473, %v2641, %v2649
    %v2654 = vsel %vm473, %v2627, %v2635
    %v2655 = vsel %vm473, %v2629, %v2637
    %v2656 = vsel %vm473, %v2631, %v2639
    %v2657 = vsel %vm473, %v2633, %v2641
    %v2658 = vsel %vm473, %v2619, %v2627
    %v2659 = vsel %vm473, %v2621, %v2629
    %v2660 = vsel %vm473, %v2623, %v2631
    %v2661 = vsel %vm473, %v2625, %v2633
    %v2662 = vsel %vm473, %v2643, %v2619
    %v2663 = vsel %vm473, %v2645, %v2621
    %v2664 = vsel %vm473, %v2647, %v2623
    %v2665 = vsel %vm473, %v2649, %v2625
    %s2666 = scalar_lea.vmem %s2, 320
    %v2667 = vld [vmem:[%s2666] sm:$0xff]
    %v2668 = vld [vmem:[%s2666 + $0x8] sm:$0xff]
    %v2669 = vld [vmem:[%s2666 + $0x10] sm:$0xff]
    %v2670 = vld [vmem:[%s2666 + $0x18] sm:$0xff]
    %v2671 = vpack.c.bf16 %v2668, %v2667
    %v2672 = vpack.c.bf16 %v2670, %v2669
    %v2673 = vpack.c.bf16 %v2663, %v2662
    %v2674 = vpack.c.bf16 %v2659, %v2658
    %v2675 = vpack.c.bf16 %v2655, %v2654
    %v2676 = vpack.c.bf16 %v2651, %v2650
    %v2677 = vpack.c.bf16 %v2665, %v2664
    %v2678 = vpack.c.bf16 %v2661, %v2660
    %v2679 = vpack.c.bf16 %v2657, %v2656
    %v2680 = vpack.c.bf16 %v2653, %v2652
    %v2682 = vsel %vm178, %v2671, 0
    %v2685 = vsel %vm178, %v2672, 0
    %2687 = vmatprep.subr.bf16.mxu0 0
    %2688 = vmatpush1.bf16.msra.mxu0 0
    %2689 = vmatprep.subr.bf16.mxu0 0
    %2690 = vmatpush1.bf16.msra.mxu0 0
    %2691 = vmatprep.subr.bf16.mxu0 0
    %2692 = vmatpush1.bf16.msra.mxu0 0
    %2693 = vmatprep.subr.bf16.mxu0 0
    %2694 = vmatpush1.bf16.msra.mxu0 0
    %2695 = vmatprep.subr.bf16.mxu0 0
    %2696 = vmatpush1.bf16.msra.mxu0 0
    %2697 = vmatprep.subr.bf16.mxu0 0
    %2698 = vmatpush1.bf16.msra.mxu0 0
    %2699 = vmatprep.subr.bf16.mxu0 %v2678
    %2700 = vmatpush1.bf16.msra.mxu0 %v2677
    %2701 = vmatprep.subr.bf16.mxu0 %v2674
    %2702 = vmatpush1.bf16.msra.mxu0 %v2673
    %2703 = vmatprep.subr.bf16.mxu0 0
    %2704 = vmatpush2.bf16.msra.mxu0 0
    %2705 = vmatprep.subr.bf16.mxu0 0
    %2706 = vmatpush2.bf16.msra.mxu0 0
    %2707 = vmatprep.subr.bf16.mxu0 0
    %2708 = vmatpush2.bf16.msra.mxu0 0
    %2709 = vmatprep.subr.bf16.mxu0 0
    %2710 = vmatpush2.bf16.msra.mxu0 0
    %2711 = vmatprep.subr.bf16.mxu0 0
    %2712 = vmatpush2.bf16.msra.mxu0 0
    %2713 = vmatprep.subr.bf16.mxu0 0
    %2714 = vmatpush2.bf16.msra.mxu0 0
    %2715 = vmatprep.subr.bf16.mxu0 0
    %2716 = vmatpush2.bf16.msra.mxu0 0
    %2717 = vmatprep.subr.bf16.mxu0 0
    %2718 = vmatpush2.bf16.msra.mxu0 0
    %2719 = vmatprep.mubr.bf16.mxu0 0
    %2720 = vmatmul.mubr.bf16.gmra.mxu0 %v2682
    %v2721 = vpop.f32.mrf.mxu0
    %v2722 = vadd.f32 0.0, %v2721
    %v2723 = vpop.f32.mrf.mxu0
    %v2724 = vadd.f32 0.0, %v2723
    %v2725 = vpop.f32.mrf.mxu0
    %v2726 = vadd.f32 0.0, %v2725
    %v2727 = vpop.f32.mrf.mxu0
    %v2728 = vadd.f32 0.0, %v2727
    %2729 = vmatprep.mubr.bf16.mxu0 0
    %2730 = vmatmul.mubr.bf16.gmra.mxu0 %v2685
    %v2731 = vpop.f32.mrf.mxu0
    %v2732 = vadd.f32 0.0, %v2731
    %v2733 = vpop.f32.mrf.mxu0
    %v2734 = vadd.f32 0.0, %v2733
    %v2735 = vpop.f32.mrf.mxu0
    %v2736 = vadd.f32 0.0, %v2735
    %v2737 = vpop.f32.mrf.mxu0
    %v2738 = vadd.f32 0.0, %v2737
    %2739 = vdwg.mxu0
    %2740 = vmatprep.subr.bf16.mxu0 0
    %2741 = vmatpush1.bf16.msra.mxu0 0
    %2742 = vmatprep.subr.bf16.mxu0 0
    %2743 = vmatpush1.bf16.msra.mxu0 0
    %2744 = vmatprep.subr.bf16.mxu0 0
    %2745 = vmatpush1.bf16.msra.mxu0 0
    %2746 = vmatprep.subr.bf16.mxu0 0
    %2747 = vmatpush1.bf16.msra.mxu0 0
    %2748 = vmatprep.subr.bf16.mxu0 0
    %2749 = vmatpush1.bf16.msra.mxu0 0
    %2750 = vmatprep.subr.bf16.mxu0 0
    %2751 = vmatpush1.bf16.msra.mxu0 0
    %2752 = vmatprep.subr.bf16.mxu0 %v2680
    %2753 = vmatpush1.bf16.msra.mxu0 %v2679
    %2754 = vmatprep.subr.bf16.mxu0 %v2676
    %2755 = vmatpush1.bf16.msra.mxu0 %v2675
    %2756 = vmatprep.subr.bf16.mxu0 0
    %2757 = vmatpush2.bf16.msra.mxu0 0
    %2758 = vmatprep.subr.bf16.mxu0 0
    %2759 = vmatpush2.bf16.msra.mxu0 0
    %2760 = vmatprep.subr.bf16.mxu0 0
    %2761 = vmatpush2.bf16.msra.mxu0 0
    %2762 = vmatprep.subr.bf16.mxu0 0
    %2763 = vmatpush2.bf16.msra.mxu0 0
    %2764 = vmatprep.subr.bf16.mxu0 0
    %2765 = vmatpush2.bf16.msra.mxu0 0
    %2766 = vmatprep.subr.bf16.mxu0 0
    %2767 = vmatpush2.bf16.msra.mxu0 0
    %2768 = vmatprep.subr.bf16.mxu0 0
    %2769 = vmatpush2.bf16.msra.mxu0 0
    %2770 = vmatprep.subr.bf16.mxu0 0
    %2771 = vmatpush2.bf16.msra.mxu0 0
    %2772 = vmatprep.mubr.bf16.mxu0 0
    %2773 = vmatmul.mubr.bf16.gmra.mxu0 %v2682
    %v2774 = vpop.f32.mrf.mxu0
    %v2775 = vadd.f32 0.0, %v2774
    %v2776 = vpop.f32.mrf.mxu0
    %v2777 = vadd.f32 0.0, %v2776
    %v2778 = vpop.f32.mrf.mxu0
    %v2779 = vadd.f32 0.0, %v2778
    %v2780 = vpop.f32.mrf.mxu0
    %v2781 = vadd.f32 0.0, %v2780
    %2782 = vmatprep.mubr.bf16.mxu0 0
    %2783 = vmatmul.mubr.bf16.gmra.mxu0 %v2685
    %v2784 = vpop.f32.mrf.mxu0
    %v2785 = vadd.f32 0.0, %v2784
    %v2786 = vpop.f32.mrf.mxu0
    %v2787 = vadd.f32 0.0, %v2786
    %v2788 = vpop.f32.mrf.mxu0
    %v2789 = vadd.f32 0.0, %v2788
    %v2790 = vpop.f32.mrf.mxu0
    %v2791 = vadd.f32 0.0, %v2790
    %2792 = vdwg.mxu0
    %v2793 = vld [vmem:[%s617] sm:$0xf]
    %v2795 = vlaneseq
    %v2796 = vshrl.u32 %v2795, 7
    %v2797 = vsub.s32 0, %v2796
    %v2798 = vrot.slane %v2793, %v2797
    %v2799 = vlaneseq
    %v2800 = vshrl.u32 %v2799, 7
    %v2801 = vsub.s32 1, %v2800
    %v2802 = vrot.slane %v2793, %v2801
    %v2803 = vlaneseq
    %v2804 = vshrl.u32 %v2803, 7
    %v2805 = vsub.s32 2, %v2804
    %v2806 = vrot.slane %v2793, %v2805
    %v2807 = vlaneseq
    %v2808 = vshrl.u32 %v2807, 7
    %v2809 = vsub.s32 3, %v2808
    %v2810 = vrot.slane %v2793, %v2809
    %v2815 = vmul.f32 %v2722, %v2798
    %v2816 = vmul.f32 %v2724, %v2802
    %v2817 = vmul.f32 %v2775, %v2806
    %v2818 = vmul.f32 %v2777, %v2810
    %v2819 = vmul.f32 %v2726, %v2798
    %v2820 = vmul.f32 %v2728, %v2802
    %v2821 = vmul.f32 %v2779, %v2806
    %v2822 = vmul.f32 %v2781, %v2810
    %v2823 = vmul.f32 %v2732, %v2798
    %v2824 = vmul.f32 %v2734, %v2802
    %v2825 = vmul.f32 %v2785, %v2806
    %v2826 = vmul.f32 %v2787, %v2810
    %v2827 = vmul.f32 %v2736, %v2798
    %v2828 = vmul.f32 %v2738, %v2802
    %v2829 = vmul.f32 %v2789, %v2806
    %v2830 = vmul.f32 %v2791, %v2810
    %v2831 = vadd.f32 %v2547, %v2815
    %v2832 = vadd.f32 %v2549, %v2816
    %v2833 = vadd.f32 %v2600, %v2817
    %v2834 = vadd.f32 %v2602, %v2818
    %v2835 = vadd.f32 %v2551, %v2819
    %v2836 = vadd.f32 %v2553, %v2820
    %v2837 = vadd.f32 %v2604, %v2821
    %v2838 = vadd.f32 %v2606, %v2822
    %v2839 = vadd.f32 %v2557, %v2823
    %v2840 = vadd.f32 %v2559, %v2824
    %v2841 = vadd.f32 %v2610, %v2825
    %v2842 = vadd.f32 %v2612, %v2826
    %v2843 = vadd.f32 %v2561, %v2827
    %v2844 = vadd.f32 %v2563, %v2828
    %v2845 = vadd.f32 %v2614, %v2829
    %v2846 = vadd.f32 %v2616, %v2830
    %2847 = vrot.lane.b32.xlu0 %v2262, 15
    %v2848 = vpop.permute.xlu0 %2847
    %2849 = vrot.lane.b32.xlu0 %v2266, 15
    %v2850 = vpop.permute.xlu0 %2849
    %2851 = vrot.lane.b32.xlu0 %v2270, 15
    %v2852 = vpop.permute.xlu0 %2851
    %2853 = vrot.lane.b32.xlu0 %v2274, 15
    %v2854 = vpop.permute.xlu0 %2853
    %2855 = vrot.lane.b32.xlu0 %v2263, 15
    %v2856 = vpop.permute.xlu0 %2855
    %2857 = vrot.lane.b32.xlu0 %v2267, 15
    %v2858 = vpop.permute.xlu0 %2857
    %2859 = vrot.lane.b32.xlu0 %v2271, 15
    %v2860 = vpop.permute.xlu0 %2859
    %2861 = vrot.lane.b32.xlu0 %v2275, 15
    %v2862 = vpop.permute.xlu0 %2861
    %2863 = vrot.lane.b32.xlu0 %v2264, 15
    %v2864 = vpop.permute.xlu0 %2863
    %2865 = vrot.lane.b32.xlu0 %v2268, 15
    %v2866 = vpop.permute.xlu0 %2865
    %2867 = vrot.lane.b32.xlu0 %v2272, 15
    %v2868 = vpop.permute.xlu0 %2867
    %2869 = vrot.lane.b32.xlu0 %v2276, 15
    %v2870 = vpop.permute.xlu0 %2869
    %2871 = vrot.lane.b32.xlu0 %v2265, 15
    %v2872 = vpop.permute.xlu0 %2871
    %2873 = vrot.lane.b32.xlu0 %v2269, 15
    %v2874 = vpop.permute.xlu0 %2873
    %2875 = vrot.lane.b32.xlu0 %v2273, 15
    %v2876 = vpop.permute.xlu0 %2875
    %2877 = vrot.lane.b32.xlu0 %v2277, 15
    %v2878 = vpop.permute.xlu0 %2877
    %v2879 = vsel %vm704, %v2864, %v2872
    %v2880 = vsel %vm704, %v2866, %v2874
    %v2881 = vsel %vm704, %v2868, %v2876
    %v2882 = vsel %vm704, %v2870, %v2878
    %v2883 = vsel %vm704, %v2856, %v2864
    %v2884 = vsel %vm704, %v2858, %v2866
    %v2885 = vsel %vm704, %v2860, %v2868
    %v2886 = vsel %vm704, %v2862, %v2870
    %v2887 = vsel %vm704, %v2848, %v2856
    %v2888 = vsel %vm704, %v2850, %v2858
    %v2889 = vsel %vm704, %v2852, %v2860
    %v2890 = vsel %vm704, %v2854, %v2862
    %v2891 = vsel %vm704, %v2872, %v2848
    %v2892 = vsel %vm704, %v2874, %v2850
    %v2893 = vsel %vm704, %v2876, %v2852
    %v2894 = vsel %vm704, %v2878, %v2854
    %s2895 = scalar_lea.vmem %s2, 352
    %v2896 = vld [vmem:[%s2895] sm:$0xff]
    %v2897 = vld [vmem:[%s2895 + $0x8] sm:$0xff]
    %v2898 = vld [vmem:[%s2895 + $0x10] sm:$0xff]
    %v2899 = vld [vmem:[%s2895 + $0x18] sm:$0xff]
    %v2900 = vpack.c.bf16 %v2897, %v2896
    %v2901 = vpack.c.bf16 %v2899, %v2898
    %v2902 = vpack.c.bf16 %v2892, %v2891
    %v2903 = vpack.c.bf16 %v2888, %v2887
    %v2904 = vpack.c.bf16 %v2884, %v2883
    %v2905 = vpack.c.bf16 %v2880, %v2879
    %v2906 = vpack.c.bf16 %v2894, %v2893
    %v2907 = vpack.c.bf16 %v2890, %v2889
    %v2908 = vpack.c.bf16 %v2886, %v2885
    %v2909 = vpack.c.bf16 %v2882, %v2881
    %v2911 = vsel %vm178, %v2900, 0
    %v2914 = vsel %vm178, %v2901, 0
    %2916 = vmatprep.subr.bf16.mxu0 0
    %2917 = vmatpush1.bf16.msra.mxu0 0
    %2918 = vmatprep.subr.bf16.mxu0 0
    %2919 = vmatpush1.bf16.msra.mxu0 0
    %2920 = vmatprep.subr.bf16.mxu0 0
    %2921 = vmatpush1.bf16.msra.mxu0 0
    %2922 = vmatprep.subr.bf16.mxu0 0
    %2923 = vmatpush1.bf16.msra.mxu0 0
    %2924 = vmatprep.subr.bf16.mxu0 0
    %2925 = vmatpush1.bf16.msra.mxu0 0
    %2926 = vmatprep.subr.bf16.mxu0 0
    %2927 = vmatpush1.bf16.msra.mxu0 0
    %2928 = vmatprep.subr.bf16.mxu0 %v2907
    %2929 = vmatpush1.bf16.msra.mxu0 %v2906
    %2930 = vmatprep.subr.bf16.mxu0 %v2903
    %2931 = vmatpush1.bf16.msra.mxu0 %v2902
    %2932 = vmatprep.subr.bf16.mxu0 0
    %2933 = vmatpush2.bf16.msra.mxu0 0
    %2934 = vmatprep.subr.bf16.mxu0 0
    %2935 = vmatpush2.bf16.msra.mxu0 0
    %2936 = vmatprep.subr.bf16.mxu0 0
    %2937 = vmatpush2.bf16.msra.mxu0 0
    %2938 = vmatprep.subr.bf16.mxu0 0
    %2939 = vmatpush2.bf16.msra.mxu0 0
    %2940 = vmatprep.subr.bf16.mxu0 0
    %2941 = vmatpush2.bf16.msra.mxu0 0
    %2942 = vmatprep.subr.bf16.mxu0 0
    %2943 = vmatpush2.bf16.msra.mxu0 0
    %2944 = vmatprep.subr.bf16.mxu0 0
    %2945 = vmatpush2.bf16.msra.mxu0 0
    %2946 = vmatprep.subr.bf16.mxu0 0
    %2947 = vmatpush2.bf16.msra.mxu0 0
    %2948 = vmatprep.mubr.bf16.mxu0 0
    %2949 = vmatmul.mubr.bf16.gmra.mxu0 %v2911
    %v2950 = vpop.f32.mrf.mxu0
    %v2951 = vadd.f32 0.0, %v2950
    %v2952 = vpop.f32.mrf.mxu0
    %v2953 = vadd.f32 0.0, %v2952
    %v2954 = vpop.f32.mrf.mxu0
    %v2955 = vadd.f32 0.0, %v2954
    %v2956 = vpop.f32.mrf.mxu0
    %v2957 = vadd.f32 0.0, %v2956
    %2958 = vmatprep.mubr.bf16.mxu0 0
    %2959 = vmatmul.mubr.bf16.gmra.mxu0 %v2914
    %v2960 = vpop.f32.mrf.mxu0
    %v2961 = vadd.f32 0.0, %v2960
    %v2962 = vpop.f32.mrf.mxu0
    %v2963 = vadd.f32 0.0, %v2962
    %v2964 = vpop.f32.mrf.mxu0
    %v2965 = vadd.f32 0.0, %v2964
    %v2966 = vpop.f32.mrf.mxu0
    %v2967 = vadd.f32 0.0, %v2966
    %2968 = vdwg.mxu0
    %2969 = vmatprep.subr.bf16.mxu0 0
    %2970 = vmatpush1.bf16.msra.mxu0 0
    %2971 = vmatprep.subr.bf16.mxu0 0
    %2972 = vmatpush1.bf16.msra.mxu0 0
    %2973 = vmatprep.subr.bf16.mxu0 0
    %2974 = vmatpush1.bf16.msra.mxu0 0
    %2975 = vmatprep.subr.bf16.mxu0 0
    %2976 = vmatpush1.bf16.msra.mxu0 0
    %2977 = vmatprep.subr.bf16.mxu0 0
    %2978 = vmatpush1.bf16.msra.mxu0 0
    %2979 = vmatprep.subr.bf16.mxu0 0
    %2980 = vmatpush1.bf16.msra.mxu0 0
    %2981 = vmatprep.subr.bf16.mxu0 %v2909
    %2982 = vmatpush1.bf16.msra.mxu0 %v2908
    %2983 = vmatprep.subr.bf16.mxu0 %v2905
    %2984 = vmatpush1.bf16.msra.mxu0 %v2904
    %2985 = vmatprep.subr.bf16.mxu0 0
    %2986 = vmatpush2.bf16.msra.mxu0 0
    %2987 = vmatprep.subr.bf16.mxu0 0
    %2988 = vmatpush2.bf16.msra.mxu0 0
    %2989 = vmatprep.subr.bf16.mxu0 0
    %2990 = vmatpush2.bf16.msra.mxu0 0
    %2991 = vmatprep.subr.bf16.mxu0 0
    %2992 = vmatpush2.bf16.msra.mxu0 0
    %2993 = vmatprep.subr.bf16.mxu0 0
    %2994 = vmatpush2.bf16.msra.mxu0 0
    %2995 = vmatprep.subr.bf16.mxu0 0
    %2996 = vmatpush2.bf16.msra.mxu0 0
    %2997 = vmatprep.subr.bf16.mxu0 0
    %2998 = vmatpush2.bf16.msra.mxu0 0
    %2999 = vmatprep.subr.bf16.mxu0 0
    %3000 = vmatpush2.bf16.msra.mxu0 0
    %3001 = vmatprep.mubr.bf16.mxu0 0
    %3002 = vmatmul.mubr.bf16.gmra.mxu0 %v2911
    %v3003 = vpop.f32.mrf.mxu0
    %v3004 = vadd.f32 0.0, %v3003
    %v3005 = vpop.f32.mrf.mxu0
    %v3006 = vadd.f32 0.0, %v3005
    %v3007 = vpop.f32.mrf.mxu0
    %v3008 = vadd.f32 0.0, %v3007
    %v3009 = vpop.f32.mrf.mxu0
    %v3010 = vadd.f32 0.0, %v3009
    %3011 = vmatprep.mubr.bf16.mxu0 0
    %3012 = vmatmul.mubr.bf16.gmra.mxu0 %v2914
    %v3013 = vpop.f32.mrf.mxu0
    %v3014 = vadd.f32 0.0, %v3013
    %v3015 = vpop.f32.mrf.mxu0
    %v3016 = vadd.f32 0.0, %v3015
    %v3017 = vpop.f32.mrf.mxu0
    %v3018 = vadd.f32 0.0, %v3017
    %v3019 = vpop.f32.mrf.mxu0
    %v3020 = vadd.f32 0.0, %v3019
    %3021 = vdwg.mxu0
    %v3022 = vld [vmem:[%s848] sm:$0xf]
    %v3024 = vlaneseq
    %v3025 = vshrl.u32 %v3024, 7
    %v3026 = vsub.s32 0, %v3025
    %v3027 = vrot.slane %v3022, %v3026
    %v3028 = vlaneseq
    %v3029 = vshrl.u32 %v3028, 7
    %v3030 = vsub.s32 1, %v3029
    %v3031 = vrot.slane %v3022, %v3030
    %v3032 = vlaneseq
    %v3033 = vshrl.u32 %v3032, 7
    %v3034 = vsub.s32 2, %v3033
    %v3035 = vrot.slane %v3022, %v3034
    %v3036 = vlaneseq
    %v3037 = vshrl.u32 %v3036, 7
    %v3038 = vsub.s32 3, %v3037
    %v3039 = vrot.slane %v3022, %v3038
    %v3044 = vmul.f32 %v2951, %v3027
    %v3045 = vmul.f32 %v2953, %v3031
    %v3046 = vmul.f32 %v3004, %v3035
    %v3047 = vmul.f32 %v3006, %v3039
    %v3048 = vmul.f32 %v2955, %v3027
    %v3049 = vmul.f32 %v2957, %v3031
    %v3050 = vmul.f32 %v3008, %v3035
    %v3051 = vmul.f32 %v3010, %v3039
    %v3052 = vmul.f32 %v2961, %v3027
    %v3053 = vmul.f32 %v2963, %v3031
    %v3054 = vmul.f32 %v3014, %v3035
    %v3055 = vmul.f32 %v3016, %v3039
    %v3056 = vmul.f32 %v2965, %v3027
    %v3057 = vmul.f32 %v2967, %v3031
    %v3058 = vmul.f32 %v3018, %v3035
    %v3059 = vmul.f32 %v3020, %v3039
    %v3060 = vadd.f32 %v2831, %v3044
    %v3061 = vadd.f32 %v2832, %v3045
    %v3062 = vadd.f32 %v2833, %v3046
    %v3063 = vadd.f32 %v2834, %v3047
    %v3064 = vadd.f32 %v2835, %v3048
    %v3065 = vadd.f32 %v2836, %v3049
    %v3066 = vadd.f32 %v2837, %v3050
    %v3067 = vadd.f32 %v2838, %v3051
    %v3068 = vadd.f32 %v2839, %v3052
    %v3069 = vadd.f32 %v2840, %v3053
    %v3070 = vadd.f32 %v2841, %v3054
    %v3071 = vadd.f32 %v2842, %v3055
    %v3072 = vadd.f32 %v2843, %v3056
    %v3073 = vadd.f32 %v2844, %v3057
    %v3074 = vadd.f32 %v2845, %v3058
    %v3075 = vadd.f32 %v2846, %v3059
    %3076 = vrot.lane.b32.xlu0 %v2262, 1
    %v3077 = vpop.permute.xlu0 %3076
    %3078 = vrot.lane.b32.xlu0 %v2266, 1
    %v3079 = vpop.permute.xlu0 %3078
    %3080 = vrot.lane.b32.xlu0 %v2270, 1
    %v3081 = vpop.permute.xlu0 %3080
    %3082 = vrot.lane.b32.xlu0 %v2274, 1
    %v3083 = vpop.permute.xlu0 %3082
    %3084 = vrot.lane.b32.xlu0 %v2263, 1
    %v3085 = vpop.permute.xlu0 %3084
    %3086 = vrot.lane.b32.xlu0 %v2267, 1
    %v3087 = vpop.permute.xlu0 %3086
    %3088 = vrot.lane.b32.xlu0 %v2271, 1
    %v3089 = vpop.permute.xlu0 %3088
    %3090 = vrot.lane.b32.xlu0 %v2275, 1
    %v3091 = vpop.permute.xlu0 %3090
    %3092 = vrot.lane.b32.xlu0 %v2264, 1
    %v3093 = vpop.permute.xlu0 %3092
    %3094 = vrot.lane.b32.xlu0 %v2268, 1
    %v3095 = vpop.permute.xlu0 %3094
    %3096 = vrot.lane.b32.xlu0 %v2272, 1
    %v3097 = vpop.permute.xlu0 %3096
    %3098 = vrot.lane.b32.xlu0 %v2276, 1
    %v3099 = vpop.permute.xlu0 %3098
    %3100 = vrot.lane.b32.xlu0 %v2265, 1
    %v3101 = vpop.permute.xlu0 %3100
    %3102 = vrot.lane.b32.xlu0 %v2269, 1
    %v3103 = vpop.permute.xlu0 %3102
    %3104 = vrot.lane.b32.xlu0 %v2273, 1
    %v3105 = vpop.permute.xlu0 %3104
    %3106 = vrot.lane.b32.xlu0 %v2277, 1
    %v3107 = vpop.permute.xlu0 %3106
    %v3108 = vsel %vm935, %v3093, %v3101
    %v3109 = vsel %vm935, %v3095, %v3103
    %v3110 = vsel %vm935, %v3097, %v3105
    %v3111 = vsel %vm935, %v3099, %v3107
    %v3112 = vsel %vm935, %v3085, %v3093
    %v3113 = vsel %vm935, %v3087, %v3095
    %v3114 = vsel %vm935, %v3089, %v3097
    %v3115 = vsel %vm935, %v3091, %v3099
    %v3116 = vsel %vm935, %v3077, %v3085
    %v3117 = vsel %vm935, %v3079, %v3087
    %v3118 = vsel %vm935, %v3081, %v3089
    %v3119 = vsel %vm935, %v3083, %v3091
    %v3120 = vsel %vm935, %v3101, %v3077
    %v3121 = vsel %vm935, %v3103, %v3079
    %v3122 = vsel %vm935, %v3105, %v3081
    %v3123 = vsel %vm935, %v3107, %v3083
    %s3124 = scalar_lea.vmem %s2, 384
    %v3125 = vld [vmem:[%s3124] sm:$0xff]
    %v3126 = vld [vmem:[%s3124 + $0x8] sm:$0xff]
    %v3127 = vld [vmem:[%s3124 + $0x10] sm:$0xff]
    %v3128 = vld [vmem:[%s3124 + $0x18] sm:$0xff]
    %v3129 = vpack.c.bf16 %v3126, %v3125
    %v3130 = vpack.c.bf16 %v3128, %v3127
    %v3131 = vpack.c.bf16 %v3121, %v3120
    %v3132 = vpack.c.bf16 %v3117, %v3116
    %v3133 = vpack.c.bf16 %v3113, %v3112
    %v3134 = vpack.c.bf16 %v3109, %v3108
    %v3135 = vpack.c.bf16 %v3123, %v3122
    %v3136 = vpack.c.bf16 %v3119, %v3118
    %v3137 = vpack.c.bf16 %v3115, %v3114
    %v3138 = vpack.c.bf16 %v3111, %v3110
    %v3140 = vsel %vm178, %v3129, 0
    %v3143 = vsel %vm178, %v3130, 0
    %3145 = vmatprep.subr.bf16.mxu0 0
    %3146 = vmatpush1.bf16.msra.mxu0 0
    %3147 = vmatprep.subr.bf16.mxu0 0
    %3148 = vmatpush1.bf16.msra.mxu0 0
    %3149 = vmatprep.subr.bf16.mxu0 0
    %3150 = vmatpush1.bf16.msra.mxu0 0
    %3151 = vmatprep.subr.bf16.mxu0 0
    %3152 = vmatpush1.bf16.msra.mxu0 0
    %3153 = vmatprep.subr.bf16.mxu0 0
    %3154 = vmatpush1.bf16.msra.mxu0 0
    %3155 = vmatprep.subr.bf16.mxu0 0
    %3156 = vmatpush1.bf16.msra.mxu0 0
    %3157 = vmatprep.subr.bf16.mxu0 %v3136
    %3158 = vmatpush1.bf16.msra.mxu0 %v3135
    %3159 = vmatprep.subr.bf16.mxu0 %v3132
    %3160 = vmatpush1.bf16.msra.mxu0 %v3131
    %3161 = vmatprep.subr.bf16.mxu0 0
    %3162 = vmatpush2.bf16.msra.mxu0 0
    %3163 = vmatprep.subr.bf16.mxu0 0
    %3164 = vmatpush2.bf16.msra.mxu0 0
    %3165 = vmatprep.subr.bf16.mxu0 0
    %3166 = vmatpush2.bf16.msra.mxu0 0
    %3167 = vmatprep.subr.bf16.mxu0 0
    %3168 = vmatpush2.bf16.msra.mxu0 0
    %3169 = vmatprep.subr.bf16.mxu0 0
    %3170 = vmatpush2.bf16.msra.mxu0 0
    %3171 = vmatprep.subr.bf16.mxu0 0
    %3172 = vmatpush2.bf16.msra.mxu0 0
    %3173 = vmatprep.subr.bf16.mxu0 0
    %3174 = vmatpush2.bf16.msra.mxu0 0
    %3175 = vmatprep.subr.bf16.mxu0 0
    %3176 = vmatpush2.bf16.msra.mxu0 0
    %3177 = vmatprep.mubr.bf16.mxu0 0
    %3178 = vmatmul.mubr.bf16.gmra.mxu0 %v3140
    %v3179 = vpop.f32.mrf.mxu0
    %v3180 = vadd.f32 0.0, %v3179
    %v3181 = vpop.f32.mrf.mxu0
    %v3182 = vadd.f32 0.0, %v3181
    %v3183 = vpop.f32.mrf.mxu0
    %v3184 = vadd.f32 0.0, %v3183
    %v3185 = vpop.f32.mrf.mxu0
    %v3186 = vadd.f32 0.0, %v3185
    %3187 = vmatprep.mubr.bf16.mxu0 0
    %3188 = vmatmul.mubr.bf16.gmra.mxu0 %v3143
    %v3189 = vpop.f32.mrf.mxu0
    %v3190 = vadd.f32 0.0, %v3189
    %v3191 = vpop.f32.mrf.mxu0
    %v3192 = vadd.f32 0.0, %v3191
    %v3193 = vpop.f32.mrf.mxu0
    %v3194 = vadd.f32 0.0, %v3193
    %v3195 = vpop.f32.mrf.mxu0
    %v3196 = vadd.f32 0.0, %v3195
    %3197 = vdwg.mxu0
    %3198 = vmatprep.subr.bf16.mxu0 0
    %3199 = vmatpush1.bf16.msra.mxu0 0
    %3200 = vmatprep.subr.bf16.mxu0 0
    %3201 = vmatpush1.bf16.msra.mxu0 0
    %3202 = vmatprep.subr.bf16.mxu0 0
    %3203 = vmatpush1.bf16.msra.mxu0 0
    %3204 = vmatprep.subr.bf16.mxu0 0
    %3205 = vmatpush1.bf16.msra.mxu0 0
    %3206 = vmatprep.subr.bf16.mxu0 0
    %3207 = vmatpush1.bf16.msra.mxu0 0
    %3208 = vmatprep.subr.bf16.mxu0 0
    %3209 = vmatpush1.bf16.msra.mxu0 0
    %3210 = vmatprep.subr.bf16.mxu0 %v3138
    %3211 = vmatpush1.bf16.msra.mxu0 %v3137
    %3212 = vmatprep.subr.bf16.mxu0 %v3134
    %3213 = vmatpush1.bf16.msra.mxu0 %v3133
    %3214 = vmatprep.subr.bf16.mxu0 0
    %3215 = vmatpush2.bf16.msra.mxu0 0
    %3216 = vmatprep.subr.bf16.mxu0 0
    %3217 = vmatpush2.bf16.msra.mxu0 0
    %3218 = vmatprep.subr.bf16.mxu0 0
    %3219 = vmatpush2.bf16.msra.mxu0 0
    %3220 = vmatprep.subr.bf16.mxu0 0
    %3221 = vmatpush2.bf16.msra.mxu0 0
    %3222 = vmatprep.subr.bf16.mxu0 0
    %3223 = vmatpush2.bf16.msra.mxu0 0
    %3224 = vmatprep.subr.bf16.mxu0 0
    %3225 = vmatpush2.bf16.msra.mxu0 0
    %3226 = vmatprep.subr.bf16.mxu0 0
    %3227 = vmatpush2.bf16.msra.mxu0 0
    %3228 = vmatprep.subr.bf16.mxu0 0
    %3229 = vmatpush2.bf16.msra.mxu0 0
    %3230 = vmatprep.mubr.bf16.mxu0 0
    %3231 = vmatmul.mubr.bf16.gmra.mxu0 %v3140
    %v3232 = vpop.f32.mrf.mxu0
    %v3233 = vadd.f32 0.0, %v3232
    %v3234 = vpop.f32.mrf.mxu0
    %v3235 = vadd.f32 0.0, %v3234
    %v3236 = vpop.f32.mrf.mxu0
    %v3237 = vadd.f32 0.0, %v3236
    %v3238 = vpop.f32.mrf.mxu0
    %v3239 = vadd.f32 0.0, %v3238
    %3240 = vmatprep.mubr.bf16.mxu0 0
    %3241 = vmatmul.mubr.bf16.gmra.mxu0 %v3143
    %v3242 = vpop.f32.mrf.mxu0
    %v3243 = vadd.f32 0.0, %v3242
    %v3244 = vpop.f32.mrf.mxu0
    %v3245 = vadd.f32 0.0, %v3244
    %v3246 = vpop.f32.mrf.mxu0
    %v3247 = vadd.f32 0.0, %v3246
    %v3248 = vpop.f32.mrf.mxu0
    %v3249 = vadd.f32 0.0, %v3248
    %3250 = vdwg.mxu0
    %v3251 = vld [vmem:[%s1079] sm:$0xf]
    %v3253 = vlaneseq
    %v3254 = vshrl.u32 %v3253, 7
    %v3255 = vsub.s32 0, %v3254
    %v3256 = vrot.slane %v3251, %v3255
    %v3257 = vlaneseq
    %v3258 = vshrl.u32 %v3257, 7
    %v3259 = vsub.s32 1, %v3258
    %v3260 = vrot.slane %v3251, %v3259
    %v3261 = vlaneseq
    %v3262 = vshrl.u32 %v3261, 7
    %v3263 = vsub.s32 2, %v3262
    %v3264 = vrot.slane %v3251, %v3263
    %v3265 = vlaneseq
    %v3266 = vshrl.u32 %v3265, 7
    %v3267 = vsub.s32 3, %v3266
    %v3268 = vrot.slane %v3251, %v3267
    %v3273 = vmul.f32 %v3180, %v3256
    %v3274 = vmul.f32 %v3182, %v3260
    %v3275 = vmul.f32 %v3233, %v3264
    %v3276 = vmul.f32 %v3235, %v3268
    %v3277 = vmul.f32 %v3184, %v3256
    %v3278 = vmul.f32 %v3186, %v3260
    %v3279 = vmul.f32 %v3237, %v3264
    %v3280 = vmul.f32 %v3239, %v3268
    %v3281 = vmul.f32 %v3190, %v3256
    %v3282 = vmul.f32 %v3192, %v3260
    %v3283 = vmul.f32 %v3243, %v3264
    %v3284 = vmul.f32 %v3245, %v3268
    %v3285 = vmul.f32 %v3194, %v3256
    %v3286 = vmul.f32 %v3196, %v3260
    %v3287 = vmul.f32 %v3247, %v3264
    %v3288 = vmul.f32 %v3249, %v3268
    %v3289 = vadd.f32 %v3060, %v3273
    %v3290 = vadd.f32 %v3061, %v3274
    %v3291 = vadd.f32 %v3062, %v3275
    %v3292 = vadd.f32 %v3063, %v3276
    %v3293 = vadd.f32 %v3064, %v3277
    %v3294 = vadd.f32 %v3065, %v3278
    %v3295 = vadd.f32 %v3066, %v3279
    %v3296 = vadd.f32 %v3067, %v3280
    %v3297 = vadd.f32 %v3068, %v3281
    %v3298 = vadd.f32 %v3069, %v3282
    %v3299 = vadd.f32 %v3070, %v3283
    %v3300 = vadd.f32 %v3071, %v3284
    %v3301 = vadd.f32 %v3072, %v3285
    %v3302 = vadd.f32 %v3073, %v3286
    %v3303 = vadd.f32 %v3074, %v3287
    %v3304 = vadd.f32 %v3075, %v3288
    %3305 = vrot.lane.b32.xlu0 %v2262, 127
    %v3306 = vpop.permute.xlu0 %3305
    %3307 = vrot.lane.b32.xlu0 %v2266, 127
    %v3308 = vpop.permute.xlu0 %3307
    %3309 = vrot.lane.b32.xlu0 %v2270, 127
    %v3310 = vpop.permute.xlu0 %3309
    %3311 = vrot.lane.b32.xlu0 %v2274, 127
    %v3312 = vpop.permute.xlu0 %3311
    %3313 = vrot.lane.b32.xlu0 %v2263, 127
    %v3314 = vpop.permute.xlu0 %3313
    %3315 = vrot.lane.b32.xlu0 %v2267, 127
    %v3316 = vpop.permute.xlu0 %3315
    %3317 = vrot.lane.b32.xlu0 %v2271, 127
    %v3318 = vpop.permute.xlu0 %3317
    %3319 = vrot.lane.b32.xlu0 %v2275, 127
    %v3320 = vpop.permute.xlu0 %3319
    %3321 = vrot.lane.b32.xlu0 %v2264, 127
    %v3322 = vpop.permute.xlu0 %3321
    %3323 = vrot.lane.b32.xlu0 %v2268, 127
    %v3324 = vpop.permute.xlu0 %3323
    %3325 = vrot.lane.b32.xlu0 %v2272, 127
    %v3326 = vpop.permute.xlu0 %3325
    %3327 = vrot.lane.b32.xlu0 %v2276, 127
    %v3328 = vpop.permute.xlu0 %3327
    %3329 = vrot.lane.b32.xlu0 %v2265, 127
    %v3330 = vpop.permute.xlu0 %3329
    %3331 = vrot.lane.b32.xlu0 %v2269, 127
    %v3332 = vpop.permute.xlu0 %3331
    %3333 = vrot.lane.b32.xlu0 %v2273, 127
    %v3334 = vpop.permute.xlu0 %3333
    %3335 = vrot.lane.b32.xlu0 %v2277, 127
    %v3336 = vpop.permute.xlu0 %3335
    %v3337 = vsel %vm1166, %v3322, %v3330
    %v3338 = vsel %vm1166, %v3324, %v3332
    %v3339 = vsel %vm1166, %v3326, %v3334
    %v3340 = vsel %vm1166, %v3328, %v3336
    %v3341 = vsel %vm1166, %v3314, %v3322
    %v3342 = vsel %vm1166, %v3316, %v3324
    %v3343 = vsel %vm1166, %v3318, %v3326
    %v3344 = vsel %vm1166, %v3320, %v3328
    %v3345 = vsel %vm1166, %v3306, %v3314
    %v3346 = vsel %vm1166, %v3308, %v3316
    %v3347 = vsel %vm1166, %v3310, %v3318
    %v3348 = vsel %vm1166, %v3312, %v3320
    %v3349 = vsel %vm1166, %v3330, %v3306
    %v3350 = vsel %vm1166, %v3332, %v3308
    %v3351 = vsel %vm1166, %v3334, %v3310
    %v3352 = vsel %vm1166, %v3336, %v3312
    %s3353 = scalar_lea.vmem %s2, 448
    %v3354 = vld [vmem:[%s3353] sm:$0xff]
    %v3355 = vld [vmem:[%s3353 + $0x8] sm:$0xff]
    %v3356 = vld [vmem:[%s3353 + $0x10] sm:$0xff]
    %v3357 = vld [vmem:[%s3353 + $0x18] sm:$0xff]
    %v3358 = vpack.c.bf16 %v3355, %v3354
    %v3359 = vpack.c.bf16 %v3357, %v3356
    %v3360 = vpack.c.bf16 %v3346, %v3345
    %v3361 = vpack.c.bf16 %v3342, %v3341
    %v3362 = vpack.c.bf16 %v3338, %v3337
    %v3363 = vpack.c.bf16 %v3350, %v3349
    %v3364 = vpack.c.bf16 %v3348, %v3347
    %v3365 = vpack.c.bf16 %v3344, %v3343
    %v3366 = vpack.c.bf16 %v3340, %v3339
    %v3367 = vpack.c.bf16 %v3352, %v3351
    %v3369 = vsel %vm178, %v3358, 0
    %v3372 = vsel %vm178, %v3359, 0
    %3374 = vmatprep.subr.bf16.mxu0 0
    %3375 = vmatpush1.bf16.msra.mxu0 0
    %3376 = vmatprep.subr.bf16.mxu0 0
    %3377 = vmatpush1.bf16.msra.mxu0 0
    %3378 = vmatprep.subr.bf16.mxu0 0
    %3379 = vmatpush1.bf16.msra.mxu0 0
    %3380 = vmatprep.subr.bf16.mxu0 0
    %3381 = vmatpush1.bf16.msra.mxu0 0
    %3382 = vmatprep.subr.bf16.mxu0 0
    %3383 = vmatpush1.bf16.msra.mxu0 0
    %3384 = vmatprep.subr.bf16.mxu0 0
    %3385 = vmatpush1.bf16.msra.mxu0 0
    %3386 = vmatprep.subr.bf16.mxu0 %v3365
    %3387 = vmatpush1.bf16.msra.mxu0 %v3364
    %3388 = vmatprep.subr.bf16.mxu0 %v3361
    %3389 = vmatpush1.bf16.msra.mxu0 %v3360
    %3390 = vmatprep.subr.bf16.mxu0 0
    %3391 = vmatpush2.bf16.msra.mxu0 0
    %3392 = vmatprep.subr.bf16.mxu0 0
    %3393 = vmatpush2.bf16.msra.mxu0 0
    %3394 = vmatprep.subr.bf16.mxu0 0
    %3395 = vmatpush2.bf16.msra.mxu0 0
    %3396 = vmatprep.subr.bf16.mxu0 0
    %3397 = vmatpush2.bf16.msra.mxu0 0
    %3398 = vmatprep.subr.bf16.mxu0 0
    %3399 = vmatpush2.bf16.msra.mxu0 0
    %3400 = vmatprep.subr.bf16.mxu0 0
    %3401 = vmatpush2.bf16.msra.mxu0 0
    %3402 = vmatprep.subr.bf16.mxu0 0
    %3403 = vmatpush2.bf16.msra.mxu0 0
    %3404 = vmatprep.subr.bf16.mxu0 0
    %3405 = vmatpush2.bf16.msra.mxu0 0
    %3406 = vmatprep.mubr.bf16.mxu0 0
    %3407 = vmatmul.mubr.bf16.gmra.mxu0 %v3369
    %v3408 = vpop.f32.mrf.mxu0
    %v3409 = vadd.f32 0.0, %v3408
    %v3410 = vpop.f32.mrf.mxu0
    %v3411 = vadd.f32 0.0, %v3410
    %v3412 = vpop.f32.mrf.mxu0
    %v3413 = vadd.f32 0.0, %v3412
    %v3414 = vpop.f32.mrf.mxu0
    %v3415 = vadd.f32 0.0, %v3414
    %3416 = vmatprep.mubr.bf16.mxu0 0
    %3417 = vmatmul.mubr.bf16.gmra.mxu0 %v3372
    %v3418 = vpop.f32.mrf.mxu0
    %v3419 = vadd.f32 0.0, %v3418
    %v3420 = vpop.f32.mrf.mxu0
    %v3421 = vadd.f32 0.0, %v3420
    %v3422 = vpop.f32.mrf.mxu0
    %v3423 = vadd.f32 0.0, %v3422
    %v3424 = vpop.f32.mrf.mxu0
    %v3425 = vadd.f32 0.0, %v3424
    %3426 = vdwg.mxu0
    %3427 = vmatprep.subr.bf16.mxu0 0
    %3428 = vmatpush1.bf16.msra.mxu0 0
    %3429 = vmatprep.subr.bf16.mxu0 0
    %3430 = vmatpush1.bf16.msra.mxu0 0
    %3431 = vmatprep.subr.bf16.mxu0 0
    %3432 = vmatpush1.bf16.msra.mxu0 0
    %3433 = vmatprep.subr.bf16.mxu0 0
    %3434 = vmatpush1.bf16.msra.mxu0 0
    %3435 = vmatprep.subr.bf16.mxu0 0
    %3436 = vmatpush1.bf16.msra.mxu0 0
    %3437 = vmatprep.subr.bf16.mxu0 0
    %3438 = vmatpush1.bf16.msra.mxu0 0
    %3439 = vmatprep.subr.bf16.mxu0 %v3367
    %3440 = vmatpush1.bf16.msra.mxu0 %v3366
    %3441 = vmatprep.subr.bf16.mxu0 %v3363
    %3442 = vmatpush1.bf16.msra.mxu0 %v3362
    %3443 = vmatprep.subr.bf16.mxu0 0
    %3444 = vmatpush2.bf16.msra.mxu0 0
    %3445 = vmatprep.subr.bf16.mxu0 0
    %3446 = vmatpush2.bf16.msra.mxu0 0
    %3447 = vmatprep.subr.bf16.mxu0 0
    %3448 = vmatpush2.bf16.msra.mxu0 0
    %3449 = vmatprep.subr.bf16.mxu0 0
    %3450 = vmatpush2.bf16.msra.mxu0 0
    %3451 = vmatprep.subr.bf16.mxu0 0
    %3452 = vmatpush2.bf16.msra.mxu0 0
    %3453 = vmatprep.subr.bf16.mxu0 0
    %3454 = vmatpush2.bf16.msra.mxu0 0
    %3455 = vmatprep.subr.bf16.mxu0 0
    %3456 = vmatpush2.bf16.msra.mxu0 0
    %3457 = vmatprep.subr.bf16.mxu0 0
    %3458 = vmatpush2.bf16.msra.mxu0 0
    %3459 = vmatprep.mubr.bf16.mxu0 0
    %3460 = vmatmul.mubr.bf16.gmra.mxu0 %v3369
    %v3461 = vpop.f32.mrf.mxu0
    %v3462 = vadd.f32 0.0, %v3461
    %v3463 = vpop.f32.mrf.mxu0
    %v3464 = vadd.f32 0.0, %v3463
    %v3465 = vpop.f32.mrf.mxu0
    %v3466 = vadd.f32 0.0, %v3465
    %v3467 = vpop.f32.mrf.mxu0
    %v3468 = vadd.f32 0.0, %v3467
    %3469 = vmatprep.mubr.bf16.mxu0 0
    %3470 = vmatmul.mubr.bf16.gmra.mxu0 %v3372
    %v3471 = vpop.f32.mrf.mxu0
    %v3472 = vadd.f32 0.0, %v3471
    %v3473 = vpop.f32.mrf.mxu0
    %v3474 = vadd.f32 0.0, %v3473
    %v3475 = vpop.f32.mrf.mxu0
    %v3476 = vadd.f32 0.0, %v3475
    %v3477 = vpop.f32.mrf.mxu0
    %v3478 = vadd.f32 0.0, %v3477
    %3479 = vdwg.mxu0
    %v3480 = vld [vmem:[%s1310] sm:$0xf]
    %v3482 = vlaneseq
    %v3483 = vshrl.u32 %v3482, 7
    %v3484 = vsub.s32 0, %v3483
    %v3485 = vrot.slane %v3480, %v3484
    %v3486 = vlaneseq
    %v3487 = vshrl.u32 %v3486, 7
    %v3488 = vsub.s32 1, %v3487
    %v3489 = vrot.slane %v3480, %v3488
    %v3490 = vlaneseq
    %v3491 = vshrl.u32 %v3490, 7
    %v3492 = vsub.s32 2, %v3491
    %v3493 = vrot.slane %v3480, %v3492
    %v3494 = vlaneseq
    %v3495 = vshrl.u32 %v3494, 7
    %v3496 = vsub.s32 3, %v3495
    %v3497 = vrot.slane %v3480, %v3496
    %v3502 = vmul.f32 %v3409, %v3485
    %v3503 = vmul.f32 %v3411, %v3489
    %v3504 = vmul.f32 %v3462, %v3493
    %v3505 = vmul.f32 %v3464, %v3497
    %v3506 = vmul.f32 %v3413, %v3485
    %v3507 = vmul.f32 %v3415, %v3489
    %v3508 = vmul.f32 %v3466, %v3493
    %v3509 = vmul.f32 %v3468, %v3497
    %v3510 = vmul.f32 %v3419, %v3485
    %v3511 = vmul.f32 %v3421, %v3489
    %v3512 = vmul.f32 %v3472, %v3493
    %v3513 = vmul.f32 %v3474, %v3497
    %v3514 = vmul.f32 %v3423, %v3485
    %v3515 = vmul.f32 %v3425, %v3489
    %v3516 = vmul.f32 %v3476, %v3493
    %v3517 = vmul.f32 %v3478, %v3497
    %v3518 = vadd.f32 %v3289, %v3502
    %v3519 = vadd.f32 %v3290, %v3503
    %v3520 = vadd.f32 %v3291, %v3504
    %v3521 = vadd.f32 %v3292, %v3505
    %v3522 = vadd.f32 %v3293, %v3506
    %v3523 = vadd.f32 %v3294, %v3507
    %v3524 = vadd.f32 %v3295, %v3508
    %v3525 = vadd.f32 %v3296, %v3509
    %v3526 = vadd.f32 %v3297, %v3510
    %v3527 = vadd.f32 %v3298, %v3511
    %v3528 = vadd.f32 %v3299, %v3512
    %v3529 = vadd.f32 %v3300, %v3513
    %v3530 = vadd.f32 %v3301, %v3514
    %v3531 = vadd.f32 %v3302, %v3515
    %v3532 = vadd.f32 %v3303, %v3516
    %v3533 = vadd.f32 %v3304, %v3517
    %3534 = vrot.lane.b32.xlu0 %v2262, 113
    %v3535 = vpop.permute.xlu0 %3534
    %3536 = vrot.lane.b32.xlu0 %v2266, 113
    %v3537 = vpop.permute.xlu0 %3536
    %3538 = vrot.lane.b32.xlu0 %v2270, 113
    %v3539 = vpop.permute.xlu0 %3538
    %3540 = vrot.lane.b32.xlu0 %v2274, 113
    %v3541 = vpop.permute.xlu0 %3540
    %3542 = vrot.lane.b32.xlu0 %v2263, 113
    %v3543 = vpop.permute.xlu0 %3542
    %3544 = vrot.lane.b32.xlu0 %v2267, 113
    %v3545 = vpop.permute.xlu0 %3544
    %3546 = vrot.lane.b32.xlu0 %v2271, 113
    %v3547 = vpop.permute.xlu0 %3546
    %3548 = vrot.lane.b32.xlu0 %v2275, 113
    %v3549 = vpop.permute.xlu0 %3548
    %3550 = vrot.lane.b32.xlu0 %v2264, 113
    %v3551 = vpop.permute.xlu0 %3550
    %3552 = vrot.lane.b32.xlu0 %v2268, 113
    %v3553 = vpop.permute.xlu0 %3552
    %3554 = vrot.lane.b32.xlu0 %v2272, 113
    %v3555 = vpop.permute.xlu0 %3554
    %3556 = vrot.lane.b32.xlu0 %v2276, 113
    %v3557 = vpop.permute.xlu0 %3556
    %3558 = vrot.lane.b32.xlu0 %v2265, 113
    %v3559 = vpop.permute.xlu0 %3558
    %3560 = vrot.lane.b32.xlu0 %v2269, 113
    %v3561 = vpop.permute.xlu0 %3560
    %3562 = vrot.lane.b32.xlu0 %v2273, 113
    %v3563 = vpop.permute.xlu0 %3562
    %3564 = vrot.lane.b32.xlu0 %v2277, 113
    %v3565 = vpop.permute.xlu0 %3564
    %v3566 = vsel %vm1397, %v3551, %v3559
    %v3567 = vsel %vm1397, %v3553, %v3561
    %v3568 = vsel %vm1397, %v3555, %v3563
    %v3569 = vsel %vm1397, %v3557, %v3565
    %v3570 = vsel %vm1397, %v3543, %v3551
    %v3571 = vsel %vm1397, %v3545, %v3553
    %v3572 = vsel %vm1397, %v3547, %v3555
    %v3573 = vsel %vm1397, %v3549, %v3557
    %v3574 = vsel %vm1397, %v3535, %v3543
    %v3575 = vsel %vm1397, %v3537, %v3545
    %v3576 = vsel %vm1397, %v3539, %v3547
    %v3577 = vsel %vm1397, %v3541, %v3549
    %v3578 = vsel %vm1397, %v3559, %v3535
    %v3579 = vsel %vm1397, %v3561, %v3537
    %v3580 = vsel %vm1397, %v3563, %v3539
    %v3581 = vsel %vm1397, %v3565, %v3541
    %s3582 = scalar_lea.vmem %s2, 480
    %v3583 = vld [vmem:[%s3582] sm:$0xff]
    %v3584 = vld [vmem:[%s3582 + $0x8] sm:$0xff]
    %v3585 = vld [vmem:[%s3582 + $0x10] sm:$0xff]
    %v3586 = vld [vmem:[%s3582 + $0x18] sm:$0xff]
    %v3587 = vpack.c.bf16 %v3584, %v3583
    %v3588 = vpack.c.bf16 %v3586, %v3585
    %v3589 = vpack.c.bf16 %v3575, %v3574
    %v3590 = vpack.c.bf16 %v3571, %v3570
    %v3591 = vpack.c.bf16 %v3567, %v3566
    %v3592 = vpack.c.bf16 %v3579, %v3578
    %v3593 = vpack.c.bf16 %v3577, %v3576
    %v3594 = vpack.c.bf16 %v3573, %v3572
    %v3595 = vpack.c.bf16 %v3569, %v3568
    %v3596 = vpack.c.bf16 %v3581, %v3580
    %v3598 = vsel %vm178, %v3587, 0
    %v3601 = vsel %vm178, %v3588, 0
    %3603 = vmatprep.subr.bf16.mxu0 0
    %3604 = vmatpush1.bf16.msra.mxu0 0
    %3605 = vmatprep.subr.bf16.mxu0 0
    %3606 = vmatpush1.bf16.msra.mxu0 0
    %3607 = vmatprep.subr.bf16.mxu0 0
    %3608 = vmatpush1.bf16.msra.mxu0 0
    %3609 = vmatprep.subr.bf16.mxu0 0
    %3610 = vmatpush1.bf16.msra.mxu0 0
    %3611 = vmatprep.subr.bf16.mxu0 0
    %3612 = vmatpush1.bf16.msra.mxu0 0
    %3613 = vmatprep.subr.bf16.mxu0 0
    %3614 = vmatpush1.bf16.msra.mxu0 0
    %3615 = vmatprep.subr.bf16.mxu0 %v3594
    %3616 = vmatpush1.bf16.msra.mxu0 %v3593
    %3617 = vmatprep.subr.bf16.mxu0 %v3590
    %3618 = vmatpush1.bf16.msra.mxu0 %v3589
    %3619 = vmatprep.subr.bf16.mxu0 0
    %3620 = vmatpush2.bf16.msra.mxu0 0
    %3621 = vmatprep.subr.bf16.mxu0 0
    %3622 = vmatpush2.bf16.msra.mxu0 0
    %3623 = vmatprep.subr.bf16.mxu0 0
    %3624 = vmatpush2.bf16.msra.mxu0 0
    %3625 = vmatprep.subr.bf16.mxu0 0
    %3626 = vmatpush2.bf16.msra.mxu0 0
    %3627 = vmatprep.subr.bf16.mxu0 0
    %3628 = vmatpush2.bf16.msra.mxu0 0
    %3629 = vmatprep.subr.bf16.mxu0 0
    %3630 = vmatpush2.bf16.msra.mxu0 0
    %3631 = vmatprep.subr.bf16.mxu0 0
    %3632 = vmatpush2.bf16.msra.mxu0 0
    %3633 = vmatprep.subr.bf16.mxu0 0
    %3634 = vmatpush2.bf16.msra.mxu0 0
    %3635 = vmatprep.mubr.bf16.mxu0 0
    %3636 = vmatmul.mubr.bf16.gmra.mxu0 %v3598
    %v3637 = vpop.f32.mrf.mxu0
    %v3638 = vadd.f32 0.0, %v3637
    %v3639 = vpop.f32.mrf.mxu0
    %v3640 = vadd.f32 0.0, %v3639
    %v3641 = vpop.f32.mrf.mxu0
    %v3642 = vadd.f32 0.0, %v3641
    %v3643 = vpop.f32.mrf.mxu0
    %v3644 = vadd.f32 0.0, %v3643
    %3645 = vmatprep.mubr.bf16.mxu0 0
    %3646 = vmatmul.mubr.bf16.gmra.mxu0 %v3601
    %v3647 = vpop.f32.mrf.mxu0
    %v3648 = vadd.f32 0.0, %v3647
    %v3649 = vpop.f32.mrf.mxu0
    %v3650 = vadd.f32 0.0, %v3649
    %v3651 = vpop.f32.mrf.mxu0
    %v3652 = vadd.f32 0.0, %v3651
    %v3653 = vpop.f32.mrf.mxu0
    %v3654 = vadd.f32 0.0, %v3653
    %3655 = vdwg.mxu0
    %3656 = vmatprep.subr.bf16.mxu0 0
    %3657 = vmatpush1.bf16.msra.mxu0 0
    %3658 = vmatprep.subr.bf16.mxu0 0
    %3659 = vmatpush1.bf16.msra.mxu0 0
    %3660 = vmatprep.subr.bf16.mxu0 0
    %3661 = vmatpush1.bf16.msra.mxu0 0
    %3662 = vmatprep.subr.bf16.mxu0 0
    %3663 = vmatpush1.bf16.msra.mxu0 0
    %3664 = vmatprep.subr.bf16.mxu0 0
    %3665 = vmatpush1.bf16.msra.mxu0 0
    %3666 = vmatprep.subr.bf16.mxu0 0
    %3667 = vmatpush1.bf16.msra.mxu0 0
    %3668 = vmatprep.subr.bf16.mxu0 %v3596
    %3669 = vmatpush1.bf16.msra.mxu0 %v3595
    %3670 = vmatprep.subr.bf16.mxu0 %v3592
    %3671 = vmatpush1.bf16.msra.mxu0 %v3591
    %3672 = vmatprep.subr.bf16.mxu0 0
    %3673 = vmatpush2.bf16.msra.mxu0 0
    %3674 = vmatprep.subr.bf16.mxu0 0
    %3675 = vmatpush2.bf16.msra.mxu0 0
    %3676 = vmatprep.subr.bf16.mxu0 0
    %3677 = vmatpush2.bf16.msra.mxu0 0
    %3678 = vmatprep.subr.bf16.mxu0 0
    %3679 = vmatpush2.bf16.msra.mxu0 0
    %3680 = vmatprep.subr.bf16.mxu0 0
    %3681 = vmatpush2.bf16.msra.mxu0 0
    %3682 = vmatprep.subr.bf16.mxu0 0
    %3683 = vmatpush2.bf16.msra.mxu0 0
    %3684 = vmatprep.subr.bf16.mxu0 0
    %3685 = vmatpush2.bf16.msra.mxu0 0
    %3686 = vmatprep.subr.bf16.mxu0 0
    %3687 = vmatpush2.bf16.msra.mxu0 0
    %3688 = vmatprep.mubr.bf16.mxu0 0
    %3689 = vmatmul.mubr.bf16.gmra.mxu0 %v3598
    %v3690 = vpop.f32.mrf.mxu0
    %v3691 = vadd.f32 0.0, %v3690
    %v3692 = vpop.f32.mrf.mxu0
    %v3693 = vadd.f32 0.0, %v3692
    %v3694 = vpop.f32.mrf.mxu0
    %v3695 = vadd.f32 0.0, %v3694
    %v3696 = vpop.f32.mrf.mxu0
    %v3697 = vadd.f32 0.0, %v3696
    %3698 = vmatprep.mubr.bf16.mxu0 0
    %3699 = vmatmul.mubr.bf16.gmra.mxu0 %v3601
    %v3700 = vpop.f32.mrf.mxu0
    %v3701 = vadd.f32 0.0, %v3700
    %v3702 = vpop.f32.mrf.mxu0
    %v3703 = vadd.f32 0.0, %v3702
    %v3704 = vpop.f32.mrf.mxu0
    %v3705 = vadd.f32 0.0, %v3704
    %v3706 = vpop.f32.mrf.mxu0
    %v3707 = vadd.f32 0.0, %v3706
    %3708 = vdwg.mxu0
    %v3709 = vld [vmem:[%s1541] sm:$0xf]
    %v3711 = vlaneseq
    %v3712 = vshrl.u32 %v3711, 7
    %v3713 = vsub.s32 0, %v3712
    %v3714 = vrot.slane %v3709, %v3713
    %v3715 = vlaneseq
    %v3716 = vshrl.u32 %v3715, 7
    %v3717 = vsub.s32 1, %v3716
    %v3718 = vrot.slane %v3709, %v3717
    %v3719 = vlaneseq
    %v3720 = vshrl.u32 %v3719, 7
    %v3721 = vsub.s32 2, %v3720
    %v3722 = vrot.slane %v3709, %v3721
    %v3723 = vlaneseq
    %v3724 = vshrl.u32 %v3723, 7
    %v3725 = vsub.s32 3, %v3724
    %v3726 = vrot.slane %v3709, %v3725
    %v3731 = vmul.f32 %v3638, %v3714
    %v3732 = vmul.f32 %v3640, %v3718
    %v3733 = vmul.f32 %v3691, %v3722
    %v3734 = vmul.f32 %v3693, %v3726
    %v3735 = vmul.f32 %v3642, %v3714
    %v3736 = vmul.f32 %v3644, %v3718
    %v3737 = vmul.f32 %v3695, %v3722
    %v3738 = vmul.f32 %v3697, %v3726
    %v3739 = vmul.f32 %v3648, %v3714
    %v3740 = vmul.f32 %v3650, %v3718
    %v3741 = vmul.f32 %v3701, %v3722
    %v3742 = vmul.f32 %v3703, %v3726
    %v3743 = vmul.f32 %v3652, %v3714
    %v3744 = vmul.f32 %v3654, %v3718
    %v3745 = vmul.f32 %v3705, %v3722
    %v3746 = vmul.f32 %v3707, %v3726
    %v3747 = vadd.f32 %v3518, %v3731
    %v3748 = vadd.f32 %v3519, %v3732
    %v3749 = vadd.f32 %v3520, %v3733
    %v3750 = vadd.f32 %v3521, %v3734
    %v3751 = vadd.f32 %v3522, %v3735
    %v3752 = vadd.f32 %v3523, %v3736
    %v3753 = vadd.f32 %v3524, %v3737
    %v3754 = vadd.f32 %v3525, %v3738
    %v3755 = vadd.f32 %v3526, %v3739
    %v3756 = vadd.f32 %v3527, %v3740
    %v3757 = vadd.f32 %v3528, %v3741
    %v3758 = vadd.f32 %v3529, %v3742
    %v3759 = vadd.f32 %v3530, %v3743
    %v3760 = vadd.f32 %v3531, %v3744
    %v3761 = vadd.f32 %v3532, %v3745
    %v3762 = vadd.f32 %v3533, %v3746
    %3763 = vrot.lane.b32.xlu0 %v2262, 112
    %v3764 = vpop.permute.xlu0 %3763
    %3765 = vrot.lane.b32.xlu0 %v2266, 112
    %v3766 = vpop.permute.xlu0 %3765
    %3767 = vrot.lane.b32.xlu0 %v2270, 112
    %v3768 = vpop.permute.xlu0 %3767
    %3769 = vrot.lane.b32.xlu0 %v2274, 112
    %v3770 = vpop.permute.xlu0 %3769
    %3771 = vrot.lane.b32.xlu0 %v2263, 112
    %v3772 = vpop.permute.xlu0 %3771
    %3773 = vrot.lane.b32.xlu0 %v2267, 112
    %v3774 = vpop.permute.xlu0 %3773
    %3775 = vrot.lane.b32.xlu0 %v2271, 112
    %v3776 = vpop.permute.xlu0 %3775
    %3777 = vrot.lane.b32.xlu0 %v2275, 112
    %v3778 = vpop.permute.xlu0 %3777
    %3779 = vrot.lane.b32.xlu0 %v2264, 112
    %v3780 = vpop.permute.xlu0 %3779
    %3781 = vrot.lane.b32.xlu0 %v2268, 112
    %v3782 = vpop.permute.xlu0 %3781
    %3783 = vrot.lane.b32.xlu0 %v2272, 112
    %v3784 = vpop.permute.xlu0 %3783
    %3785 = vrot.lane.b32.xlu0 %v2276, 112
    %v3786 = vpop.permute.xlu0 %3785
    %3787 = vrot.lane.b32.xlu0 %v2265, 112
    %v3788 = vpop.permute.xlu0 %3787
    %3789 = vrot.lane.b32.xlu0 %v2269, 112
    %v3790 = vpop.permute.xlu0 %3789
    %3791 = vrot.lane.b32.xlu0 %v2273, 112
    %v3792 = vpop.permute.xlu0 %3791
    %3793 = vrot.lane.b32.xlu0 %v2277, 112
    %v3794 = vpop.permute.xlu0 %3793
    %v3795 = vsel %vm1628, %v3780, %v3788
    %v3796 = vsel %vm1628, %v3782, %v3790
    %v3797 = vsel %vm1628, %v3784, %v3792
    %v3798 = vsel %vm1628, %v3786, %v3794
    %v3799 = vsel %vm1628, %v3772, %v3780
    %v3800 = vsel %vm1628, %v3774, %v3782
    %v3801 = vsel %vm1628, %v3776, %v3784
    %v3802 = vsel %vm1628, %v3778, %v3786
    %v3803 = vsel %vm1628, %v3764, %v3772
    %v3804 = vsel %vm1628, %v3766, %v3774
    %v3805 = vsel %vm1628, %v3768, %v3776
    %v3806 = vsel %vm1628, %v3770, %v3778
    %v3807 = vsel %vm1628, %v3788, %v3764
    %v3808 = vsel %vm1628, %v3790, %v3766
    %v3809 = vsel %vm1628, %v3792, %v3768
    %v3810 = vsel %vm1628, %v3794, %v3770
    %s3811 = scalar_lea.vmem %s2, 512
    %v3812 = vld [vmem:[%s3811] sm:$0xff]
    %v3813 = vld [vmem:[%s3811 + $0x8] sm:$0xff]
    %v3814 = vld [vmem:[%s3811 + $0x10] sm:$0xff]
    %v3815 = vld [vmem:[%s3811 + $0x18] sm:$0xff]
    %v3816 = vpack.c.bf16 %v3813, %v3812
    %v3817 = vpack.c.bf16 %v3815, %v3814
    %v3818 = vpack.c.bf16 %v3804, %v3803
    %v3819 = vpack.c.bf16 %v3800, %v3799
    %v3820 = vpack.c.bf16 %v3796, %v3795
    %v3821 = vpack.c.bf16 %v3808, %v3807
    %v3822 = vpack.c.bf16 %v3806, %v3805
    %v3823 = vpack.c.bf16 %v3802, %v3801
    %v3824 = vpack.c.bf16 %v3798, %v3797
    %v3825 = vpack.c.bf16 %v3810, %v3809
    %v3827 = vsel %vm178, %v3816, 0
    %v3830 = vsel %vm178, %v3817, 0
    %3832 = vmatprep.subr.bf16.mxu0 0
    %3833 = vmatpush1.bf16.msra.mxu0 0
    %3834 = vmatprep.subr.bf16.mxu0 0
    %3835 = vmatpush1.bf16.msra.mxu0 0
    %3836 = vmatprep.subr.bf16.mxu0 0
    %3837 = vmatpush1.bf16.msra.mxu0 0
    %3838 = vmatprep.subr.bf16.mxu0 0
    %3839 = vmatpush1.bf16.msra.mxu0 0
    %3840 = vmatprep.subr.bf16.mxu0 0
    %3841 = vmatpush1.bf16.msra.mxu0 0
    %3842 = vmatprep.subr.bf16.mxu0 0
    %3843 = vmatpush1.bf16.msra.mxu0 0
    %3844 = vmatprep.subr.bf16.mxu0 %v3823
    %3845 = vmatpush1.bf16.msra.mxu0 %v3822
    %3846 = vmatprep.subr.bf16.mxu0 %v3819
    %3847 = vmatpush1.bf16.msra.mxu0 %v3818
    %3848 = vmatprep.subr.bf16.mxu0 0
    %3849 = vmatpush2.bf16.msra.mxu0 0
    %3850 = vmatprep.subr.bf16.mxu0 0
    %3851 = vmatpush2.bf16.msra.mxu0 0
    %3852 = vmatprep.subr.bf16.mxu0 0
    %3853 = vmatpush2.bf16.msra.mxu0 0
    %3854 = vmatprep.subr.bf16.mxu0 0
    %3855 = vmatpush2.bf16.msra.mxu0 0
    %3856 = vmatprep.subr.bf16.mxu0 0
    %3857 = vmatpush2.bf16.msra.mxu0 0
    %3858 = vmatprep.subr.bf16.mxu0 0
    %3859 = vmatpush2.bf16.msra.mxu0 0
    %3860 = vmatprep.subr.bf16.mxu0 0
    %3861 = vmatpush2.bf16.msra.mxu0 0
    %3862 = vmatprep.subr.bf16.mxu0 0
    %3863 = vmatpush2.bf16.msra.mxu0 0
    %3864 = vmatprep.mubr.bf16.mxu0 0
    %3865 = vmatmul.mubr.bf16.gmra.mxu0 %v3827
    %v3866 = vpop.f32.mrf.mxu0
    %v3867 = vadd.f32 0.0, %v3866
    %v3868 = vpop.f32.mrf.mxu0
    %v3869 = vadd.f32 0.0, %v3868
    %v3870 = vpop.f32.mrf.mxu0
    %v3871 = vadd.f32 0.0, %v3870
    %v3872 = vpop.f32.mrf.mxu0
    %v3873 = vadd.f32 0.0, %v3872
    %3874 = vmatprep.mubr.bf16.mxu0 0
    %3875 = vmatmul.mubr.bf16.gmra.mxu0 %v3830
    %v3876 = vpop.f32.mrf.mxu0
    %v3877 = vadd.f32 0.0, %v3876
    %v3878 = vpop.f32.mrf.mxu0
    %v3879 = vadd.f32 0.0, %v3878
    %v3880 = vpop.f32.mrf.mxu0
    %v3881 = vadd.f32 0.0, %v3880
    %v3882 = vpop.f32.mrf.mxu0
    %v3883 = vadd.f32 0.0, %v3882
    %3884 = vdwg.mxu0
    %3885 = vmatprep.subr.bf16.mxu0 0
    %3886 = vmatpush1.bf16.msra.mxu0 0
    %3887 = vmatprep.subr.bf16.mxu0 0
    %3888 = vmatpush1.bf16.msra.mxu0 0
    %3889 = vmatprep.subr.bf16.mxu0 0
    %3890 = vmatpush1.bf16.msra.mxu0 0
    %3891 = vmatprep.subr.bf16.mxu0 0
    %3892 = vmatpush1.bf16.msra.mxu0 0
    %3893 = vmatprep.subr.bf16.mxu0 0
    %3894 = vmatpush1.bf16.msra.mxu0 0
    %3895 = vmatprep.subr.bf16.mxu0 0
    %3896 = vmatpush1.bf16.msra.mxu0 0
    %3897 = vmatprep.subr.bf16.mxu0 %v3825
    %3898 = vmatpush1.bf16.msra.mxu0 %v3824
    %3899 = vmatprep.subr.bf16.mxu0 %v3821
    %3900 = vmatpush1.bf16.msra.mxu0 %v3820
    %3901 = vmatprep.subr.bf16.mxu0 0
    %3902 = vmatpush2.bf16.msra.mxu0 0
    %3903 = vmatprep.subr.bf16.mxu0 0
    %3904 = vmatpush2.bf16.msra.mxu0 0
    %3905 = vmatprep.subr.bf16.mxu0 0
    %3906 = vmatpush2.bf16.msra.mxu0 0
    %3907 = vmatprep.subr.bf16.mxu0 0
    %3908 = vmatpush2.bf16.msra.mxu0 0
    %3909 = vmatprep.subr.bf16.mxu0 0
    %3910 = vmatpush2.bf16.msra.mxu0 0
    %3911 = vmatprep.subr.bf16.mxu0 0
    %3912 = vmatpush2.bf16.msra.mxu0 0
    %3913 = vmatprep.subr.bf16.mxu0 0
    %3914 = vmatpush2.bf16.msra.mxu0 0
    %3915 = vmatprep.subr.bf16.mxu0 0
    %3916 = vmatpush2.bf16.msra.mxu0 0
    %3917 = vmatprep.mubr.bf16.mxu0 0
    %3918 = vmatmul.mubr.bf16.gmra.mxu0 %v3827
    %v3919 = vpop.f32.mrf.mxu0
    %v3920 = vadd.f32 0.0, %v3919
    %v3921 = vpop.f32.mrf.mxu0
    %v3922 = vadd.f32 0.0, %v3921
    %v3923 = vpop.f32.mrf.mxu0
    %v3924 = vadd.f32 0.0, %v3923
    %v3925 = vpop.f32.mrf.mxu0
    %v3926 = vadd.f32 0.0, %v3925
    %3927 = vmatprep.mubr.bf16.mxu0 0
    %3928 = vmatmul.mubr.bf16.gmra.mxu0 %v3830
    %v3929 = vpop.f32.mrf.mxu0
    %v3930 = vadd.f32 0.0, %v3929
    %v3931 = vpop.f32.mrf.mxu0
    %v3932 = vadd.f32 0.0, %v3931
    %v3933 = vpop.f32.mrf.mxu0
    %v3934 = vadd.f32 0.0, %v3933
    %v3935 = vpop.f32.mrf.mxu0
    %v3936 = vadd.f32 0.0, %v3935
    %3937 = vdwg.mxu0
    %v3938 = vld [vmem:[%s1772] sm:$0xf]
    %v3940 = vlaneseq
    %v3941 = vshrl.u32 %v3940, 7
    %v3942 = vsub.s32 0, %v3941
    %v3943 = vrot.slane %v3938, %v3942
    %v3944 = vlaneseq
    %v3945 = vshrl.u32 %v3944, 7
    %v3946 = vsub.s32 1, %v3945
    %v3947 = vrot.slane %v3938, %v3946
    %v3948 = vlaneseq
    %v3949 = vshrl.u32 %v3948, 7
    %v3950 = vsub.s32 2, %v3949
    %v3951 = vrot.slane %v3938, %v3950
    %v3952 = vlaneseq
    %v3953 = vshrl.u32 %v3952, 7
    %v3954 = vsub.s32 3, %v3953
    %v3955 = vrot.slane %v3938, %v3954
    %v3960 = vmul.f32 %v3867, %v3943
    %v3961 = vmul.f32 %v3869, %v3947
    %v3962 = vmul.f32 %v3920, %v3951
    %v3963 = vmul.f32 %v3922, %v3955
    %v3964 = vmul.f32 %v3871, %v3943
    %v3965 = vmul.f32 %v3873, %v3947
    %v3966 = vmul.f32 %v3924, %v3951
    %v3967 = vmul.f32 %v3926, %v3955
    %v3968 = vmul.f32 %v3877, %v3943
    %v3969 = vmul.f32 %v3879, %v3947
    %v3970 = vmul.f32 %v3930, %v3951
    %v3971 = vmul.f32 %v3932, %v3955
    %v3972 = vmul.f32 %v3881, %v3943
    %v3973 = vmul.f32 %v3883, %v3947
    %v3974 = vmul.f32 %v3934, %v3951
    %v3975 = vmul.f32 %v3936, %v3955
    %v3976 = vadd.f32 %v3747, %v3960
    %v3977 = vadd.f32 %v3748, %v3961
    %v3978 = vadd.f32 %v3749, %v3962
    %v3979 = vadd.f32 %v3750, %v3963
    %v3980 = vadd.f32 %v3751, %v3964
    %v3981 = vadd.f32 %v3752, %v3965
    %v3982 = vadd.f32 %v3753, %v3966
    %v3983 = vadd.f32 %v3754, %v3967
    %v3984 = vadd.f32 %v3755, %v3968
    %v3985 = vadd.f32 %v3756, %v3969
    %v3986 = vadd.f32 %v3757, %v3970
    %v3987 = vadd.f32 %v3758, %v3971
    %v3988 = vadd.f32 %v3759, %v3972
    %v3989 = vadd.f32 %v3760, %v3973
    %v3990 = vadd.f32 %v3761, %v3974
    %v3991 = vadd.f32 %v3762, %v3975
    %3992 = vrot.lane.b32.xlu0 %v2262, 111
    %v3993 = vpop.permute.xlu0 %3992
    %3994 = vrot.lane.b32.xlu0 %v2266, 111
    %v3995 = vpop.permute.xlu0 %3994
    %3996 = vrot.lane.b32.xlu0 %v2270, 111
    %v3997 = vpop.permute.xlu0 %3996
    %3998 = vrot.lane.b32.xlu0 %v2274, 111
    %v3999 = vpop.permute.xlu0 %3998
    %4000 = vrot.lane.b32.xlu0 %v2263, 111
    %v4001 = vpop.permute.xlu0 %4000
    %4002 = vrot.lane.b32.xlu0 %v2267, 111
    %v4003 = vpop.permute.xlu0 %4002
    %4004 = vrot.lane.b32.xlu0 %v2271, 111
    %v4005 = vpop.permute.xlu0 %4004
    %4006 = vrot.lane.b32.xlu0 %v2275, 111
    %v4007 = vpop.permute.xlu0 %4006
    %4008 = vrot.lane.b32.xlu0 %v2264, 111
    %v4009 = vpop.permute.xlu0 %4008
    %4010 = vrot.lane.b32.xlu0 %v2268, 111
    %v4011 = vpop.permute.xlu0 %4010
    %4012 = vrot.lane.b32.xlu0 %v2272, 111
    %v4013 = vpop.permute.xlu0 %4012
    %4014 = vrot.lane.b32.xlu0 %v2276, 111
    %v4015 = vpop.permute.xlu0 %4014
    %4016 = vrot.lane.b32.xlu0 %v2265, 111
    %v4017 = vpop.permute.xlu0 %4016
    %4018 = vrot.lane.b32.xlu0 %v2269, 111
    %v4019 = vpop.permute.xlu0 %4018
    %4020 = vrot.lane.b32.xlu0 %v2273, 111
    %v4021 = vpop.permute.xlu0 %4020
    %4022 = vrot.lane.b32.xlu0 %v2277, 111
    %v4023 = vpop.permute.xlu0 %4022
    %v4024 = vsel %vm1859, %v4009, %v4017
    %v4025 = vsel %vm1859, %v4011, %v4019
    %v4026 = vsel %vm1859, %v4013, %v4021
    %v4027 = vsel %vm1859, %v4015, %v4023
    %v4028 = vsel %vm1859, %v4001, %v4009
    %v4029 = vsel %vm1859, %v4003, %v4011
    %v4030 = vsel %vm1859, %v4005, %v4013
    %v4031 = vsel %vm1859, %v4007, %v4015
    %v4032 = vsel %vm1859, %v3993, %v4001
    %v4033 = vsel %vm1859, %v3995, %v4003
    %v4034 = vsel %vm1859, %v3997, %v4005
    %v4035 = vsel %vm1859, %v3999, %v4007
    %v4036 = vsel %vm1859, %v4017, %v3993
    %v4037 = vsel %vm1859, %v4019, %v3995
    %v4038 = vsel %vm1859, %v4021, %v3997
    %v4039 = vsel %vm1859, %v4023, %v3999
    %s4040 = scalar_lea.vmem %s2, 544
    %v4041 = vld [vmem:[%s4040] sm:$0xff]
    %v4042 = vld [vmem:[%s4040 + $0x8] sm:$0xff]
    %v4043 = vld [vmem:[%s4040 + $0x10] sm:$0xff]
    %v4044 = vld [vmem:[%s4040 + $0x18] sm:$0xff]
    %v4045 = vpack.c.bf16 %v4042, %v4041
    %v4046 = vpack.c.bf16 %v4044, %v4043
    %v4047 = vpack.c.bf16 %v4033, %v4032
    %v4048 = vpack.c.bf16 %v4029, %v4028
    %v4049 = vpack.c.bf16 %v4025, %v4024
    %v4050 = vpack.c.bf16 %v4037, %v4036
    %v4051 = vpack.c.bf16 %v4035, %v4034
    %v4052 = vpack.c.bf16 %v4031, %v4030
    %v4053 = vpack.c.bf16 %v4027, %v4026
    %v4054 = vpack.c.bf16 %v4039, %v4038
    %v4056 = vsel %vm178, %v4045, 0
    %v4059 = vsel %vm178, %v4046, 0
    %4061 = vmatprep.subr.bf16.mxu0 0
    %4062 = vmatpush1.bf16.msra.mxu0 0
    %4063 = vmatprep.subr.bf16.mxu0 0
    %4064 = vmatpush1.bf16.msra.mxu0 0
    %4065 = vmatprep.subr.bf16.mxu0 0
    %4066 = vmatpush1.bf16.msra.mxu0 0
    %4067 = vmatprep.subr.bf16.mxu0 0
    %4068 = vmatpush1.bf16.msra.mxu0 0
    %4069 = vmatprep.subr.bf16.mxu0 0
    %4070 = vmatpush1.bf16.msra.mxu0 0
    %4071 = vmatprep.subr.bf16.mxu0 0
    %4072 = vmatpush1.bf16.msra.mxu0 0
    %4073 = vmatprep.subr.bf16.mxu0 %v4052
    %4074 = vmatpush1.bf16.msra.mxu0 %v4051
    %4075 = vmatprep.subr.bf16.mxu0 %v4048
    %4076 = vmatpush1.bf16.msra.mxu0 %v4047
    %4077 = vmatprep.subr.bf16.mxu0 0
    %4078 = vmatpush2.bf16.msra.mxu0 0
    %4079 = vmatprep.subr.bf16.mxu0 0
    %4080 = vmatpush2.bf16.msra.mxu0 0
    %4081 = vmatprep.subr.bf16.mxu0 0
    %4082 = vmatpush2.bf16.msra.mxu0 0
    %4083 = vmatprep.subr.bf16.mxu0 0
    %4084 = vmatpush2.bf16.msra.mxu0 0
    %4085 = vmatprep.subr.bf16.mxu0 0
    %4086 = vmatpush2.bf16.msra.mxu0 0
    %4087 = vmatprep.subr.bf16.mxu0 0
    %4088 = vmatpush2.bf16.msra.mxu0 0
    %4089 = vmatprep.subr.bf16.mxu0 0
    %4090 = vmatpush2.bf16.msra.mxu0 0
    %4091 = vmatprep.subr.bf16.mxu0 0
    %4092 = vmatpush2.bf16.msra.mxu0 0
    %4093 = vmatprep.mubr.bf16.mxu0 0
    %4094 = vmatmul.mubr.bf16.gmra.mxu0 %v4056
    %v4095 = vpop.f32.mrf.mxu0
    %v4096 = vadd.f32 0.0, %v4095
    %v4097 = vpop.f32.mrf.mxu0
    %v4098 = vadd.f32 0.0, %v4097
    %v4099 = vpop.f32.mrf.mxu0
    %v4100 = vadd.f32 0.0, %v4099
    %v4101 = vpop.f32.mrf.mxu0
    %v4102 = vadd.f32 0.0, %v4101
    %4103 = vmatprep.mubr.bf16.mxu0 0
    %4104 = vmatmul.mubr.bf16.gmra.mxu0 %v4059
    %v4105 = vpop.f32.mrf.mxu0
    %v4106 = vadd.f32 0.0, %v4105
    %v4107 = vpop.f32.mrf.mxu0
    %v4108 = vadd.f32 0.0, %v4107
    %v4109 = vpop.f32.mrf.mxu0
    %v4110 = vadd.f32 0.0, %v4109
    %v4111 = vpop.f32.mrf.mxu0
    %v4112 = vadd.f32 0.0, %v4111
    %4113 = vdwg.mxu0
    %4114 = vmatprep.subr.bf16.mxu0 0
    %4115 = vmatpush1.bf16.msra.mxu0 0
    %4116 = vmatprep.subr.bf16.mxu0 0
    %4117 = vmatpush1.bf16.msra.mxu0 0
    %4118 = vmatprep.subr.bf16.mxu0 0
    %4119 = vmatpush1.bf16.msra.mxu0 0
    %4120 = vmatprep.subr.bf16.mxu0 0
    %4121 = vmatpush1.bf16.msra.mxu0 0
    %4122 = vmatprep.subr.bf16.mxu0 0
    %4123 = vmatpush1.bf16.msra.mxu0 0
    %4124 = vmatprep.subr.bf16.mxu0 0
    %4125 = vmatpush1.bf16.msra.mxu0 0
    %4126 = vmatprep.subr.bf16.mxu0 %v4054
    %4127 = vmatpush1.bf16.msra.mxu0 %v4053
    %4128 = vmatprep.subr.bf16.mxu0 %v4050
    %4129 = vmatpush1.bf16.msra.mxu0 %v4049
    %4130 = vmatprep.subr.bf16.mxu0 0
    %4131 = vmatpush2.bf16.msra.mxu0 0
    %4132 = vmatprep.subr.bf16.mxu0 0
    %4133 = vmatpush2.bf16.msra.mxu0 0
    %4134 = vmatprep.subr.bf16.mxu0 0
    %4135 = vmatpush2.bf16.msra.mxu0 0
    %4136 = vmatprep.subr.bf16.mxu0 0
    %4137 = vmatpush2.bf16.msra.mxu0 0
    %4138 = vmatprep.subr.bf16.mxu0 0
    %4139 = vmatpush2.bf16.msra.mxu0 0
    %4140 = vmatprep.subr.bf16.mxu0 0
    %4141 = vmatpush2.bf16.msra.mxu0 0
    %4142 = vmatprep.subr.bf16.mxu0 0
    %4143 = vmatpush2.bf16.msra.mxu0 0
    %4144 = vmatprep.subr.bf16.mxu0 0
    %4145 = vmatpush2.bf16.msra.mxu0 0
    %4146 = vmatprep.mubr.bf16.mxu0 0
    %4147 = vmatmul.mubr.bf16.gmra.mxu0 %v4056
    %v4148 = vpop.f32.mrf.mxu0
    %v4149 = vadd.f32 0.0, %v4148
    %v4150 = vpop.f32.mrf.mxu0
    %v4151 = vadd.f32 0.0, %v4150
    %v4152 = vpop.f32.mrf.mxu0
    %v4153 = vadd.f32 0.0, %v4152
    %v4154 = vpop.f32.mrf.mxu0
    %v4155 = vadd.f32 0.0, %v4154
    %4156 = vmatprep.mubr.bf16.mxu0 0
    %4157 = vmatmul.mubr.bf16.gmra.mxu0 %v4059
    %v4158 = vpop.f32.mrf.mxu0
    %v4159 = vadd.f32 0.0, %v4158
    %v4160 = vpop.f32.mrf.mxu0
    %v4161 = vadd.f32 0.0, %v4160
    %v4162 = vpop.f32.mrf.mxu0
    %v4163 = vadd.f32 0.0, %v4162
    %v4164 = vpop.f32.mrf.mxu0
    %v4165 = vadd.f32 0.0, %v4164
    %4166 = vdwg.mxu0
    %v4167 = vld [vmem:[%s2003] sm:$0xf]
    %v4169 = vlaneseq
    %v4170 = vshrl.u32 %v4169, 7
    %v4171 = vsub.s32 0, %v4170
    %v4172 = vrot.slane %v4167, %v4171
    %v4173 = vlaneseq
    %v4174 = vshrl.u32 %v4173, 7
    %v4175 = vsub.s32 1, %v4174
    %v4176 = vrot.slane %v4167, %v4175
    %v4177 = vlaneseq
    %v4178 = vshrl.u32 %v4177, 7
    %v4179 = vsub.s32 2, %v4178
    %v4180 = vrot.slane %v4167, %v4179
    %v4181 = vlaneseq
    %v4182 = vshrl.u32 %v4181, 7
    %v4183 = vsub.s32 3, %v4182
    %v4184 = vrot.slane %v4167, %v4183
    %v4189 = vmul.f32 %v4096, %v4172
    %v4190 = vmul.f32 %v4098, %v4176
    %v4191 = vmul.f32 %v4149, %v4180
    %v4192 = vmul.f32 %v4151, %v4184
    %v4193 = vmul.f32 %v4100, %v4172
    %v4194 = vmul.f32 %v4102, %v4176
    %v4195 = vmul.f32 %v4153, %v4180
    %v4196 = vmul.f32 %v4155, %v4184
    %v4197 = vmul.f32 %v4106, %v4172
    %v4198 = vmul.f32 %v4108, %v4176
    %v4199 = vmul.f32 %v4159, %v4180
    %v4200 = vmul.f32 %v4161, %v4184
    %v4201 = vmul.f32 %v4110, %v4172
    %v4202 = vmul.f32 %v4112, %v4176
    %v4203 = vmul.f32 %v4163, %v4180
    %v4204 = vmul.f32 %v4165, %v4184
    %v4205 = vadd.f32 %v3976, %v4189
    %v4206 = vadd.f32 %v3977, %v4190
    %v4207 = vadd.f32 %v3978, %v4191
    %v4208 = vadd.f32 %v3979, %v4192
    %v4209 = vadd.f32 %v3980, %v4193
    %v4210 = vadd.f32 %v3981, %v4194
    %v4211 = vadd.f32 %v3982, %v4195
    %v4212 = vadd.f32 %v3983, %v4196
    %v4213 = vadd.f32 %v3984, %v4197
    %v4214 = vadd.f32 %v3985, %v4198
    %v4215 = vadd.f32 %v3986, %v4199
    %v4216 = vadd.f32 %v3987, %v4200
    %v4217 = vadd.f32 %v3988, %v4201
    %v4218 = vadd.f32 %v3989, %v4202
    %v4219 = vadd.f32 %v3990, %v4203
    %v4220 = vadd.f32 %v3991, %v4204
    %v4221 = vadd.f32 %v4205, %v4206
    %v4222 = vadd.f32 %v4221, %v4207
    %v4223 = vadd.f32 %v4222, %v4208
    %4224 = vadd.xlane.f32.xlu0 %v4223
    %v4225 = vpop.xlane.xlu0 %4224
    %v4226 = vadd.f32 %v4209, %v4210
    %v4227 = vadd.f32 %v4226, %v4211
    %v4228 = vadd.f32 %v4227, %v4212
    %4229 = vadd.xlane.f32.xlu0 %v4228
    %v4230 = vpop.xlane.xlu0 %4229
    %v4231 = vadd.f32 %v4213, %v4214
    %v4232 = vadd.f32 %v4231, %v4215
    %v4233 = vadd.f32 %v4232, %v4216
    %4234 = vadd.xlane.f32.xlu0 %v4233
    %v4235 = vpop.xlane.xlu0 %4234
    %v4236 = vadd.f32 %v4217, %v4218
    %v4237 = vadd.f32 %v4236, %v4219
    %v4238 = vadd.f32 %v4237, %v4220
    %4239 = vadd.xlane.f32.xlu0 %v4238
    %v4240 = vpop.xlane.xlu0 %4239
    %v4241 = vmul.f32 %v4225, 0.001953125
    %v4242 = vmul.f32 %v4230, 0.001953125
    %v4243 = vmul.f32 %v4235, 0.001953125
    %v4244 = vmul.f32 %v4240, 0.001953125
    %v4245 = vsub.f32 %v4205, %v4241
    %v4246 = vsub.f32 %v4206, %v4241
    %v4247 = vsub.f32 %v4207, %v4241
    %v4248 = vsub.f32 %v4208, %v4241
    %v4249 = vsub.f32 %v4209, %v4242
    %v4250 = vsub.f32 %v4210, %v4242
    %v4251 = vsub.f32 %v4211, %v4242
    %v4252 = vsub.f32 %v4212, %v4242
    %v4253 = vsub.f32 %v4213, %v4243
    %v4254 = vsub.f32 %v4214, %v4243
    %v4255 = vsub.f32 %v4215, %v4243
    %v4256 = vsub.f32 %v4216, %v4243
    %v4257 = vsub.f32 %v4217, %v4244
    %v4258 = vsub.f32 %v4218, %v4244
    %v4259 = vsub.f32 %v4219, %v4244
    %v4260 = vsub.f32 %v4220, %v4244
    %v4261 = vmul.f32 %v4245, %v4245
    %v4262 = vmul.f32 %v4246, %v4246
    %v4263 = vmul.f32 %v4247, %v4247
    %v4264 = vmul.f32 %v4248, %v4248
    %v4265 = vmul.f32 %v4249, %v4249
    %v4266 = vmul.f32 %v4250, %v4250
    %v4267 = vmul.f32 %v4251, %v4251
    %v4268 = vmul.f32 %v4252, %v4252
    %v4269 = vmul.f32 %v4253, %v4253
    %v4270 = vmul.f32 %v4254, %v4254
    %v4271 = vmul.f32 %v4255, %v4255
    %v4272 = vmul.f32 %v4256, %v4256
    %v4273 = vmul.f32 %v4257, %v4257
    %v4274 = vmul.f32 %v4258, %v4258
    %v4275 = vmul.f32 %v4259, %v4259
    %v4276 = vmul.f32 %v4260, %v4260
    %v4277 = vadd.f32 %v4261, %v4262
    %v4278 = vadd.f32 %v4277, %v4263
    %v4279 = vadd.f32 %v4278, %v4264
    %4280 = vadd.xlane.f32.xlu0 %v4279
    %v4281 = vpop.xlane.xlu0 %4280
    %v4282 = vadd.f32 %v4265, %v4266
    %v4283 = vadd.f32 %v4282, %v4267
    %v4284 = vadd.f32 %v4283, %v4268
    %4285 = vadd.xlane.f32.xlu0 %v4284
    %v4286 = vpop.xlane.xlu0 %4285
    %v4287 = vadd.f32 %v4269, %v4270
    %v4288 = vadd.f32 %v4287, %v4271
    %v4289 = vadd.f32 %v4288, %v4272
    %4290 = vadd.xlane.f32.xlu0 %v4289
    %v4291 = vpop.xlane.xlu0 %4290
    %v4292 = vadd.f32 %v4273, %v4274
    %v4293 = vadd.f32 %v4292, %v4275
    %v4294 = vadd.f32 %v4293, %v4276
    %4295 = vadd.xlane.f32.xlu0 %v4294
    %v4296 = vpop.xlane.xlu0 %4295
    %v4297 = vmul.f32 %v4281, 0.001953125
    %v4298 = vmul.f32 %v4286, 0.001953125
    %v4299 = vmul.f32 %v4291, 0.001953125
    %v4300 = vmul.f32 %v4296, 0.001953125
    %v4301 = vadd.f32 %v4297, 1e-05
    %v4302 = vadd.f32 %v4298, 1e-05
    %v4303 = vadd.f32 %v4299, 1e-05
    %v4304 = vadd.f32 %v4300, 1e-05
    %v4305 = vrsqrt.pop %v4301
    %v4306 = vrsqrt.pop %v4302
    %v4307 = vrsqrt.pop %v4303
    %v4308 = vrsqrt.pop %v4304
    %s4309 = scalar_lea.vmem %s3, 32
    %v4310 = vld [vmem:[%s4309] sm:$0xff]
    %v4311 = vld [vmem:[%s4309 + $0x8] sm:$0xff]
    %v4312 = vld [vmem:[%s4309 + $0x10] sm:$0xff]
    %v4313 = vld [vmem:[%s4309 + $0x18] sm:$0xff]
    %v4314 = vmul.f32 %v4305, %v4310
    %v4315 = vmul.f32 %v4306, %v4311
    %v4316 = vmul.f32 %v4307, %v4312
    %v4317 = vmul.f32 %v4308, %v4313
    %4319 = vset.pattern.permute.xlu0 0
    %4320 = vperm.xlu0 %4319, %v4314
    %v4321 = vpop.permute.xlu0 %4320
    %4324 = vset.pattern.permute.xlu0 0
    %4325 = vperm.xlu0 %4324, %v4315
    %v4326 = vpop.permute.xlu0 %4325
    %4329 = vset.pattern.permute.xlu0 0
    %4330 = vperm.xlu0 %4329, %v4316
    %v4331 = vpop.permute.xlu0 %4330
    %4334 = vset.pattern.permute.xlu0 0
    %4335 = vperm.xlu0 %4334, %v4317
    %v4336 = vpop.permute.xlu0 %4335
    %v4338 = vmul.f32 %v4245, %v4321
    %v4339 = vmul.f32 %v4246, %v4321
    %v4340 = vmul.f32 %v4247, %v4321
    %v4341 = vmul.f32 %v4248, %v4321
    %v4342 = vmul.f32 %v4249, %v4326
    %v4343 = vmul.f32 %v4250, %v4326
    %v4344 = vmul.f32 %v4251, %v4326
    %v4345 = vmul.f32 %v4252, %v4326
    %v4346 = vmul.f32 %v4253, %v4331
    %v4347 = vmul.f32 %v4254, %v4331
    %v4348 = vmul.f32 %v4255, %v4331
    %v4349 = vmul.f32 %v4256, %v4331
    %v4350 = vmul.f32 %v4257, %v4336
    %v4351 = vmul.f32 %v4258, %v4336
    %v4352 = vmul.f32 %v4259, %v4336
    %v4353 = vmul.f32 %v4260, %v4336
    %s4354 = scalar_lea.vmem %s4, 32
    %v4355 = vld [vmem:[%s4354] sm:$0xff]
    %v4356 = vld [vmem:[%s4354 + $0x8] sm:$0xff]
    %v4357 = vld [vmem:[%s4354 + $0x10] sm:$0xff]
    %v4358 = vld [vmem:[%s4354 + $0x18] sm:$0xff]
    %4360 = vset.pattern.permute.xlu0 0
    %4361 = vperm.xlu0 %4360, %v4355
    %v4362 = vpop.permute.xlu0 %4361
    %4365 = vset.pattern.permute.xlu0 0
    %4366 = vperm.xlu0 %4365, %v4356
    %v4367 = vpop.permute.xlu0 %4366
    %4370 = vset.pattern.permute.xlu0 0
    %4371 = vperm.xlu0 %4370, %v4357
    %v4372 = vpop.permute.xlu0 %4371
    %4375 = vset.pattern.permute.xlu0 0
    %4376 = vperm.xlu0 %4375, %v4358
    %v4377 = vpop.permute.xlu0 %4376
    %v4379 = vadd.f32 %v4338, %v4362
    %v4380 = vadd.f32 %v4339, %v4362
    %v4381 = vadd.f32 %v4340, %v4362
    %v4382 = vadd.f32 %v4341, %v4362
    %v4383 = vadd.f32 %v4342, %v4367
    %v4384 = vadd.f32 %v4343, %v4367
    %v4385 = vadd.f32 %v4344, %v4367
    %v4386 = vadd.f32 %v4345, %v4367
    %v4387 = vadd.f32 %v4346, %v4372
    %v4388 = vadd.f32 %v4347, %v4372
    %v4389 = vadd.f32 %v4348, %v4372
    %v4390 = vadd.f32 %v4349, %v4372
    %v4391 = vadd.f32 %v4350, %v4377
    %v4392 = vadd.f32 %v4351, %v4377
    %v4393 = vadd.f32 %v4352, %v4377
    %v4394 = vadd.f32 %v4353, %v4377
    %v4395 = vmax.f32 %v4379, 0.0
    %v4396 = vmax.f32 %v4380, 0.0
    %v4397 = vmax.f32 %v4381, 0.0
    %v4398 = vmax.f32 %v4382, 0.0
    %v4399 = vmax.f32 %v4383, 0.0
    %v4400 = vmax.f32 %v4384, 0.0
    %v4401 = vmax.f32 %v4385, 0.0
    %v4402 = vmax.f32 %v4386, 0.0
    %v4403 = vmax.f32 %v4387, 0.0
    %v4404 = vmax.f32 %v4388, 0.0
    %v4405 = vmax.f32 %v4389, 0.0
    %v4406 = vmax.f32 %v4390, 0.0
    %v4407 = vmax.f32 %v4391, 0.0
    %v4408 = vmax.f32 %v4392, 0.0
    %v4409 = vmax.f32 %v4393, 0.0
    %v4410 = vmax.f32 %v4394, 0.0
    %4411 = vst [vmem:[#allocation2] sm:$0xff] %v4395
    %4412 = vst [vmem:[#allocation2 + $0x8] sm:$0xff] %v4396
    %4413 = vst [vmem:[#allocation2 + $0x10] sm:$0xff] %v4397
    %4414 = vst [vmem:[#allocation2 + $0x18] sm:$0xff] %v4398
    %4415 = vst [vmem:[#allocation2 + $0x20] sm:$0xff] %v4399
    %4416 = vst [vmem:[#allocation2 + $0x28] sm:$0xff] %v4400
    %4417 = vst [vmem:[#allocation2 + $0x30] sm:$0xff] %v4401
    %4418 = vst [vmem:[#allocation2 + $0x38] sm:$0xff] %v4402
    %4419 = vst [vmem:[#allocation2 + $0x40] sm:$0xff] %v4403
    %4420 = vst [vmem:[#allocation2 + $0x48] sm:$0xff] %v4404
    %4421 = vst [vmem:[#allocation2 + $0x50] sm:$0xff] %v4405
    %4422 = vst [vmem:[#allocation2 + $0x58] sm:$0xff] %v4406
    %4423 = vst [vmem:[#allocation2 + $0x60] sm:$0xff] %v4407
    %4424 = vst [vmem:[#allocation2 + $0x68] sm:$0xff] %v4408
    %4425 = vst [vmem:[#allocation2 + $0x70] sm:$0xff] %v4409
    %4426 = vst [vmem:[#allocation2 + $0x78] sm:$0xff] %v4410
    %v4427 = vld [vmem:[%s5] sm:$0x1]
    %v4428 = vpack.c.bf16 %v4427, %v4427
    %v4429 = vld [vmem:[#allocation2] sm:$0xff]
    %v4430 = vld [vmem:[#allocation2 + $0x8] sm:$0xff]
    %v4431 = vld [vmem:[#allocation2 + $0x20] sm:$0xff]
    %v4432 = vld [vmem:[#allocation2 + $0x28] sm:$0xff]
    %v4433 = vld [vmem:[#allocation2 + $0x40] sm:$0xff]
    %v4434 = vld [vmem:[#allocation2 + $0x48] sm:$0xff]
    %v4435 = vld [vmem:[#allocation2 + $0x60] sm:$0xff]
    %v4436 = vld [vmem:[#allocation2 + $0x68] sm:$0xff]
    %v4437 = vpack.c.bf16 %v4431, %v4429
    %v4438 = vpack.c.bf16 %v4432, %v4430
    %v4439 = vpack.c.bf16 %v4435, %v4433
    %v4440 = vpack.c.bf16 %v4436, %v4434
    %v4441 = vld [vmem:[#allocation4] sm:$0x1]
    %4443 = vset.pattern.permute.xlu0 0
    %4444 = vperm.xlu0 %4443, %v4441
    %v4445 = vpop.permute.xlu0 %4444
    %v4447 = vlaneseq
    %v4448 = vshrl.u32 %v4447, 7
    %v4449 = vsub.s32 0, %v4448
    %v4450 = vrot.slane %v4445, %v4449
    %v4452 = vsel %vm178, %v4428, 0
    %4454 = vmatprep.subr.bf16.mxu0 0
    %4455 = vmatpush1.bf16.msra.mxu0 0
    %4456 = vmatprep.subr.bf16.mxu0 0
    %4457 = vmatpush1.bf16.msra.mxu0 0
    %4458 = vmatprep.subr.bf16.mxu0 0
    %4459 = vmatpush1.bf16.msra.mxu0 0
    %4460 = vmatprep.subr.bf16.mxu0 0
    %4461 = vmatpush1.bf16.msra.mxu0 0
    %4462 = vmatprep.subr.bf16.mxu0 0
    %4463 = vmatpush1.bf16.msra.mxu0 0
    %4464 = vmatprep.subr.bf16.mxu0 0
    %4465 = vmatpush1.bf16.msra.mxu0 0
    %4466 = vmatprep.subr.bf16.mxu0 %v4440
    %4467 = vmatpush1.bf16.msra.mxu0 %v4439
    %4468 = vmatprep.subr.bf16.mxu0 %v4438
    %4469 = vmatpush1.bf16.msra.mxu0 %v4437
    %4470 = vmatprep.subr.bf16.mxu0 0
    %4471 = vmatpush2.bf16.msra.mxu0 0
    %4472 = vmatprep.subr.bf16.mxu0 0
    %4473 = vmatpush2.bf16.msra.mxu0 0
    %4474 = vmatprep.subr.bf16.mxu0 0
    %4475 = vmatpush2.bf16.msra.mxu0 0
    %4476 = vmatprep.subr.bf16.mxu0 0
    %4477 = vmatpush2.bf16.msra.mxu0 0
    %4478 = vmatprep.subr.bf16.mxu0 0
    %4479 = vmatpush2.bf16.msra.mxu0 0
    %4480 = vmatprep.subr.bf16.mxu0 0
    %4481 = vmatpush2.bf16.msra.mxu0 0
    %4482 = vmatprep.subr.bf16.mxu0 0
    %4483 = vmatpush2.bf16.msra.mxu0 0
    %4484 = vmatprep.subr.bf16.mxu0 0
    %4485 = vmatpush2.bf16.msra.mxu0 0
    %4486 = vmatprep.mubr.bf16.mxu0 0
    %4487 = vmatmul.mubr.bf16.gmra.mxu0 %v4452
    %v4488 = vpop.f32.mrf.mxu0
    %v4489 = vadd.f32 %v4450, %v4488
    %v4490 = vpop.f32.mrf.mxu0
    %v4491 = vadd.f32 %v4450, %v4490
    %v4492 = vpop.f32.mrf.mxu0
    %v4493 = vpop.f32.mrf.mxu0
    %4494 = vdwg.mxu0
    %v4495 = vmax.f32 %v4489, 0.0
    %v4496 = vmax.f32 %v4491, 0.0
    %v4499 = vcombine.low %v4495, %v4496
    %v4501 = vunpack.c.l.s4 1966171168
    %v4502 = vunpack.c.0.s8 %v4501
    %v4503 = vlaneseq
    %v4504 = vshrl.u32 %v4503, 7
    %v4505 = vsub.s32 %v4502, %v4504
    %v4506 = vrot.slane %v4499, %v4505
    %v4508 = vunpack.c.l.s4 1966171168
    %v4509 = vunpack.c.0.s8 %v4508
    %v4510 = vlaneseq
    %v4511 = vshrl.u32 %v4510, 7
    %v4512 = vsub.s32 %v4509, %v4511
    %v4513 = vrot.slane %v4506, %v4512
    %v4515 = vlaneseq
    %vm4516 = vcmp.ge.s32.totalorder %v4515, 0
    %vm4517 = vcmp.lt.s32.totalorder %v4515, 256
    %vm4518 = vmand %vm4516, %vm4517
    %4519 = vst.msk [vmem:[#allocation3] ss:$2 sm:$0x3] %vm4518, %v4513
    %v4520 = vld [vmem:[#allocation2 + $0x10] sm:$0xff]
    %v4521 = vld [vmem:[#allocation2 + $0x18] sm:$0xff]
    %v4522 = vld [vmem:[#allocation2 + $0x30] sm:$0xff]
    %v4523 = vld [vmem:[#allocation2 + $0x38] sm:$0xff]
    %v4524 = vld [vmem:[#allocation2 + $0x50] sm:$0xff]
    %v4525 = vld [vmem:[#allocation2 + $0x58] sm:$0xff]
    %v4526 = vld [vmem:[#allocation2 + $0x70] sm:$0xff]
    %v4527 = vld [vmem:[#allocation2 + $0x78] sm:$0xff]
    %v4528 = vpack.c.bf16 %v4522, %v4520
    %v4529 = vpack.c.bf16 %v4523, %v4521
    %v4530 = vpack.c.bf16 %v4526, %v4524
    %v4531 = vpack.c.bf16 %v4527, %v4525
    %v4532 = vld [vmem:[#allocation4] sm:$0x1]
    %4534 = vset.pattern.permute.xlu0 0
    %4535 = vperm.xlu0 %4534, %v4532
    %v4536 = vpop.permute.xlu0 %4535
    %v4538 = vlaneseq
    %v4539 = vshrl.u32 %v4538, 7
    %v4540 = vsub.s32 0, %v4539
    %v4541 = vrot.slane %v4536, %v4540
    %4542 = vmatprep.subr.bf16.mxu0 0
    %4543 = vmatpush1.bf16.msra.mxu0 0
    %4544 = vmatprep.subr.bf16.mxu0 0
    %4545 = vmatpush1.bf16.msra.mxu0 0
    %4546 = vmatprep.subr.bf16.mxu0 0
    %4547 = vmatpush1.bf16.msra.mxu0 0
    %4548 = vmatprep.subr.bf16.mxu0 0
    %4549 = vmatpush1.bf16.msra.mxu0 0
    %4550 = vmatprep.subr.bf16.mxu0 0
    %4551 = vmatpush1.bf16.msra.mxu0 0
    %4552 = vmatprep.subr.bf16.mxu0 0
    %4553 = vmatpush1.bf16.msra.mxu0 0
    %4554 = vmatprep.subr.bf16.mxu0 %v4531
    %4555 = vmatpush1.bf16.msra.mxu0 %v4530
    %4556 = vmatprep.subr.bf16.mxu0 %v4529
    %4557 = vmatpush1.bf16.msra.mxu0 %v4528
    %4558 = vmatprep.subr.bf16.mxu0 0
    %4559 = vmatpush2.bf16.msra.mxu0 0
    %4560 = vmatprep.subr.bf16.mxu0 0
    %4561 = vmatpush2.bf16.msra.mxu0 0
    %4562 = vmatprep.subr.bf16.mxu0 0
    %4563 = vmatpush2.bf16.msra.mxu0 0
    %4564 = vmatprep.subr.bf16.mxu0 0
    %4565 = vmatpush2.bf16.msra.mxu0 0
    %4566 = vmatprep.subr.bf16.mxu0 0
    %4567 = vmatpush2.bf16.msra.mxu0 0
    %4568 = vmatprep.subr.bf16.mxu0 0
    %4569 = vmatpush2.bf16.msra.mxu0 0
    %4570 = vmatprep.subr.bf16.mxu0 0
    %4571 = vmatpush2.bf16.msra.mxu0 0
    %4572 = vmatprep.subr.bf16.mxu0 0
    %4573 = vmatpush2.bf16.msra.mxu0 0
    %4574 = vmatprep.mubr.bf16.mxu0 0
    %4575 = vmatmul.mubr.bf16.gmra.mxu0 %v4452
    %v4576 = vpop.f32.mrf.mxu0
    %v4577 = vadd.f32 %v4541, %v4576
    %v4578 = vpop.f32.mrf.mxu0
    %v4579 = vadd.f32 %v4541, %v4578
    %v4580 = vpop.f32.mrf.mxu0
    %v4581 = vpop.f32.mrf.mxu0
    %4582 = vdwg.mxu0
    %v4583 = vmax.f32 %v4577, 0.0
    %v4584 = vmax.f32 %v4579, 0.0
    %v4587 = vcombine.low %v4583, %v4584
    %v4589 = vunpack.c.l.s4 1966171168
    %v4590 = vunpack.c.0.s8 %v4589
    %v4591 = vlaneseq
    %v4592 = vshrl.u32 %v4591, 7
    %v4593 = vsub.s32 %v4590, %v4592
    %v4594 = vrot.slane %v4587, %v4593
    %v4596 = vunpack.c.l.s4 1966171168
    %v4597 = vunpack.c.0.s8 %v4596
    %v4598 = vlaneseq
    %v4599 = vshrl.u32 %v4598, 7
    %v4600 = vsub.s32 %v4597, %v4599
    %v4601 = vrot.slane %v4594, %v4600
    %s4603 = scalar_lea.vmem [#allocation3], 1
    %4604 = vst.msk [vmem:[%s4603] ss:$2 sm:$0x3] %vm4518, %v4601
    %v4605 = vld [vmem:[#allocation3] sm:$0xf]
    %v4608 = vunpack.c.l.s4 1983009808
    %v4609 = vunpack.c.0.s8 %v4608
    %v4610 = vlaneseq
    %v4611 = vshrl.u32 %v4610, 7
    %v4612 = vsub.s32 %v4609, %v4611
    %v4613 = vrot.slane %v4605, %v4612
    %v4614 = vcombine.high %v4613, %v4613
    %v4617 = vpack.c.bf16 %v4613, %v4613
    %v4618 = vpack.c.bf16 %v4614, %v4614
    %v4619 = vld [vmem:[%s7] sm:$0xff]
    %v4620 = vld [vmem:[%s7 + $0x8] sm:$0xff]
    %v4621 = vld [vmem:[%s7 + $0x10] sm:$0xff]
    %v4622 = vld [vmem:[%s7 + $0x18] sm:$0xff]
    %v4623 = vld [vmem:[%s7 + $0x20] sm:$0xff]
    %v4624 = vld [vmem:[%s7 + $0x28] sm:$0xff]
    %v4625 = vld [vmem:[%s7 + $0x30] sm:$0xff]
    %v4626 = vld [vmem:[%s7 + $0x38] sm:$0xff]
    %v4627 = vld [vmem:[%s7 + $0x40] sm:$0xff]
    %v4628 = vld [vmem:[%s7 + $0x48] sm:$0xff]
    %v4629 = vld [vmem:[%s7 + $0x50] sm:$0xff]
    %v4630 = vld [vmem:[%s7 + $0x58] sm:$0xff]
    %v4631 = vld [vmem:[%s7 + $0x60] sm:$0xff]
    %v4632 = vld [vmem:[%s7 + $0x68] sm:$0xff]
    %v4633 = vld [vmem:[%s7 + $0x70] sm:$0xff]
    %v4634 = vld [vmem:[%s7 + $0x78] sm:$0xff]
    %v4635 = vld [vmem:[%s7 + $0x80] sm:$0xff]
    %v4636 = vld [vmem:[%s7 + $0x88] sm:$0xff]
    %v4637 = vld [vmem:[%s7 + $0x90] sm:$0xff]
    %v4638 = vld [vmem:[%s7 + $0x98] sm:$0xff]
    %v4639 = vld [vmem:[%s7 + $0xa0] sm:$0xff]
    %v4640 = vld [vmem:[%s7 + $0xa8] sm:$0xff]
    %v4641 = vld [vmem:[%s7 + $0xb0] sm:$0xff]
    %v4642 = vld [vmem:[%s7 + $0xb8] sm:$0xff]
    %v4643 = vld [vmem:[%s7 + $0xc0] sm:$0xff]
    %v4644 = vld [vmem:[%s7 + $0xc8] sm:$0xff]
    %v4645 = vld [vmem:[%s7 + $0xd0] sm:$0xff]
    %v4646 = vld [vmem:[%s7 + $0xd8] sm:$0xff]
    %v4647 = vld [vmem:[%s7 + $0xe0] sm:$0xff]
    %v4648 = vld [vmem:[%s7 + $0xe8] sm:$0xff]
    %v4649 = vld [vmem:[%s7 + $0xf0] sm:$0xff]
    %v4650 = vld [vmem:[%s7 + $0xf8] sm:$0xff]
    %v4651 = vpack.c.bf16 %v4620, %v4619
    %v4652 = vpack.c.bf16 %v4622, %v4621
    %v4653 = vpack.c.bf16 %v4624, %v4623
    %v4654 = vpack.c.bf16 %v4626, %v4625
    %v4655 = vpack.c.bf16 %v4628, %v4627
    %v4656 = vpack.c.bf16 %v4630, %v4629
    %v4657 = vpack.c.bf16 %v4632, %v4631
    %v4658 = vpack.c.bf16 %v4634, %v4633
    %v4659 = vpack.c.bf16 %v4636, %v4635
    %v4660 = vpack.c.bf16 %v4638, %v4637
    %v4661 = vpack.c.bf16 %v4640, %v4639
    %v4662 = vpack.c.bf16 %v4642, %v4641
    %v4663 = vpack.c.bf16 %v4644, %v4643
    %v4664 = vpack.c.bf16 %v4646, %v4645
    %v4665 = vpack.c.bf16 %v4648, %v4647
    %v4666 = vpack.c.bf16 %v4650, %v4649
    %v4667 = vld [vmem:[%s8] sm:$0x1]
    %v4669 = vlaneseq
    %v4670 = vshrl.u32 %v4669, 7
    %v4671 = vsub.s32 0, %v4670
    %v4672 = vrot.slane %v4667, %v4671
    %4674 = vmatprep.subr.bf16.mxu0 0
    %4675 = vmatpush1.bf16.msra.mxu0 %v4658
    %4676 = vmatprep.subr.bf16.mxu0 0
    %4677 = vmatpush1.bf16.msra.mxu0 %v4657
    %4678 = vmatprep.subr.bf16.mxu0 0
    %4679 = vmatpush1.bf16.msra.mxu0 %v4656
    %4680 = vmatprep.subr.bf16.mxu0 0
    %4681 = vmatpush1.bf16.msra.mxu0 %v4655
    %4682 = vmatprep.subr.bf16.mxu0 0
    %4683 = vmatpush1.bf16.msra.mxu0 %v4654
    %4684 = vmatprep.subr.bf16.mxu0 0
    %4685 = vmatpush1.bf16.msra.mxu0 %v4653
    %4686 = vmatprep.subr.bf16.mxu0 0
    %4687 = vmatpush1.bf16.msra.mxu0 %v4652
    %4688 = vmatprep.subr.bf16.mxu0 0
    %4689 = vmatpush1.bf16.msra.mxu0 %v4651
    %4690 = vmatprep.subr.bf16.mxu0 0
    %4691 = vmatpush2.bf16.msra.mxu0 %v4666
    %4692 = vmatprep.subr.bf16.mxu0 0
    %4693 = vmatpush2.bf16.msra.mxu0 %v4665
    %4694 = vmatprep.subr.bf16.mxu0 0
    %4695 = vmatpush2.bf16.msra.mxu0 %v4664
    %4696 = vmatprep.subr.bf16.mxu0 0
    %4697 = vmatpush2.bf16.msra.mxu0 %v4663
    %4698 = vmatprep.subr.bf16.mxu0 0
    %4699 = vmatpush2.bf16.msra.mxu0 %v4662
    %4700 = vmatprep.subr.bf16.mxu0 0
    %4701 = vmatpush2.bf16.msra.mxu0 %v4661
    %4702 = vmatprep.subr.bf16.mxu0 0
    %4703 = vmatpush2.bf16.msra.mxu0 %v4660
    %4704 = vmatprep.subr.bf16.mxu0 0
    %4705 = vmatpush2.bf16.msra.mxu0 %v4659
    %4706 = vmatprep.mubr.bf16.mxu0 %v4618
    %4707 = vmatmul.mubr.bf16.gmra.mxu0 %v4617
    %v4708 = vpop.f32.mrf.mxu0
    %v4709 = vadd.f32 %v4672, %v4708
    %v4710 = vpop.f32.mrf.mxu0
    %v4711 = vpop.f32.mrf.mxu0
    %v4712 = vpop.f32.mrf.mxu0
    %4713 = vdwg.mxu0
    %v4714 = vmax.f32 %v4709, 0.0
    %v4715 = vpack.c.bf16 %v4714, %v4714
    %v4716 = vld [vmem:[%s9] sm:$0xff]
    %v4717 = vld [vmem:[%s9 + $0x8] sm:$0xff]
    %v4718 = vld [vmem:[%s9 + $0x10] sm:$0xff]
    %v4719 = vld [vmem:[%s9 + $0x18] sm:$0xff]
    %v4720 = vpack.c.bf16 %v4717, %v4716
    %v4721 = vpack.c.bf16 %v4719, %v4718
    %v4722 = vld [vmem:[%s10] sm:$0x1]
    %v4724 = vlaneseq
    %v4725 = vshrl.u32 %v4724, 7
    %v4726 = vsub.s32 0, %v4725
    %v4727 = vrot.slane %v4722, %v4726
    %v4730 = vsel %vm178, %v4715, 0
    %4732 = vmatprep.subr.bf16.mxu0 0
    %4733 = vmatpush1.bf16.msra.mxu0 0
    %4734 = vmatprep.subr.bf16.mxu0 0
    %4735 = vmatpush1.bf16.msra.mxu0 0
    %4736 = vmatprep.subr.bf16.mxu0 0
    %4737 = vmatpush1.bf16.msra.mxu0 0
    %4738 = vmatprep.subr.bf16.mxu0 0
    %4739 = vmatpush1.bf16.msra.mxu0 0
    %4740 = vmatprep.subr.bf16.mxu0 0
    %4741 = vmatpush1.bf16.msra.mxu0 0
    %4742 = vmatprep.subr.bf16.mxu0 0
    %4743 = vmatpush1.bf16.msra.mxu0 0
    %4744 = vmatprep.subr.bf16.mxu0 0
    %4745 = vmatpush1.bf16.msra.mxu0 %v4721
    %4746 = vmatprep.subr.bf16.mxu0 0
    %4747 = vmatpush1.bf16.msra.mxu0 %v4720
    %4748 = vmatprep.subr.bf16.mxu0 0
    %4749 = vmatpush2.bf16.msra.mxu0 0
    %4750 = vmatprep.subr.bf16.mxu0 0
    %4751 = vmatpush2.bf16.msra.mxu0 0
    %4752 = vmatprep.subr.bf16.mxu0 0
    %4753 = vmatpush2.bf16.msra.mxu0 0
    %4754 = vmatprep.subr.bf16.mxu0 0
    %4755 = vmatpush2.bf16.msra.mxu0 0
    %4756 = vmatprep.subr.bf16.mxu0 0
    %4757 = vmatpush2.bf16.msra.mxu0 0
    %4758 = vmatprep.subr.bf16.mxu0 0
    %4759 = vmatpush2.bf16.msra.mxu0 0
    %4760 = vmatprep.subr.bf16.mxu0 0
    %4761 = vmatpush2.bf16.msra.mxu0 0
    %4762 = vmatprep.subr.bf16.mxu0 0
    %4763 = vmatpush2.bf16.msra.mxu0 0
    %4764 = vmatprep.mubr.bf16.mxu0 0
    %4765 = vmatmul.mubr.bf16.gmra.mxu0 %v4730
    %v4766 = vpop.f32.mrf.mxu0
    %v4767 = vadd.f32 %v4727, %v4766
    %v4768 = vpop.f32.mrf.mxu0
    %v4769 = vpop.f32.mrf.mxu0
    %v4770 = vpop.f32.mrf.mxu0
    %4771 = vdwg.mxu0
    %vm4772 = vcmask 254976
    %v4773 = vsel %vm4772, %v4767, 0.0
    %4774 = vadd.xlane.f32.xlu0 %v4773
    %v4775 = vpop.xlane.xlu0 %4774
    %v4776 = vrcp.pop 32.0
    %v4777 = vmul.f32 %v4775, %v4776
    %v4778 = vsub.f32 %v4767, %v4777
    %v4779 = vmul.f32 %v4778, %v4778
    %v4780 = vsel %vm4772, %v4779, 0.0
    %4781 = vadd.xlane.f32.xlu0 %v4780
    %v4782 = vpop.xlane.xlu0 %4781
    %v4783 = vmul.f32 %v4782, %v4776
    %v4784 = vadd.f32 %v4783, 1e-05
    %v4785 = vrsqrt.pop %v4784
    %v4786 = vmul.f32 %v4778, %v4785
    %v4787 = vld [vmem:[%s11] sm:$0x1]
    %v4789 = vlaneseq
    %v4790 = vshrl.u32 %v4789, 7
    %v4791 = vsub.s32 0, %v4790
    %v4792 = vrot.slane %v4787, %v4791
    %v4794 = vmul.f32 %v4786, %v4792
    %v4795 = vld [vmem:[%s12] sm:$0x1]
    %v4797 = vlaneseq
    %v4798 = vshrl.u32 %v4797, 7
    %v4799 = vsub.s32 0, %v4798
    %v4800 = vrot.slane %v4795, %v4799
    %v4802 = vadd.f32 %v4794, %v4800
    %v4803 = vmax.f32 %v4802, 0.0
    %v4804 = vpack.c.bf16 %v4803, %v4803
    %v4805 = vld [vmem:[%s13] sm:$0xff]
    %v4806 = vld [vmem:[%s13 + $0x8] sm:$0xff]
    %v4807 = vld [vmem:[%s13 + $0x10] sm:$0xff]
    %v4808 = vld [vmem:[%s13 + $0x18] sm:$0xff]
    %v4809 = vpack.c.bf16 %v4806, %v4805
    %v4810 = vpack.c.bf16 %v4808, %v4807
    %v4811 = vld [vmem:[%s14] sm:$0x1]
    %v4813 = vlaneseq
    %v4814 = vshrl.u32 %v4813, 7
    %v4815 = vsub.s32 0, %v4814
    %v4816 = vrot.slane %v4811, %v4815
    %v4819 = vsel %vm178, %v4804, 0
    %4821 = vmatprep.subr.bf16.mxu0 0
    %4822 = vmatpush1.bf16.msra.mxu0 0
    %4823 = vmatprep.subr.bf16.mxu0 0
    %4824 = vmatpush1.bf16.msra.mxu0 0
    %4825 = vmatprep.subr.bf16.mxu0 0
    %4826 = vmatpush1.bf16.msra.mxu0 0
    %4827 = vmatprep.subr.bf16.mxu0 0
    %4828 = vmatpush1.bf16.msra.mxu0 0
    %4829 = vmatprep.subr.bf16.mxu0 0
    %4830 = vmatpush1.bf16.msra.mxu0 0
    %4831 = vmatprep.subr.bf16.mxu0 0
    %4832 = vmatpush1.bf16.msra.mxu0 0
    %4833 = vmatprep.subr.bf16.mxu0 0
    %4834 = vmatpush1.bf16.msra.mxu0 %v4810
    %4835 = vmatprep.subr.bf16.mxu0 0
    %4836 = vmatpush1.bf16.msra.mxu0 %v4809
    %4837 = vmatprep.subr.bf16.mxu0 0
    %4838 = vmatpush2.bf16.msra.mxu0 0
    %4839 = vmatprep.subr.bf16.mxu0 0
    %4840 = vmatpush2.bf16.msra.mxu0 0
    %4841 = vmatprep.subr.bf16.mxu0 0
    %4842 = vmatpush2.bf16.msra.mxu0 0
    %4843 = vmatprep.subr.bf16.mxu0 0
    %4844 = vmatpush2.bf16.msra.mxu0 0
    %4845 = vmatprep.subr.bf16.mxu0 0
    %4846 = vmatpush2.bf16.msra.mxu0 0
    %4847 = vmatprep.subr.bf16.mxu0 0
    %4848 = vmatpush2.bf16.msra.mxu0 0
    %4849 = vmatprep.subr.bf16.mxu0 0
    %4850 = vmatpush2.bf16.msra.mxu0 0
    %4851 = vmatprep.subr.bf16.mxu0 0
    %4852 = vmatpush2.bf16.msra.mxu0 0
    %4853 = vmatprep.mubr.bf16.mxu0 0
    %4854 = vmatmul.mubr.bf16.gmra.mxu0 %v4819
    %v4855 = vpop.f32.mrf.mxu0
    %v4856 = vadd.f32 %v4816, %v4855
    %v4857 = vpop.f32.mrf.mxu0
    %v4858 = vpop.f32.mrf.mxu0
    %v4859 = vpop.f32.mrf.mxu0
    %4860 = vdwg.mxu0
    %vm4861 = vcmask 123904
    %4862 = vst.msk [vmem:[#allocation5] sm:$0x3] %vm4861, %v4856
    // Predicated region
    $region62: #{encoder_forward.1} parent=1 // pred_check
      _
    $region63: #{encoder_forward.1} parent=1 // pred_check_branch
      %4864 = sbr.rel (0) target = $region65
    $region64: #{encoder_forward.1} parent=1 // pred_region
      %s4866 = ssub.s32 32, 32
      %4867 = vsyncadd [#allocation6], %s4866
      %s4869 = sshll.u32 [#allocation5], 4
      %s4870 = int_to_ptr.vmem [resolvable:$true] %s4869
      %4872 = dma.vmem_to_hbm [thread:$0]  %s4870, 32, %s15, [#allocation6]
    $region65: #{encoder_forward.1} parent=1 // pred_fallthru
      _
    // Predicated region
    $region66: #{encoder_forward.1} parent=1 // pred_check
      _
    $region67: #{encoder_forward.1} parent=1 // pred_check_branch
      %4874 = sbr.rel (0) target = $region69
    $region68: #{encoder_forward.1} parent=1 // pred_region
      %4875 = dma.done [#allocation6], 32
    $region69: #{encoder_forward.1} parent=1 // pred_fallthru
      _
    %4876 = vsyncpa [#allocation6], 1

</llo_original>
